<compile_context>
chip_gen: v7x
topology: tpu7x:2x2x1
jax: 0.10.0
libtpu: 0.0.40
codegen_flags: <defaults>
</compile_context>

<pallas_src>
import functools
import math

import jax
import jax.numpy as jnp
from jax.experimental import pallas as pl
from jax.experimental.pallas import tpu as pltpu

_SHIFT = math.log(2.0)


def _update_u_kernel(batch_ref, v_ref, w1_ref, b1_ref, w2_ref, b2_ref,
                     u_ref, counts_ref, *,
                     num_graphs, tile_n, tiles_per_core, n_nodes, needs_mask):
    c = pl.program_id(0)                      # core-split index ("parallel")
    i = pl.program_id(1)                      # node-tile index  ("arbitrary")
    t = c * tiles_per_core + i                # global node-tile index (unclamped)

    # Output tile + counts are resident across the node-tile axis: init once.
    @pl.when(i == 0)
    def _():
        u_ref[...] = jnp.zeros_like(u_ref)
        counts_ref[...] = jnp.zeros_like(counts_ref)

    v = v_ref[...].astype(jnp.float32)        # (tile_n, hidden), bf16 -> f32
    seg = batch_ref[...]                      # (1, tile_n) int32 graph ids

    if needs_mask:
        # Ragged last tile / phantom tiles past N: zero their contribution.
        row0 = t * tile_n
        lane = jax.lax.broadcasted_iota(jnp.int32, (1, tile_n), 1)
        valid_lane = (row0 + lane) < n_nodes                  # (1, tile_n)
        seg = jnp.where(valid_lane, seg, num_graphs)          # -> all-zero one-hot col
        sub = jax.lax.broadcasted_iota(jnp.int32, (tile_n, 1), 0)
        valid_sub = (row0 + sub) < n_nodes                    # (tile_n, 1)
        v = jnp.where(valid_sub, v, 0.0)                      # keep y finite

    # lin1 + shifted softplus
    h = jnp.dot(v, w1_ref[...], preferred_element_type=jnp.float32) + b1_ref[...]
    h = jax.nn.softplus(h) - _SHIFT                           # (tile_n, hidden//2)

    # lin2 WITHOUT bias (b2 applied once per graph at the end, scaled by count)
    y = jnp.dot(h, w2_ref[...], preferred_element_type=jnp.float32)  # (tile_n, out)

    # scatter_add_ / segment_sum as a lane-major one-hot matmul on the MXU:
    #   onehot_t[g, n] = (batch[n] == g);  u += onehot_t @ y
    onehot_t = (jax.lax.broadcasted_iota(jnp.int32, (num_graphs, tile_n), 0)
                == seg).astype(jnp.float32)                   # (num_graphs, tile_n)
    u_ref[...] += jnp.dot(onehot_t, y, preferred_element_type=jnp.float32)
    counts_ref[...] += jnp.sum(onehot_t, axis=1, keepdims=True)

    @pl.when(i == pl.num_programs(1) - 1)
    def _():
        u_ref[...] += counts_ref[...] * b2_ref[...]           # (G,1) * (1,out)


def update_u_pallas(v, batch, w1, b1, w2, b2, num_graphs, *,
                    tile_n=512, num_core_splits=2,
                    stream_dtype=jnp.bfloat16):
    """v: (N, hidden), batch: (N,) int32 graph ids. Returns (num_graphs, out) f32.

    Note: out-of-range graph ids (>= num_graphs) are silently dropped, matching
    jax.ops.segment_sum (PyTorch scatter_add_ would instead index OOB).
    """
    N, hidden = v.shape
    half = w1.shape[1]
    out_ch = w2.shape[1]

    tile_n = min(tile_n, N)
    if tile_n < N:
        # lane tiling of the (1, N) batch row and sublane tiling of bf16 v
        assert tile_n % 128 == 0, "tile_n must be a multiple of 128 when tiling nodes"

    total_tiles = pl.cdiv(N, tile_n)
    tiles_per_core = pl.cdiv(total_tiles, num_core_splits)
    needs_mask = (N % tile_n != 0) or (tiles_per_core * num_core_splits != total_tiles)
    last_tile = total_tiles - 1

    def node_tile(c, i):
        # Clamp so phantom tiles (past the end of the array) keep the DMA in
        # bounds; their contribution is zeroed by the in-kernel row mask.
        return jnp.minimum(c * tiles_per_core + i, last_tile)

    batch_row = batch.reshape(1, N).astype(jnp.int32)   # lane-major graph ids
    v_stream = v.astype(stream_dtype)                   # halve HBM bytes on hot path
    w1 = w1.astype(jnp.float32)
    w2 = w2.astype(jnp.float32)
    b1_2d = b1.reshape(1, half).astype(jnp.float32)
    b2_2d = b2.reshape(1, out_ch).astype(jnp.float32)

    kernel = functools.partial(
        _update_u_kernel,
        num_graphs=num_graphs, tile_n=tile_n, tiles_per_core=tiles_per_core,
        n_nodes=N, needs_mask=needs_mask)

    partials = pl.pallas_call(
        kernel,
        out_shape=jax.ShapeDtypeStruct((num_core_splits, num_graphs, out_ch),
                                       jnp.float32),
        grid_spec=pltpu.PrefetchScalarGridSpec(
            num_scalar_prefetch=0,
            grid=(num_core_splits, tiles_per_core),
            in_specs=[
                pl.BlockSpec((1, tile_n), lambda c, i: (0, node_tile(c, i))),       # batch
                pl.BlockSpec((tile_n, hidden), lambda c, i: (node_tile(c, i), 0)),  # v
                pl.BlockSpec((hidden, half), lambda c, i: (0, 0)),                  # W1
                pl.BlockSpec((1, half), lambda c, i: (0, 0)),                       # b1
                pl.BlockSpec((half, out_ch), lambda c, i: (0, 0)),                  # W2
                pl.BlockSpec((1, out_ch), lambda c, i: (0, 0)),                     # b2
            ],
            # per-core partial sums; leading dim squeezed inside the kernel
            out_specs=pl.BlockSpec((None, num_graphs, out_ch),
                                   lambda c, i: (c, 0, 0)),
            scratch_shapes=[pltpu.VMEM((num_graphs, 1), jnp.float32)],  # node counts
        ),
        compiler_params=pltpu.CompilerParams(
            dimension_semantics=("parallel", "arbitrary")),
    )(batch_row, v_stream, w1, b1_2d, w2, b2_2d)

    # TODO(synk): if xprof still shows exposed copy-wait on v, add
    # pipeline_mode=pl.Buffered(3) on the v BlockSpec.
    return partials.sum(axis=0)


def _xavier_uniform(key, fan_in, fan_out, shape):
    bound = math.sqrt(6.0 / (fan_in + fan_out))
    return jax.random.uniform(key, shape, jnp.float32, -bound, bound)


def _reference(v, batch, w1, b1, w2, b2, num_graphs):
    h = jax.nn.softplus(v @ w1 + b1) - _SHIFT
    y = h @ w2 + b2
    return jax.ops.segment_sum(y, batch, num_segments=num_graphs)


if __name__ == "__main__":
    key = jax.random.PRNGKey(0)
    k_v, k_w1, k_w2, k_b1, k_b2, k_seg = jax.random.split(key, 6)

    # Small shapes consistent with the module's forward.  N is deliberately not
    # a multiple of tile_n so the ragged-tail masking path is exercised.
    N = 1000
    hidden_channels = 32
    half = hidden_channels // 2
    out_channels = 16
    num_graphs = 3

    v = jax.random.normal(k_v, (N, hidden_channels), jnp.float32)
    batch = jax.random.randint(k_seg, (N,), 0, num_graphs, jnp.int32)

    # Parameters stored transposed for y = x @ W + b (PyTorch Linear keeps W^T).
    w1 = _xavier_uniform(k_w1, hidden_channels, half, (hidden_channels, half))
    w2 = _xavier_uniform(k_w2, half, out_channels, (half, out_channels))
    # The module zero-inits biases; small nonzero ones are used here so the
    # deferred count*b2 path is actually verified.
    b1 = 0.1 * jax.random.normal(k_b1, (half,), jnp.float32)
    b2 = 0.1 * jax.random.normal(k_b2, (out_channels,), jnp.float32)

    u = update_u_pallas(v, batch, w1, b1, w2, b2, num_graphs)
    u = jax.block_until_ready(u)

    # Reference matches the kernel's bf16 streaming of v (same rounding of v).
    v_ref_in = v.astype(jnp.bfloat16).astype(jnp.float32)
    u_ref = _reference(v_ref_in, batch, w1, b1, w2, b2, num_graphs)

    assert u.shape == (num_graphs, out_channels)
    assert jnp.allclose(u, u_ref, atol=2e-3, rtol=2e-3), "mismatch vs reference"
    print("KERNEL_OK")
</pallas_src>

<mosaic_0001>
module attributes {stable_mosaic.version = 11 : i64} {
  func.func @_update_u_kernel(%arg0: i32, %arg1: i32, %arg2: memref<1x512xi32, #tpu.memory_space<vmem>>, %arg3: memref<512x32xbf16, #tpu.memory_space<vmem>>, %arg4: memref<32x16xf32, #tpu.memory_space<vmem>>, %arg5: memref<1x16xf32, #tpu.memory_space<vmem>>, %arg6: memref<16x16xf32, #tpu.memory_space<vmem>>, %arg7: memref<1x16xf32, #tpu.memory_space<vmem>>, %arg8: memref<1x3x16xf32, #tpu.memory_space<vmem>>, %arg9: memref<3x1xf32, #tpu.memory_space<vmem>>) attributes {dimension_semantics = [#tpu.dimension_semantics<parallel>, #tpu.dimension_semantics<arbitrary>], iteration_bounds = array<i64: 2, 1>, scalar_prefetch = 0 : i64, scratch_operands = 1 : i64, tpu.core_type = #tpu.core_type<tc>, window_params = [{transform_indices = @transform_0, window_bounds = array<i64: 1, 512>}, {transform_indices = @transform_1, window_bounds = array<i64: 512, 32>}, {pipeline_mode = #tpu.pipeline_mode<synchronous>, transform_indices = @transform_2, window_bounds = array<i64: 32, 16>}, {pipeline_mode = #tpu.pipeline_mode<synchronous>, transform_indices = @transform_3, window_bounds = array<i64: 1, 16>}, {pipeline_mode = #tpu.pipeline_mode<synchronous>, transform_indices = @transform_4, window_bounds = array<i64: 16, 16>}, {pipeline_mode = #tpu.pipeline_mode<synchronous>, transform_indices = @transform_5, window_bounds = array<i64: 1, 16>}, {transform_indices = @transform_6, window_bounds = array<i64: 1, 3, 16>}]} {
    %c1_i32 = arith.constant 1 : i32
    %0 = arith.muli %arg0, %c1_i32 : i32
    %1 = arith.addi %0, %arg1 : i32
    %c0_i32 = arith.constant 0 : i32
    %2 = arith.cmpi eq, %arg1, %c0_i32 : i32
    %3 = arith.extui %2 : i1 to i32
    %c0_i32_0 = arith.constant 0 : i32
    %4 = arith.cmpi ne, %3, %c0_i32_0 : i32
    scf.if %4 {
      %cst_30 = arith.constant 0.000000e+00 : f32
      %68 = vector.broadcast %cst_30 : f32 to vector<3x16xf32>
      %c0_31 = arith.constant 0 : index
      %c0_32 = arith.constant 0 : index
      %c0_33 = arith.constant 0 : index
      %69 = vector.load %arg8[%c0_31, %c0_32, %c0_33] : memref<1x3x16xf32, #tpu.memory_space<vmem>>, vector<1x3x16xf32>
      %70 = vector.shape_cast %69 : vector<1x3x16xf32> to vector<3x16xf32>
      %71 = vector.shape_cast %68 : vector<3x16xf32> to vector<1x3x16xf32>
      tpu.vector_store %arg8[%c0_31, %c0_32, %c0_33], %71 {strides = array<i32>} : memref<1x3x16xf32, #tpu.memory_space<vmem>>, vector<1x3x16xf32>,
      %cst_34 = arith.constant 0.000000e+00 : f32
      %72 = vector.broadcast %cst_34 : f32 to vector<3x1xf32>
      %c0_35 = arith.constant 0 : index
      %c0_36 = arith.constant 0 : index
      %73 = vector.load %arg9[%c0_35, %c0_36] : memref<3x1xf32, #tpu.memory_space<vmem>>, vector<3x1xf32>
      tpu.vector_store %arg9[%c0_35, %c0_36], %72 {strides = array<i32>} : memref<3x1xf32, #tpu.memory_space<vmem>>, vector<3x1xf32>,
    } else {
    }
    %c0 = arith.constant 0 : index
    %c0_1 = arith.constant 0 : index
    %5 = vector.load %arg3[%c0, %c0_1] : memref<512x32xbf16, #tpu.memory_space<vmem>>, vector<512x32xbf16>
    %6 = arith.extf %5 : vector<512x32xbf16> to vector<512x32xf32>
    %c0_2 = arith.constant 0 : index
    %c0_3 = arith.constant 0 : index
    %7 = vector.load %arg2[%c0_2, %c0_3] : memref<1x512xi32, #tpu.memory_space<vmem>>, vector<1x512xi32>
    %c512_i32 = arith.constant 512 : i32
    %8 = arith.muli %1, %c512_i32 : i32
    %9 = tpu.iota {dimensions = array<i32: 1>} : vector<1x512xi32>
    %10 = vector.broadcast %8 : i32 to vector<1x512xi32>
    %11 = arith.addi %10, %9 : vector<1x512xi32>
    %c1000_i32 = arith.constant 1000 : i32
    %12 = vector.broadcast %c1000_i32 : i32 to vector<1x512xi32>
    %13 = arith.cmpi slt, %11, %12 : vector<1x512xi32>
    %c3_i32 = arith.constant 3 : i32
    %14 = vector.broadcast %c3_i32 : i32 to vector<1x512xi32>
    %15 = arith.select %13, %7, %14 : vector<1x512xi1>, vector<1x512xi32>
    %16 = tpu.iota {dimensions = array<i32: 0>} : vector<512x1xi32>
    %17 = vector.broadcast %8 : i32 to vector<512x1xi32>
    %18 = arith.addi %17, %16 : vector<512x1xi32>
    %c1000_i32_4 = arith.constant 1000 : i32
    %19 = vector.broadcast %c1000_i32_4 : i32 to vector<512x1xi32>
    %20 = arith.cmpi slt, %18, %19 : vector<512x1xi32>
    %cst = arith.constant 0.000000e+00 : f32
    %21 = vector.shape_cast %20 : vector<512x1xi1> to vector<512x1xi1>
    %22 = vector.broadcast %21 : vector<512x1xi1> to vector<512x32xi1>
    %23 = vector.broadcast %cst : f32 to vector<512x32xf32>
    %24 = arith.select %22, %6, %23 : vector<512x32xi1>, vector<512x32xf32>
    %c0_5 = arith.constant 0 : index
    %c0_6 = arith.constant 0 : index
    %25 = vector.load %arg4[%c0_5, %c0_6] : memref<32x16xf32, #tpu.memory_space<vmem>>, vector<32x16xf32>
    %cst_7 = arith.constant dense<0.000000e+00> : vector<512x16xf32>
    %26 = tpu.matmul %24, %25, %cst_7 {dimension_numbers = #tpu.dot_dimension_numbers<[1], [0], [0], [1], [0, 0, 1, 1], [], []>} : vector<512x32xf32>, vector<32x16xf32>, vector<512x16xf32> -> vector<512x16xf32>
    %c0_8 = arith.constant 0 : index
    %c0_9 = arith.constant 0 : index
    %27 = vector.load %arg5[%c0_8, %c0_9] : memref<1x16xf32, #tpu.memory_space<vmem>>, vector<1x16xf32>
    %28 = vector.broadcast %27 : vector<1x16xf32> to vector<512x16xf32>
    %29 = arith.addf %26, %28 : vector<512x16xf32>
    %cst_10 = arith.constant 0.000000e+00 : f32
    %30 = vector.broadcast %cst_10 : f32 to vector<512x16xf32>
    %31 = arith.maximumf %29, %30 : vector<512x16xf32>
    %32 = vector.broadcast %cst_10 : f32 to vector<512x16xf32>
    %33 = arith.subf %29, %32 : vector<512x16xf32>
    %34 = arith.cmpf one, %33, %33 : vector<512x16xf32>
    %35 = vector.broadcast %cst_10 : f32 to vector<512x16xf32>
    %36 = arith.addf %29, %35 : vector<512x16xf32>
    %37 = math.absf %33 : vector<512x16xf32>
    %cst_11 = arith.constant 0.000000e+00 : f32
    %38 = vector.broadcast %cst_11 : f32 to vector<512x16xf32>
    %39 = arith.subf %38, %37 : vector<512x16xf32>
    %40 = math.exp %39 : vector<512x16xf32>
    %41 = math.log1p %40 : vector<512x16xf32>
    %42 = arith.addf %31, %41 : vector<512x16xf32>
    %43 = arith.select %34, %36, %42 : vector<512x16xi1>, vector<512x16xf32>
    %cst_12 = arith.constant 0.693147182 : f32
    %44 = vector.broadcast %cst_12 : f32 to vector<512x16xf32>
    %45 = arith.subf %43, %44 : vector<512x16xf32>
    %c0_13 = arith.constant 0 : index
    %c0_14 = arith.constant 0 : index
    %46 = vector.load %arg6[%c0_13, %c0_14] : memref<16x16xf32, #tpu.memory_space<vmem>>, vector<16x16xf32>
    %cst_15 = arith.constant dense<0.000000e+00> : vector<512x16xf32>
    %47 = tpu.matmul %45, %46, %cst_15 {dimension_numbers = #tpu.dot_dimension_numbers<[1], [0], [0], [1], [0, 0, 1, 1], [], []>} : vector<512x16xf32>, vector<16x16xf32>, vector<512x16xf32> -> vector<512x16xf32>
    %48 = tpu.iota {dimensions = array<i32: 0>} : vector<3x512xi32>
    %49 = vector.broadcast %15 : vector<1x512xi32> to vector<3x512xi32>
    %50 = arith.cmpi eq, %48, %49 : vector<3x512xi32>
    %51 = arith.extui %50 : vector<3x512xi1> to vector<3x512xi32>
    %52 = arith.sitofp %51 : vector<3x512xi32> to vector<3x512xf32>
    %c0_16 = arith.constant 0 : index
    %c0_17 = arith.constant 0 : index
    %c0_18 = arith.constant 0 : index
    %53 = vector.load %arg8[%c0_16, %c0_17, %c0_18] : memref<1x3x16xf32, #tpu.memory_space<vmem>>, vector<1x3x16xf32>
    %54 = vector.shape_cast %53 : vector<1x3x16xf32> to vector<3x16xf32>
    %cst_19 = arith.constant dense<0.000000e+00> : vector<3x16xf32>
    %55 = tpu.matmul %52, %47, %cst_19 {dimension_numbers = #tpu.dot_dimension_numbers<[1], [0], [0], [1], [0, 0, 1, 1], [], []>} : vector<3x512xf32>, vector<512x16xf32>, vector<3x16xf32> -> vector<3x16xf32>
    %56 = arith.addf %54, %55 : vector<3x16xf32>
    %c0_20 = arith.constant 0 : index
    %c0_21 = arith.constant 0 : index
    %c0_22 = arith.constant 0 : index
    %57 = vector.load %arg8[%c0_20, %c0_21, %c0_22] : memref<1x3x16xf32, #tpu.memory_space<vmem>>, vector<1x3x16xf32>
    %58 = vector.shape_cast %57 : vector<1x3x16xf32> to vector<3x16xf32>
    %59 = vector.shape_cast %56 : vector<3x16xf32> to vector<1x3x16xf32>
    tpu.vector_store %arg8[%c0_20, %c0_21, %c0_22], %59 {strides = array<i32>} : memref<1x3x16xf32, #tpu.memory_space<vmem>>, vector<1x3x16xf32>,
    %c0_23 = arith.constant 0 : index
    %c0_24 = arith.constant 0 : index
    %60 = vector.load %arg9[%c0_23, %c0_24] : memref<3x1xf32, #tpu.memory_space<vmem>>, vector<3x1xf32>
    %cst_25 = arith.constant dense<0.000000e+00> : vector<3xf32>
    %61 = vector.multi_reduction <add>, %52, %cst_25 [1] : vector<3x512xf32> to vector<3xf32>
    %62 = vector.shape_cast %61 : vector<3xf32> to vector<3x1xf32>
    %63 = arith.addf %60, %62 : vector<3x1xf32>
    %c0_26 = arith.constant 0 : index
    %c0_27 = arith.constant 0 : index
    %64 = vector.load %arg9[%c0_26, %c0_27] : memref<3x1xf32, #tpu.memory_space<vmem>>, vector<3x1xf32>
    tpu.vector_store %arg9[%c0_26, %c0_27], %63 {strides = array<i32>} : memref<3x1xf32, #tpu.memory_space<vmem>>, vector<3x1xf32>,
    %c0_i32_28 = arith.constant 0 : i32
    %65 = arith.cmpi eq, %arg1, %c0_i32_28 : i32
    %66 = arith.extui %65 : i1 to i32
    %c0_i32_29 = arith.constant 0 : i32
    %67 = arith.cmpi ne, %66, %c0_i32_29 : i32
    scf.if %67 {
      %c0_30 = arith.constant 0 : index
      %c0_31 = arith.constant 0 : index
      %c0_32 = arith.constant 0 : index
      %68 = vector.load %arg8[%c0_30, %c0_31, %c0_32] : memref<1x3x16xf32, #tpu.memory_space<vmem>>, vector<1x3x16xf32>
      %69 = vector.shape_cast %68 : vector<1x3x16xf32> to vector<3x16xf32>
      %c0_33 = arith.constant 0 : index
      %c0_34 = arith.constant 0 : index
      %70 = vector.load %arg9[%c0_33, %c0_34] : memref<3x1xf32, #tpu.memory_space<vmem>>, vector<3x1xf32>
      %c0_35 = arith.constant 0 : index
      %c0_36 = arith.constant 0 : index
      %71 = vector.load %arg7[%c0_35, %c0_36] : memref<1x16xf32, #tpu.memory_space<vmem>>, vector<1x16xf32>
      %72 = vector.broadcast %70 : vector<3x1xf32> to vector<3x16xf32>
      %73 = vector.broadcast %71 : vector<1x16xf32> to vector<3x16xf32>
      %74 = arith.mulf %72, %73 : vector<3x16xf32>
      %75 = arith.addf %69, %74 : vector<3x16xf32>
      %c0_37 = arith.constant 0 : index
      %c0_38 = arith.constant 0 : index
      %c0_39 = arith.constant 0 : index
      %76 = vector.load %arg8[%c0_37, %c0_38, %c0_39] : memref<1x3x16xf32, #tpu.memory_space<vmem>>, vector<1x3x16xf32>
      %77 = vector.shape_cast %76 : vector<1x3x16xf32> to vector<3x16xf32>
      %78 = vector.shape_cast %75 : vector<3x16xf32> to vector<1x3x16xf32>
      tpu.vector_store %arg8[%c0_37, %c0_38, %c0_39], %78 {strides = array<i32>} : memref<1x3x16xf32, #tpu.memory_space<vmem>>, vector<1x3x16xf32>,
    } else {
    }
    return
  }
  func.func @transform_0(%arg0: i32, %arg1: i32) -> (i32, i32) {
    %c1_i32 = arith.constant 1 : i32
    %0 = arith.muli %arg0, %c1_i32 : i32
    %1 = arith.addi %0, %arg1 : i32
    %c1_i32_0 = arith.constant 1 : i32
    %2 = arith.minsi %1, %c1_i32_0 : i32
    %c0_i32 = arith.constant 0 : i32
    %c0_i32_1 = arith.constant 0 : i32
    return %c0_i32, %2 : i32, i32
  }
  func.func @transform_1(%arg0: i32, %arg1: i32) -> (i32, i32) {
    %c1_i32 = arith.constant 1 : i32
    %0 = arith.muli %arg0, %c1_i32 : i32
    %1 = arith.addi %0, %arg1 : i32
    %c1_i32_0 = arith.constant 1 : i32
    %2 = arith.minsi %1, %c1_i32_0 : i32
    %c0_i32 = arith.constant 0 : i32
    %c0_i32_1 = arith.constant 0 : i32
    return %2, %c0_i32 : i32, i32
  }
  func.func @transform_2(%arg0: i32, %arg1: i32) -> (i32, i32) {
    %c0_i32 = arith.constant 0 : i32
    %c0_i32_0 = arith.constant 0 : i32
    %c0_i32_1 = arith.constant 0 : i32
    return %c0_i32, %c0_i32_0 : i32, i32
  }
  func.func @transform_3(%arg0: i32, %arg1: i32) -> (i32, i32) {
    %c0_i32 = arith.constant 0 : i32
    %c0_i32_0 = arith.constant 0 : i32
    %c0_i32_1 = arith.constant 0 : i32
    return %c0_i32, %c0_i32_0 : i32, i32
  }
  func.func @transform_4(%arg0: i32, %arg1: i32) -> (i32, i32) {
    %c0_i32 = arith.constant 0 : i32
    %c0_i32_0 = arith.constant 0 : i32
    %c0_i32_1 = arith.constant 0 : i32
    return %c0_i32, %c0_i32_0 : i32, i32
  }
  func.func @transform_5(%arg0: i32, %arg1: i32) -> (i32, i32) {
    %c0_i32 = arith.constant 0 : i32
    %c0_i32_0 = arith.constant 0 : i32
    %c0_i32_1 = arith.constant 0 : i32
    return %c0_i32, %c0_i32_0 : i32, i32
  }
  func.func @transform_6(%arg0: i32, %arg1: i32) -> (i32, i32, i32) {
    %c0_i32 = arith.constant 0 : i32
    %c0_i32_0 = arith.constant 0 : i32
    %c0_i32_1 = arith.constant 0 : i32
    return %arg0, %c0_i32, %c0_i32_0 : i32, i32, i32
  }
}

</mosaic_0001>

<llo_original>
// kernel: tpu_custom_call.1
$region0: #{tpu_custom_call.1}
  #allocation0 [shape = 'u32[]', space=smem, size = 0x4, offset = 0x4, fixed_abs, tag = 'smem constant byte address 0x4 - core index']
  #allocation1 [shape = 'u32[144,128]{1,0:T(1,128)}', space=vmem, size = 0x12000, scoped, tag = 'internal scratch']
  #allocation2 [shape = 'f32[3,1]{1,0:T(4,128)}', space=vmem, size = 0x800, scoped, tag = 'scratch operand']
  %s0 = inlined_call_operand.vmem [shape: s32[1,1000], index: 0, kind: input, shape index: {}]
  %s1 = inlined_call_operand.vmem [shape: bf16[1000,32], index: 1, kind: input, shape index: {}]
  %s2 = inlined_call_operand.vmem [shape: f32[32,16], index: 2, kind: input, shape index: {}]
  %s3 = inlined_call_operand.vmem [shape: f32[1,16], index: 3, kind: input, shape index: {}]
  %s4 = inlined_call_operand.vmem [shape: f32[16,16], index: 4, kind: input, shape index: {}]
  %s5 = inlined_call_operand.vmem [shape: f32[1,16], index: 5, kind: input, shape index: {}]
  %s6 = inlined_call_operand.vmem [shape: f32[2,3,16], index: 6, kind: output, shape index: {}]
  %s7 = sld [smem:[#allocation0]]
  $region65: #{tpu_custom_call.1} parent=0
    _
  %s9 = ssub.s32 1, %s7
  %s10 = scalar_select 0, %s9, %s7
  loop: start=0, step=1, limit=4
  $region2: #{tpu_custom_call.1} parent=0 // loop_pre_header
    _
  $region3: #{tpu_custom_call.1} parent=0 // loop_header
    %s12 = sphi 0, %s16
    %p13 = scmp.ge.s32.totalorder %s12, 4
    %s19 = sphi 0, %s31
    %s20 = sphi 0, %s27
    %s21 = sphi 0, %s19
    %s22 = sphi 0, %s20
    %s23 = sphi 0, %s21
    %s24 = sphi 0, %s22
    %s40 = sphi 0, %s42
    %s43 = sphi 0, %s40
    %s44 = sphi 0, %s43
    %s60 = sphi 0, %s44
    %s72 = sphi 0, %s74
    %s75 = sphi 0, %s72
    %s76 = sphi 0, %s75
    %s92 = sphi 0, %s76
    %s96 = sphi 0, %s96
    %s98 = sphi 0, %s96
    %s99 = sphi 0, %s98
    %s113 = sphi 0, %s99
    %s117 = sphi 0, %s117
    %s119 = sphi 0, %s117
    %s120 = sphi 0, %s119
    %s134 = sphi 0, %s120
    %s138 = sphi 0, %s138
    %s140 = sphi 0, %s138
    %s141 = sphi 0, %s140
    %s155 = sphi 0, %s141
    %s159 = sphi 0, %s159
    %s161 = sphi 0, %s159
    %s162 = sphi 0, %s161
    %s176 = sphi 0, %s162
    %s182 = sphi 0, %s184
    %s185 = sphi 0, %s182
    %s186 = sphi 0, %s185
    %s202 = sphi 0, %s186
  $region4: #{tpu_custom_call.1} parent=0 // loop_header_branch
    %15 = sbr.rel (%p13) target = $region8
  $region5: #{tpu_custom_call.1} parent=0 // loop_body
    %s17 = ssub.s32 %s12, 1
    %s18 = ssub.s32 %s12, 2
    %s25 = sadd.s32 1, %s20
    %p26 = scmp.ge.s32.totalorder %s25, 1
    %s27 = scalar_select %p26, 0, %s25
    %s28 = sadd.s32 1, %s19
    %s29 = scalar_select %p26, %s28, %s19
    %p30 = scmp.ge.s32.totalorder %s29, 2
    %s31 = scalar_select %p30, 0, %s29
    %s32 = sadd.s32 %s19, %s20
    %p33 = scmp.lt.s32.totalorder %s32, 1
    %s34 = scalar_select %p33, %s32, 1
    %s35 = sadd.s32 %s31, %s27
    %p36 = scmp.lt.s32.totalorder %s35, 1
    %s37 = scalar_select %p36, %s35, 1
    %s38 = ssub.s32 %s34, %s37
    %p39 = scmp.eq.s32.totalorder %s38, 0
    %s41 = sadd.s32 %s40, 1
    %s42 = scalar_select %p39, %s40, %s41
    %p45 = pneg %p39
    %p46 = scmp.eq.s32.totalorder %s12, 1
    %p47 = por %p45, %p46
    %p48 = scmp.ne.s32.totalorder %s40, %s43
    %p49 = scmp.eq.s32.totalorder %s12, 0
    %p50 = por %p48, %p49
    %p51 = scmp.ne.s32.totalorder %s40, %s43
    %p52 = scmp.eq.s32.totalorder %s17, 1
    %p53 = por %p51, %p52
    %p54 = scmp.ne.s32.totalorder %s43, %s44
    %p55 = scmp.eq.s32.totalorder %s17, 0
    %p56 = por %p54, %p55
    %p57 = scmp.ne.s32.totalorder %s43, %s44
    %p58 = scmp.eq.s32.totalorder %s18, 1
    %p59 = por %p57, %p58
    %p61 = scmp.ne.s32.totalorder %s44, %s60
    %p62 = scmp.eq.s32.totalorder %s18, 0
    %p63 = por %p61, %p62
    %s64 = sadd.s32 %s19, %s20
    %p65 = scmp.lt.s32.totalorder %s64, 1
    %s66 = scalar_select %p65, %s64, 1
    %s67 = sadd.s32 %s31, %s27
    %p68 = scmp.lt.s32.totalorder %s67, 1
    %s69 = scalar_select %p68, %s67, 1
    %s70 = ssub.s32 %s66, %s69
    %p71 = scmp.eq.s32.totalorder %s70, 0
    %s73 = sadd.s32 %s72, 1
    %s74 = scalar_select %p71, %s72, %s73
    %p77 = pneg %p71
    %p78 = scmp.eq.s32.totalorder %s12, 1
    %p79 = por %p77, %p78
    %p80 = scmp.ne.s32.totalorder %s72, %s75
    %p81 = scmp.eq.s32.totalorder %s12, 0
    %p82 = por %p80, %p81
    %p83 = scmp.ne.s32.totalorder %s72, %s75
    %p84 = scmp.eq.s32.totalorder %s17, 1
    %p85 = por %p83, %p84
    %p86 = scmp.ne.s32.totalorder %s75, %s76
    %p87 = scmp.eq.s32.totalorder %s17, 0
    %p88 = por %p86, %p87
    %p89 = scmp.ne.s32.totalorder %s75, %s76
    %p90 = scmp.eq.s32.totalorder %s18, 1
    %p91 = por %p89, %p90
    %p93 = scmp.ne.s32.totalorder %s76, %s92
    %p94 = scmp.eq.s32.totalorder %s18, 0
    %p95 = por %p93, %p94
    %s97 = sadd.s32 %s96, 1
    %p100 = scmp.eq.s32.totalorder %s12, 1
    %p101 = scmp.ne.s32.totalorder %s96, %s98
    %p102 = scmp.eq.s32.totalorder %s12, 0
    %p103 = por %p101, %p102
    %p104 = scmp.ne.s32.totalorder %s96, %s98
    %p105 = scmp.eq.s32.totalorder %s17, 1
    %p106 = por %p104, %p105
    %p107 = scmp.ne.s32.totalorder %s98, %s99
    %p108 = scmp.eq.s32.totalorder %s17, 0
    %p109 = por %p107, %p108
    %p110 = scmp.ne.s32.totalorder %s98, %s99
    %p111 = scmp.eq.s32.totalorder %s18, 1
    %p112 = por %p110, %p111
    %p114 = scmp.ne.s32.totalorder %s99, %s113
    %p115 = scmp.eq.s32.totalorder %s18, 0
    %p116 = por %p114, %p115
    %s118 = sadd.s32 %s117, 1
    %p121 = scmp.eq.s32.totalorder %s12, 1
    %p122 = scmp.ne.s32.totalorder %s117, %s119
    %p123 = scmp.eq.s32.totalorder %s12, 0
    %p124 = por %p122, %p123
    %p125 = scmp.ne.s32.totalorder %s117, %s119
    %p126 = scmp.eq.s32.totalorder %s17, 1
    %p127 = por %p125, %p126
    %p128 = scmp.ne.s32.totalorder %s119, %s120
    %p129 = scmp.eq.s32.totalorder %s17, 0
    %p130 = por %p128, %p129
    %p131 = scmp.ne.s32.totalorder %s119, %s120
    %p132 = scmp.eq.s32.totalorder %s18, 1
    %p133 = por %p131, %p132
    %p135 = scmp.ne.s32.totalorder %s120, %s134
    %p136 = scmp.eq.s32.totalorder %s18, 0
    %p137 = por %p135, %p136
    %s139 = sadd.s32 %s138, 1
    %p142 = scmp.eq.s32.totalorder %s12, 1
    %p143 = scmp.ne.s32.totalorder %s138, %s140
    %p144 = scmp.eq.s32.totalorder %s12, 0
    %p145 = por %p143, %p144
    %p146 = scmp.ne.s32.totalorder %s138, %s140
    %p147 = scmp.eq.s32.totalorder %s17, 1
    %p148 = por %p146, %p147
    %p149 = scmp.ne.s32.totalorder %s140, %s141
    %p150 = scmp.eq.s32.totalorder %s17, 0
    %p151 = por %p149, %p150
    %p152 = scmp.ne.s32.totalorder %s140, %s141
    %p153 = scmp.eq.s32.totalorder %s18, 1
    %p154 = por %p152, %p153
    %p156 = scmp.ne.s32.totalorder %s141, %s155
    %p157 = scmp.eq.s32.totalorder %s18, 0
    %p158 = por %p156, %p157
    %s160 = sadd.s32 %s159, 1
    %p163 = scmp.eq.s32.totalorder %s12, 1
    %p164 = scmp.ne.s32.totalorder %s159, %s161
    %p165 = scmp.eq.s32.totalorder %s12, 0
    %p166 = por %p164, %p165
    %p167 = scmp.ne.s32.totalorder %s159, %s161
    %p168 = scmp.eq.s32.totalorder %s17, 1
    %p169 = por %p167, %p168
    %p170 = scmp.ne.s32.totalorder %s161, %s162
    %p171 = scmp.eq.s32.totalorder %s17, 0
    %p172 = por %p170, %p171
    %p173 = scmp.ne.s32.totalorder %s161, %s162
    %p174 = scmp.eq.s32.totalorder %s18, 1
    %p175 = por %p173, %p174
    %p177 = scmp.ne.s32.totalorder %s162, %s176
    %p178 = scmp.eq.s32.totalorder %s18, 0
    %p179 = por %p177, %p178
    %s180 = ssub.s32 %s19, %s31
    %p181 = scmp.eq.s32.totalorder %s180, 0
    %s183 = sadd.s32 %s182, 1
    %s184 = scalar_select %p181, %s182, %s183
    %p187 = pneg %p181
    %p188 = scmp.eq.s32.totalorder %s12, 1
    %p189 = por %p187, %p188
    %p190 = scmp.ne.s32.totalorder %s182, %s185
    %p191 = scmp.eq.s32.totalorder %s12, 0
    %p192 = por %p190, %p191
    %p193 = scmp.ne.s32.totalorder %s182, %s185
    %p194 = scmp.eq.s32.totalorder %s17, 1
    %p195 = por %p193, %p194
    %p196 = scmp.ne.s32.totalorder %s185, %s186
    %p197 = scmp.eq.s32.totalorder %s17, 0
    %p198 = por %p196, %p197
    %p199 = scmp.ne.s32.totalorder %s185, %s186
    %p200 = scmp.eq.s32.totalorder %s18, 1
    %p201 = por %p199, %p200
    %p203 = scmp.ne.s32.totalorder %s186, %s202
    %p204 = scmp.eq.s32.totalorder %s18, 0
    %p205 = por %p203, %p204
    %p206 = scmp.le.s32.totalorder 1, %s12
    %p207 = scmp.lt.s32.totalorder %s12, 3
    %p208 = pnand %p206, %p207
    %p209 = pneg %p208
    // Predicated region
    $region9: #{tpu_custom_call.1} parent=5 // pred_check
      _
    $region10: #{tpu_custom_call.1} parent=5 // pred_check_branch
      %211 = sbr.rel (%p208) target = $region12
    $region11: #{tpu_custom_call.1} parent=5 // pred_region
      %s212 = ssub.s32 %s12, 1
      // Predicated region
      $region13: #{tpu_custom_call.1} parent=11 // pred_check
        %p213 = pneg %p109
      $region14: #{tpu_custom_call.1} parent=11 // pred_check_branch
        %215 = sbr.rel (%p213) target = $region16
      $region15: #{tpu_custom_call.1} parent=11 // pred_region
        _
      $region16: #{tpu_custom_call.1} parent=11 // pred_fallthru
        _
      // Predicated region
      $region17: #{tpu_custom_call.1} parent=11 // pred_check
        %p216 = pneg %p130
      $region18: #{tpu_custom_call.1} parent=11 // pred_check_branch
        %218 = sbr.rel (%p216) target = $region20
      $region19: #{tpu_custom_call.1} parent=11 // pred_region
        _
      $region20: #{tpu_custom_call.1} parent=11 // pred_fallthru
        _
      // Predicated region
      $region21: #{tpu_custom_call.1} parent=11 // pred_check
        %p219 = pneg %p151
      $region22: #{tpu_custom_call.1} parent=11 // pred_check_branch
        %221 = sbr.rel (%p219) target = $region24
      $region23: #{tpu_custom_call.1} parent=11 // pred_region
        _
      $region24: #{tpu_custom_call.1} parent=11 // pred_fallthru
        _
      // Predicated region
      $region25: #{tpu_custom_call.1} parent=11 // pred_check
        %p222 = pneg %p172
      $region26: #{tpu_custom_call.1} parent=11 // pred_check_branch
        %224 = sbr.rel (%p222) target = $region28
      $region27: #{tpu_custom_call.1} parent=11 // pred_region
        _
      $region28: #{tpu_custom_call.1} parent=11 // pred_fallthru
        _
    $region12: #{tpu_custom_call.1} parent=5 // pred_fallthru
      _
    %p225 = scmp.lt.s32.totalorder %s12, 2
    // Predicated region
    $region29: #{tpu_custom_call.1} parent=5 // pred_check
      %p226 = pneg %p225
    $region30: #{tpu_custom_call.1} parent=5 // pred_check_branch
      %228 = sbr.rel (%p226) target = $region32
    $region31: #{tpu_custom_call.1} parent=5 // pred_region
      // Predicated region
      $region33: #{tpu_custom_call.1} parent=31 // pred_check
        %p229 = pneg %p50
      $region34: #{tpu_custom_call.1} parent=31 // pred_check_branch
        %231 = sbr.rel (%p229) target = $region36
      $region35: #{tpu_custom_call.1} parent=31 // pred_region
        %s232 = sadd.s32 %s19, %s20
        %p233 = scmp.lt.s32.totalorder %s232, 1
        %s234 = scalar_select %p233, %s232, 1
        %s235 = smul.u32 4, %s234
        %p236 = scmp.lt.s32.totalorder %s235, 7
        %s237 = scalar_select %p236, %s235, 7
        %s238 = scalar_lea.vmem %s0, %s237
        %s239 = sadd.s32 %s19, %s20
        %p240 = scmp.lt.s32.totalorder %s239, 1
        %s241 = scalar_select %p240, %s239, 1
        %s242 = smul.u32 4, %s241
      $region36: #{tpu_custom_call.1} parent=31 // pred_fallthru
        _
      // Predicated region
      $region37: #{tpu_custom_call.1} parent=31 // pred_check
        %p243 = pneg %p82
      $region38: #{tpu_custom_call.1} parent=31 // pred_check_branch
        %245 = sbr.rel (%p243) target = $region40
      $region39: #{tpu_custom_call.1} parent=31 // pred_region
        %s246 = sadd.s32 %s19, %s20
        %p247 = scmp.lt.s32.totalorder %s246, 1
        %s248 = scalar_select %p247, %s246, 1
        %s249 = smul.u32 64, %s248
        %s250 = ssub.s32 125, %s249
        %p251 = scmp.lt.s32.totalorder %s250, 64
        %s252 = scalar_select %p251, %s250, 64
        %s253 = smul.u32 64, %s252
        %p254 = scmp.lt.s32.totalorder %s249, 124
        %s255 = scalar_select %p254, %s249, 124
        %s256 = smul.addr %s255, 4
        %s257 = scalar_lea.vmem %s1, %s256
        %s258 = sadd.s32 %s19, %s20
        %p259 = scmp.lt.s32.totalorder %s258, 1
        %s260 = scalar_select %p259, %s258, 1
        %s261 = smul.u32 64, %s260
        %s262 = ssub.s32 125, %s261
        %p263 = scmp.lt.s32.totalorder %s262, 64
        %s264 = scalar_select %p263, %s262, 64
        %s265 = smul.u32 64, %s264
      $region40: #{tpu_custom_call.1} parent=31 // pred_fallthru
        _
    $region32: #{tpu_custom_call.1} parent=5 // pred_fallthru
      _
    %p266 = scmp.le.s32.totalorder 1, %s12
    %p267 = scmp.lt.s32.totalorder %s12, 3
    %p268 = pnand %p266, %p267
    %p269 = pneg %p268
    // Predicated region
    $region41: #{tpu_custom_call.1} parent=5 // pred_check
      _
    $region42: #{tpu_custom_call.1} parent=5 // pred_check_branch
      %271 = sbr.rel (%p268) target = $region44
    $region43: #{tpu_custom_call.1} parent=5 // pred_region
      %s272 = ssub.s32 %s12, 1
      %s273 = sadd.s32 %s21, %s22
      %p274 = scmp.lt.s32.totalorder %s273, 1
      %s275 = scalar_select %p274, %s273, 1
      %s276 = smul.u32 4, %s275
      %p277 = scmp.lt.s32.totalorder %s276, 7
      %s278 = scalar_select %p277, %s276, 7
      %s279 = scalar_lea.vmem %s0, %s278
      %p280 = pneg %p56
      %p281 = pneg %p53
      %s282 = sadd.s32 %s21, %s22
      %p283 = scmp.lt.s32.totalorder %s282, 1
      %s284 = scalar_select %p283, %s282, 1
      %s285 = smul.u32 64, %s284
      %s286 = ssub.s32 125, %s285
      %p287 = scmp.lt.s32.totalorder %s286, 64
      %s288 = scalar_select %p287, %s286, 64
      %s289 = smul.u32 64, %s288
      %p290 = scmp.lt.s32.totalorder %s285, 124
      %s291 = scalar_select %p290, %s285, 124
      %s292 = smul.addr %s291, 4
      %s293 = scalar_lea.vmem %s1, %s292
      %p294 = pneg %p88
      %p295 = pneg %p85
      %p296 = pneg %p109
      %p297 = pneg %p106
      %p298 = pneg %p130
      %p299 = pneg %p127
      %p300 = pneg %p151
      %p301 = pneg %p148
      %p302 = pneg %p172
      %p303 = pneg %p169
      %p304 = pneg %p198
      %p305 = pneg %p195
      %p306 = scmp.lt.s32.totalorder %s21, 1
      %s307 = scalar_select %p306, %s21, 1
      %s308 = smul.addr %s307, 4
      %s309 = scalar_lea.vmem %s6, %s308
      %s310 = sadd.s32 %s21, %s22
      %p311 = scmp.lt.s32.totalorder %s310, 1
      %s312 = scalar_select %p311, %s310, 1
      %s313 = smul.u32 4, %s312
      %p314 = scmp.lt.s32.totalorder %s313, 7
      %s315 = scalar_select %p314, %s313, 7
      %s316 = scalar_lea.vmem %s0, %s315
      %s317 = sadd.s32 %s21, %s22
      %p318 = scmp.lt.s32.totalorder %s317, 1
      %s319 = scalar_select %p318, %s317, 1
      %s320 = smul.u32 4, %s319
      %s321 = sadd.s32 %s21, %s22
      %p322 = scmp.lt.s32.totalorder %s321, 1
      %s323 = scalar_select %p322, %s321, 1
      %s324 = smul.u32 64, %s323
      %s325 = ssub.s32 125, %s324
      %p326 = scmp.lt.s32.totalorder %s325, 64
      %s327 = scalar_select %p326, %s325, 64
      %s328 = smul.u32 64, %s327
      %p329 = scmp.lt.s32.totalorder %s324, 124
      %s330 = scalar_select %p329, %s324, 124
      %s331 = smul.addr %s330, 4
      %s332 = scalar_lea.vmem %s1, %s331
      %s333 = sadd.s32 %s21, %s22
      %p334 = scmp.lt.s32.totalorder %s333, 1
      %s335 = scalar_select %p334, %s333, 1
      %s336 = smul.u32 64, %s335
      %s337 = ssub.s32 125, %s336
      %p338 = scmp.lt.s32.totalorder %s337, 64
      %s339 = scalar_select %p338, %s337, 64
      %s340 = smul.u32 64, %s339
      %p341 = scmp.lt.s32.totalorder %s21, 1
      %s342 = scalar_select %p341, %s21, 1
      %s343 = smul.addr %s342, 4
      %s344 = scalar_lea.vmem %s6, %s343
      %s345 = sadd.s32 %s21, %s22
      %p346 = scmp.eq.s32.totalorder %s22, 0
      // Predicated region
      $region45: #{tpu_custom_call.1} parent=43 // pred_check
        %p347 = pneg %p346
      $region46: #{tpu_custom_call.1} parent=43 // pred_check_branch
        %349 = sbr.rel (%p347) target = $region48
      $region47: #{tpu_custom_call.1} parent=43 // pred_region
        %vm350 = vcmask 124928
        %351 = vst.msk [vmem:[%s344] sm:$0x7] %vm350, 0.0
        %vm352 = vcmask 2048
        %353 = vst.msk [vmem:[#allocation2] sm:$0x7] %vm352, 0.0
      $region48: #{tpu_custom_call.1} parent=43 // pred_fallthru
        _
      %v354 = vld [vmem:[%s332] sm:$0xf]
      %v355 = vld [vmem:[%s332 + $0x4] sm:$0xf]
      %v356 = vld [vmem:[%s332 + $0x8] sm:$0xf]
      %v357 = vld [vmem:[%s332 + $0xc] sm:$0xf]
      %v358 = vld [vmem:[%s332 + $0x10] sm:$0xf]
      %v359 = vld [vmem:[%s332 + $0x14] sm:$0xf]
      %v360 = vld [vmem:[%s332 + $0x18] sm:$0xf]
      %v361 = vld [vmem:[%s332 + $0x1c] sm:$0xf]
      %v362 = vld [vmem:[%s332 + $0x20] sm:$0xf]
      %v363 = vld [vmem:[%s332 + $0x24] sm:$0xf]
      %v364 = vld [vmem:[%s332 + $0x28] sm:$0xf]
      %v365 = vld [vmem:[%s332 + $0x2c] sm:$0xf]
      %v366 = vld [vmem:[%s332 + $0x30] sm:$0xf]
      %v367 = vld [vmem:[%s332 + $0x34] sm:$0xf]
      %v368 = vld [vmem:[%s332 + $0x38] sm:$0xf]
      %v369 = vld [vmem:[%s332 + $0x3c] sm:$0xf]
      %v370 = vld [vmem:[%s332 + $0x40] sm:$0xf]
      %v371 = vld [vmem:[%s332 + $0x44] sm:$0xf]
      %v372 = vld [vmem:[%s332 + $0x48] sm:$0xf]
      %v373 = vld [vmem:[%s332 + $0x4c] sm:$0xf]
      %v374 = vld [vmem:[%s332 + $0x50] sm:$0xf]
      %v375 = vld [vmem:[%s332 + $0x54] sm:$0xf]
      %v376 = vld [vmem:[%s332 + $0x58] sm:$0xf]
      %v377 = vld [vmem:[%s332 + $0x5c] sm:$0xf]
      %v378 = vld [vmem:[%s332 + $0x60] sm:$0xf]
      %v379 = vld [vmem:[%s332 + $0x64] sm:$0xf]
      %v380 = vld [vmem:[%s332 + $0x68] sm:$0xf]
      %v381 = vld [vmem:[%s332 + $0x6c] sm:$0xf]
      %v382 = vld [vmem:[%s332 + $0x70] sm:$0xf]
      %v383 = vld [vmem:[%s332 + $0x74] sm:$0xf]
      %v384 = vld [vmem:[%s332 + $0x78] sm:$0xf]
      %v385 = vld [vmem:[%s332 + $0x7c] sm:$0xf]
      %v386 = vld [vmem:[%s332 + $0x80] sm:$0xf]
      %v387 = vld [vmem:[%s332 + $0x84] sm:$0xf]
      %v388 = vld [vmem:[%s332 + $0x88] sm:$0xf]
      %v389 = vld [vmem:[%s332 + $0x8c] sm:$0xf]
      %v390 = vld [vmem:[%s332 + $0x90] sm:$0xf]
      %v391 = vld [vmem:[%s332 + $0x94] sm:$0xf]
      %v392 = vld [vmem:[%s332 + $0x98] sm:$0xf]
      %v393 = vld [vmem:[%s332 + $0x9c] sm:$0xf]
      %v394 = vld [vmem:[%s332 + $0xa0] sm:$0xf]
      %v395 = vld [vmem:[%s332 + $0xa4] sm:$0xf]
      %v396 = vld [vmem:[%s332 + $0xa8] sm:$0xf]
      %v397 = vld [vmem:[%s332 + $0xac] sm:$0xf]
      %v398 = vld [vmem:[%s332 + $0xb0] sm:$0xf]
      %v399 = vld [vmem:[%s332 + $0xb4] sm:$0xf]
      %v400 = vld [vmem:[%s332 + $0xb8] sm:$0xf]
      %v401 = vld [vmem:[%s332 + $0xbc] sm:$0xf]
      %v402 = vld [vmem:[%s332 + $0xc0] sm:$0xf]
      %v403 = vld [vmem:[%s332 + $0xc4] sm:$0xf]
      %v404 = vld [vmem:[%s332 + $0xc8] sm:$0xf]
      %v405 = vld [vmem:[%s332 + $0xcc] sm:$0xf]
      %v406 = vld [vmem:[%s332 + $0xd0] sm:$0xf]
      %v407 = vld [vmem:[%s332 + $0xd4] sm:$0xf]
      %v408 = vld [vmem:[%s332 + $0xd8] sm:$0xf]
      %v409 = vld [vmem:[%s332 + $0xdc] sm:$0xf]
      %v410 = vld [vmem:[%s332 + $0xe0] sm:$0xf]
      %v411 = vld [vmem:[%s332 + $0xe4] sm:$0xf]
      %v412 = vld [vmem:[%s332 + $0xe8] sm:$0xf]
      %v413 = vld [vmem:[%s332 + $0xec] sm:$0xf]
      %v414 = vld [vmem:[%s332 + $0xf0] sm:$0xf]
      %v415 = vld [vmem:[%s332 + $0xf4] sm:$0xf]
      %v416 = vld [vmem:[%s332 + $0xf8] sm:$0xf]
      %v417 = vld [vmem:[%s332 + $0xfc] sm:$0xf]
      %v418 = vunpack.c.l.bf16 %v354
      %v419 = vunpack.c.l.bf16 %v355
      %v420 = vunpack.c.l.bf16 %v356
      %v421 = vunpack.c.l.bf16 %v357
      %v422 = vunpack.c.l.bf16 %v358
      %v423 = vunpack.c.l.bf16 %v359
      %v424 = vunpack.c.l.bf16 %v360
      %v425 = vunpack.c.l.bf16 %v361
      %v426 = vunpack.c.l.bf16 %v362
      %v427 = vunpack.c.l.bf16 %v363
      %v428 = vunpack.c.l.bf16 %v364
      %v429 = vunpack.c.l.bf16 %v365
      %v430 = vunpack.c.l.bf16 %v366
      %v431 = vunpack.c.l.bf16 %v367
      %v432 = vunpack.c.l.bf16 %v368
      %v433 = vunpack.c.l.bf16 %v369
      %v434 = vunpack.c.l.bf16 %v370
      %v435 = vunpack.c.l.bf16 %v371
      %v436 = vunpack.c.l.bf16 %v372
      %v437 = vunpack.c.l.bf16 %v373
      %v438 = vunpack.c.l.bf16 %v374
      %v439 = vunpack.c.l.bf16 %v375
      %v440 = vunpack.c.l.bf16 %v376
      %v441 = vunpack.c.l.bf16 %v377
      %v442 = vunpack.c.l.bf16 %v378
      %v443 = vunpack.c.l.bf16 %v379
      %v444 = vunpack.c.l.bf16 %v380
      %v445 = vunpack.c.l.bf16 %v381
      %v446 = vunpack.c.l.bf16 %v382
      %v447 = vunpack.c.l.bf16 %v383
      %v448 = vunpack.c.l.bf16 %v384
      %v449 = vunpack.c.l.bf16 %v385
      %v450 = vunpack.c.l.bf16 %v386
      %v451 = vunpack.c.l.bf16 %v387
      %v452 = vunpack.c.l.bf16 %v388
      %v453 = vunpack.c.l.bf16 %v389
      %v454 = vunpack.c.l.bf16 %v390
      %v455 = vunpack.c.l.bf16 %v391
      %v456 = vunpack.c.l.bf16 %v392
      %v457 = vunpack.c.l.bf16 %v393
      %v458 = vunpack.c.l.bf16 %v394
      %v459 = vunpack.c.l.bf16 %v395
      %v460 = vunpack.c.l.bf16 %v396
      %v461 = vunpack.c.l.bf16 %v397
      %v462 = vunpack.c.l.bf16 %v398
      %v463 = vunpack.c.l.bf16 %v399
      %v464 = vunpack.c.l.bf16 %v400
      %v465 = vunpack.c.l.bf16 %v401
      %v466 = vunpack.c.l.bf16 %v402
      %v467 = vunpack.c.l.bf16 %v403
      %v468 = vunpack.c.l.bf16 %v404
      %v469 = vunpack.c.l.bf16 %v405
      %v470 = vunpack.c.l.bf16 %v406
      %v471 = vunpack.c.l.bf16 %v407
      %v472 = vunpack.c.l.bf16 %v408
      %v473 = vunpack.c.l.bf16 %v409
      %v474 = vunpack.c.l.bf16 %v410
      %v475 = vunpack.c.l.bf16 %v411
      %v476 = vunpack.c.l.bf16 %v412
      %v477 = vunpack.c.l.bf16 %v413
      %v478 = vunpack.c.l.bf16 %v414
      %v479 = vunpack.c.l.bf16 %v415
      %v480 = vunpack.c.l.bf16 %v416
      %v481 = vunpack.c.l.bf16 %v417
      %v482 = vld [vmem:[%s316] sm:$0xf]
      %s483 = smul.u32 %s345, 512
      %v484 = vlaneseq
      %v485 = vand.u32 %v484, 127
      %v486 = vadd.s32 %v485, 128
      %v487 = vadd.s32 %v485, 256
      %v488 = vadd.s32 %v485, 384
      %v489 = vstv %s483
      %v490 = vadd.s32 %v489, %v485
      %v491 = vadd.s32 %v489, %v486
      %v492 = vadd.s32 %v489, %v487
      %v493 = vadd.s32 %v489, %v488
      %vm494 = vcmp.lt.s32.totalorder %v490, 1000
      %vm495 = vcmp.lt.s32.totalorder %v491, 1000
      %vm496 = vcmp.lt.s32.totalorder %v492, 1000
      %vm497 = vcmp.lt.s32.totalorder %v493, 1000
      %v498 = vlaneseq
      %v499 = vshrl.u32 %v498, 7
      %v500 = vsub.s32 0, %v499
      %v501 = vrot.slane %v482, %v500
      %v502 = vlaneseq
      %v503 = vshrl.u32 %v502, 7
      %v504 = vsub.s32 1, %v503
      %v505 = vrot.slane %v482, %v504
      %v506 = vlaneseq
      %v507 = vshrl.u32 %v506, 7
      %v508 = vsub.s32 2, %v507
      %v509 = vrot.slane %v482, %v508
      %v510 = vlaneseq
      %v511 = vshrl.u32 %v510, 7
      %v512 = vsub.s32 3, %v511
      %v513 = vrot.slane %v482, %v512
      %v514 = vsel %vm494, %v501, 3
      %v515 = vsel %vm495, %v505, 3
      %v516 = vsel %vm496, %v509, 3
      %v517 = vsel %vm497, %v513, 3
      %v518 = vlaneseq
      %v519 = vshrl.u32 %v518, 7
      %v520 = vadd.s32 %v519, 8
      %v521 = vadd.s32 %v519, 16
      %v522 = vadd.s32 %v519, 24
      %v523 = vadd.s32 %v519, 32
      %v524 = vadd.s32 %v519, 40
      %v525 = vadd.s32 %v519, 48
      %v526 = vadd.s32 %v519, 56
      %v527 = vadd.s32 %v519, 64
      %v528 = vadd.s32 %v519, 72
      %v529 = vadd.s32 %v519, 80
      %v530 = vadd.s32 %v519, 88
      %v531 = vadd.s32 %v519, 96
      %v532 = vadd.s32 %v519, 104
      %v533 = vadd.s32 %v519, 112
      %v534 = vadd.s32 %v519, 120
      %v535 = vadd.s32 %v519, 128
      %v536 = vadd.s32 %v519, 136
      %v537 = vadd.s32 %v519, 144
      %v538 = vadd.s32 %v519, 152
      %v539 = vadd.s32 %v519, 160
      %v540 = vadd.s32 %v519, 168
      %v541 = vadd.s32 %v519, 176
      %v542 = vadd.s32 %v519, 184
      %v543 = vadd.s32 %v519, 192
      %v544 = vadd.s32 %v519, 200
      %v545 = vadd.s32 %v519, 208
      %v546 = vadd.s32 %v519, 216
      %v547 = vadd.s32 %v519, 224
      %v548 = vadd.s32 %v519, 232
      %v549 = vadd.s32 %v519, 240
      %v550 = vadd.s32 %v519, 248
      %v551 = vadd.s32 %v519, 256
      %v552 = vadd.s32 %v519, 264
      %v553 = vadd.s32 %v519, 272
      %v554 = vadd.s32 %v519, 280
      %v555 = vadd.s32 %v519, 288
      %v556 = vadd.s32 %v519, 296
      %v557 = vadd.s32 %v519, 304
      %v558 = vadd.s32 %v519, 312
      %v559 = vadd.s32 %v519, 320
      %v560 = vadd.s32 %v519, 328
      %v561 = vadd.s32 %v519, 336
      %v562 = vadd.s32 %v519, 344
      %v563 = vadd.s32 %v519, 352
      %v564 = vadd.s32 %v519, 360
      %v565 = vadd.s32 %v519, 368
      %v566 = vadd.s32 %v519, 376
      %v567 = vadd.s32 %v519, 384
      %v568 = vadd.s32 %v519, 392
      %v569 = vadd.s32 %v519, 400
      %v570 = vadd.s32 %v519, 408
      %v571 = vadd.s32 %v519, 416
      %v572 = vadd.s32 %v519, 424
      %v573 = vadd.s32 %v519, 432
      %v574 = vadd.s32 %v519, 440
      %v575 = vadd.s32 %v519, 448
      %v576 = vadd.s32 %v519, 456
      %v577 = vadd.s32 %v519, 464
      %v578 = vadd.s32 %v519, 472
      %v579 = vadd.s32 %v519, 480
      %v580 = vadd.s32 %v519, 488
      %v581 = vadd.s32 %v519, 496
      %v582 = vadd.s32 %v519, 504
      %v583 = vadd.s32 %v489, %v519
      %v584 = vadd.s32 %v489, %v520
      %v585 = vadd.s32 %v489, %v521
      %v586 = vadd.s32 %v489, %v522
      %v587 = vadd.s32 %v489, %v523
      %v588 = vadd.s32 %v489, %v524
      %v589 = vadd.s32 %v489, %v525
      %v590 = vadd.s32 %v489, %v526
      %v591 = vadd.s32 %v489, %v527
      %v592 = vadd.s32 %v489, %v528
      %v593 = vadd.s32 %v489, %v529
      %v594 = vadd.s32 %v489, %v530
      %v595 = vadd.s32 %v489, %v531
      %v596 = vadd.s32 %v489, %v532
      %v597 = vadd.s32 %v489, %v533
      %v598 = vadd.s32 %v489, %v534
      %v599 = vadd.s32 %v489, %v535
      %v600 = vadd.s32 %v489, %v536
      %v601 = vadd.s32 %v489, %v537
      %v602 = vadd.s32 %v489, %v538
      %v603 = vadd.s32 %v489, %v539
      %v604 = vadd.s32 %v489, %v540
      %v605 = vadd.s32 %v489, %v541
      %v606 = vadd.s32 %v489, %v542
      %v607 = vadd.s32 %v489, %v543
      %v608 = vadd.s32 %v489, %v544
      %v609 = vadd.s32 %v489, %v545
      %v610 = vadd.s32 %v489, %v546
      %v611 = vadd.s32 %v489, %v547
      %v612 = vadd.s32 %v489, %v548
      %v613 = vadd.s32 %v489, %v549
      %v614 = vadd.s32 %v489, %v550
      %v615 = vadd.s32 %v489, %v551
      %v616 = vadd.s32 %v489, %v552
      %v617 = vadd.s32 %v489, %v553
      %v618 = vadd.s32 %v489, %v554
      %v619 = vadd.s32 %v489, %v555
      %v620 = vadd.s32 %v489, %v556
      %v621 = vadd.s32 %v489, %v557
      %v622 = vadd.s32 %v489, %v558
      %v623 = vadd.s32 %v489, %v559
      %v624 = vadd.s32 %v489, %v560
      %v625 = vadd.s32 %v489, %v561
      %v626 = vadd.s32 %v489, %v562
      %v627 = vadd.s32 %v489, %v563
      %v628 = vadd.s32 %v489, %v564
      %v629 = vadd.s32 %v489, %v565
      %v630 = vadd.s32 %v489, %v566
      %v631 = vadd.s32 %v489, %v567
      %v632 = vadd.s32 %v489, %v568
      %v633 = vadd.s32 %v489, %v569
      %v634 = vadd.s32 %v489, %v570
      %v635 = vadd.s32 %v489, %v571
      %v636 = vadd.s32 %v489, %v572
      %v637 = vadd.s32 %v489, %v573
      %v638 = vadd.s32 %v489, %v574
      %v639 = vadd.s32 %v489, %v575
      %v640 = vadd.s32 %v489, %v576
      %v641 = vadd.s32 %v489, %v577
      %v642 = vadd.s32 %v489, %v578
      %v643 = vadd.s32 %v489, %v579
      %v644 = vadd.s32 %v489, %v580
      %v645 = vadd.s32 %v489, %v581
      %v646 = vadd.s32 %v489, %v582
      %vm647 = vcmp.lt.s32.totalorder %v583, 1000
      %vm648 = vcmp.lt.s32.totalorder %v584, 1000
      %vm649 = vcmp.lt.s32.totalorder %v585, 1000
      %vm650 = vcmp.lt.s32.totalorder %v586, 1000
      %vm651 = vcmp.lt.s32.totalorder %v587, 1000
      %vm652 = vcmp.lt.s32.totalorder %v588, 1000
      %vm653 = vcmp.lt.s32.totalorder %v589, 1000
      %vm654 = vcmp.lt.s32.totalorder %v590, 1000
      %vm655 = vcmp.lt.s32.totalorder %v591, 1000
      %vm656 = vcmp.lt.s32.totalorder %v592, 1000
      %vm657 = vcmp.lt.s32.totalorder %v593, 1000
      %vm658 = vcmp.lt.s32.totalorder %v594, 1000
      %vm659 = vcmp.lt.s32.totalorder %v595, 1000
      %vm660 = vcmp.lt.s32.totalorder %v596, 1000
      %vm661 = vcmp.lt.s32.totalorder %v597, 1000
      %vm662 = vcmp.lt.s32.totalorder %v598, 1000
      %vm663 = vcmp.lt.s32.totalorder %v599, 1000
      %vm664 = vcmp.lt.s32.totalorder %v600, 1000
      %vm665 = vcmp.lt.s32.totalorder %v601, 1000
      %vm666 = vcmp.lt.s32.totalorder %v602, 1000
      %vm667 = vcmp.lt.s32.totalorder %v603, 1000
      %vm668 = vcmp.lt.s32.totalorder %v604, 1000
      %vm669 = vcmp.lt.s32.totalorder %v605, 1000
      %vm670 = vcmp.lt.s32.totalorder %v606, 1000
      %vm671 = vcmp.lt.s32.totalorder %v607, 1000
      %vm672 = vcmp.lt.s32.totalorder %v608, 1000
      %vm673 = vcmp.lt.s32.totalorder %v609, 1000
      %vm674 = vcmp.lt.s32.totalorder %v610, 1000
      %vm675 = vcmp.lt.s32.totalorder %v611, 1000
      %vm676 = vcmp.lt.s32.totalorder %v612, 1000
      %vm677 = vcmp.lt.s32.totalorder %v613, 1000
      %vm678 = vcmp.lt.s32.totalorder %v614, 1000
      %vm679 = vcmp.lt.s32.totalorder %v615, 1000
      %vm680 = vcmp.lt.s32.totalorder %v616, 1000
      %vm681 = vcmp.lt.s32.totalorder %v617, 1000
      %vm682 = vcmp.lt.s32.totalorder %v618, 1000
      %vm683 = vcmp.lt.s32.totalorder %v619, 1000
      %vm684 = vcmp.lt.s32.totalorder %v620, 1000
      %vm685 = vcmp.lt.s32.totalorder %v621, 1000
      %vm686 = vcmp.lt.s32.totalorder %v622, 1000
      %vm687 = vcmp.lt.s32.totalorder %v623, 1000
      %vm688 = vcmp.lt.s32.totalorder %v624, 1000
      %vm689 = vcmp.lt.s32.totalorder %v625, 1000
      %vm690 = vcmp.lt.s32.totalorder %v626, 1000
      %vm691 = vcmp.lt.s32.totalorder %v627, 1000
      %vm692 = vcmp.lt.s32.totalorder %v628, 1000
      %vm693 = vcmp.lt.s32.totalorder %v629, 1000
      %vm694 = vcmp.lt.s32.totalorder %v630, 1000
      %vm695 = vcmp.lt.s32.totalorder %v631, 1000
      %vm696 = vcmp.lt.s32.totalorder %v632, 1000
      %vm697 = vcmp.lt.s32.totalorder %v633, 1000
      %vm698 = vcmp.lt.s32.totalorder %v634, 1000
      %vm699 = vcmp.lt.s32.totalorder %v635, 1000
      %vm700 = vcmp.lt.s32.totalorder %v636, 1000
      %vm701 = vcmp.lt.s32.totalorder %v637, 1000
      %vm702 = vcmp.lt.s32.totalorder %v638, 1000
      %vm703 = vcmp.lt.s32.totalorder %v639, 1000
      %vm704 = vcmp.lt.s32.totalorder %v640, 1000
      %vm705 = vcmp.lt.s32.totalorder %v641, 1000
      %vm706 = vcmp.lt.s32.totalorder %v642, 1000
      %vm707 = vcmp.lt.s32.totalorder %v643, 1000
      %vm708 = vcmp.lt.s32.totalorder %v644, 1000
      %vm709 = vcmp.lt.s32.totalorder %v645, 1000
      %vm710 = vcmp.lt.s32.totalorder %v646, 1000
      %v711 = vsel %vm647, 1, 0
      %v712 = vsel %vm648, 1, 0
      %v713 = vsel %vm649, 1, 0
      %v714 = vsel %vm650, 1, 0
      %v715 = vsel %vm651, 1, 0
      %v716 = vsel %vm652, 1, 0
      %v717 = vsel %vm653, 1, 0
      %v718 = vsel %vm654, 1, 0
      %v719 = vsel %vm655, 1, 0
      %v720 = vsel %vm656, 1, 0
      %v721 = vsel %vm657, 1, 0
      %v722 = vsel %vm658, 1, 0
      %v723 = vsel %vm659, 1, 0
      %v724 = vsel %vm660, 1, 0
      %v725 = vsel %vm661, 1, 0
      %v726 = vsel %vm662, 1, 0
      %v727 = vsel %vm663, 1, 0
      %v728 = vsel %vm664, 1, 0
      %v729 = vsel %vm665, 1, 0
      %v730 = vsel %vm666, 1, 0
      %v731 = vsel %vm667, 1, 0
      %v732 = vsel %vm668, 1, 0
      %v733 = vsel %vm669, 1, 0
      %v734 = vsel %vm670, 1, 0
      %v735 = vsel %vm671, 1, 0
      %v736 = vsel %vm672, 1, 0
      %v737 = vsel %vm673, 1, 0
      %v738 = vsel %vm674, 1, 0
      %v739 = vsel %vm675, 1, 0
      %v740 = vsel %vm676, 1, 0
      %v741 = vsel %vm677, 1, 0
      %v742 = vsel %vm678, 1, 0
      %v743 = vsel %vm679, 1, 0
      %v744 = vsel %vm680, 1, 0
      %v745 = vsel %vm681, 1, 0
      %v746 = vsel %vm682, 1, 0
      %v747 = vsel %vm683, 1, 0
      %v748 = vsel %vm684, 1, 0
      %v749 = vsel %vm685, 1, 0
      %v750 = vsel %vm686, 1, 0
      %v751 = vsel %vm687, 1, 0
      %v752 = vsel %vm688, 1, 0
      %v753 = vsel %vm689, 1, 0
      %v754 = vsel %vm690, 1, 0
      %v755 = vsel %vm691, 1, 0
      %v756 = vsel %vm692, 1, 0
      %v757 = vsel %vm693, 1, 0
      %v758 = vsel %vm694, 1, 0
      %v759 = vsel %vm695, 1, 0
      %v760 = vsel %vm696, 1, 0
      %v761 = vsel %vm697, 1, 0
      %v762 = vsel %vm698, 1, 0
      %v763 = vsel %vm699, 1, 0
      %v764 = vsel %vm700, 1, 0
      %v765 = vsel %vm701, 1, 0
      %v766 = vsel %vm702, 1, 0
      %v767 = vsel %vm703, 1, 0
      %v768 = vsel %vm704, 1, 0
      %v769 = vsel %vm705, 1, 0
      %v770 = vsel %vm706, 1, 0
      %v771 = vsel %vm707, 1, 0
      %v772 = vsel %vm708, 1, 0
      %v773 = vsel %vm709, 1, 0
      %v774 = vsel %vm710, 1, 0
      %vm775 = vcmp.eq.s32.totalorder %v711, 1
      %vm776 = vcmp.eq.s32.totalorder %v712, 1
      %vm777 = vcmp.eq.s32.totalorder %v713, 1
      %vm778 = vcmp.eq.s32.totalorder %v714, 1
      %vm779 = vcmp.eq.s32.totalorder %v715, 1
      %vm780 = vcmp.eq.s32.totalorder %v716, 1
      %vm781 = vcmp.eq.s32.totalorder %v717, 1
      %vm782 = vcmp.eq.s32.totalorder %v718, 1
      %vm783 = vcmp.eq.s32.totalorder %v719, 1
      %vm784 = vcmp.eq.s32.totalorder %v720, 1
      %vm785 = vcmp.eq.s32.totalorder %v721, 1
      %vm786 = vcmp.eq.s32.totalorder %v722, 1
      %vm787 = vcmp.eq.s32.totalorder %v723, 1
      %vm788 = vcmp.eq.s32.totalorder %v724, 1
      %vm789 = vcmp.eq.s32.totalorder %v725, 1
      %vm790 = vcmp.eq.s32.totalorder %v726, 1
      %vm791 = vcmp.eq.s32.totalorder %v727, 1
      %vm792 = vcmp.eq.s32.totalorder %v728, 1
      %vm793 = vcmp.eq.s32.totalorder %v729, 1
      %vm794 = vcmp.eq.s32.totalorder %v730, 1
      %vm795 = vcmp.eq.s32.totalorder %v731, 1
      %vm796 = vcmp.eq.s32.totalorder %v732, 1
      %vm797 = vcmp.eq.s32.totalorder %v733, 1
      %vm798 = vcmp.eq.s32.totalorder %v734, 1
      %vm799 = vcmp.eq.s32.totalorder %v735, 1
      %vm800 = vcmp.eq.s32.totalorder %v736, 1
      %vm801 = vcmp.eq.s32.totalorder %v737, 1
      %vm802 = vcmp.eq.s32.totalorder %v738, 1
      %vm803 = vcmp.eq.s32.totalorder %v739, 1
      %vm804 = vcmp.eq.s32.totalorder %v740, 1
      %vm805 = vcmp.eq.s32.totalorder %v741, 1
      %vm806 = vcmp.eq.s32.totalorder %v742, 1
      %vm807 = vcmp.eq.s32.totalorder %v743, 1
      %vm808 = vcmp.eq.s32.totalorder %v744, 1
      %vm809 = vcmp.eq.s32.totalorder %v745, 1
      %vm810 = vcmp.eq.s32.totalorder %v746, 1
      %vm811 = vcmp.eq.s32.totalorder %v747, 1
      %vm812 = vcmp.eq.s32.totalorder %v748, 1
      %vm813 = vcmp.eq.s32.totalorder %v749, 1
      %vm814 = vcmp.eq.s32.totalorder %v750, 1
      %vm815 = vcmp.eq.s32.totalorder %v751, 1
      %vm816 = vcmp.eq.s32.totalorder %v752, 1
      %vm817 = vcmp.eq.s32.totalorder %v753, 1
      %vm818 = vcmp.eq.s32.totalorder %v754, 1
      %vm819 = vcmp.eq.s32.totalorder %v755, 1
      %vm820 = vcmp.eq.s32.totalorder %v756, 1
      %vm821 = vcmp.eq.s32.totalorder %v757, 1
      %vm822 = vcmp.eq.s32.totalorder %v758, 1
      %vm823 = vcmp.eq.s32.totalorder %v759, 1
      %vm824 = vcmp.eq.s32.totalorder %v760, 1
      %vm825 = vcmp.eq.s32.totalorder %v761, 1
      %vm826 = vcmp.eq.s32.totalorder %v762, 1
      %vm827 = vcmp.eq.s32.totalorder %v763, 1
      %vm828 = vcmp.eq.s32.totalorder %v764, 1
      %vm829 = vcmp.eq.s32.totalorder %v765, 1
      %vm830 = vcmp.eq.s32.totalorder %v766, 1
      %vm831 = vcmp.eq.s32.totalorder %v767, 1
      %vm832 = vcmp.eq.s32.totalorder %v768, 1
      %vm833 = vcmp.eq.s32.totalorder %v769, 1
      %vm834 = vcmp.eq.s32.totalorder %v770, 1
      %vm835 = vcmp.eq.s32.totalorder %v771, 1
      %vm836 = vcmp.eq.s32.totalorder %v772, 1
      %vm837 = vcmp.eq.s32.totalorder %v773, 1
      %vm838 = vcmp.eq.s32.totalorder %v774, 1
      %v839 = vsel %vm775, %v418, 0.0
      %v840 = vsel %vm776, %v419, 0.0
      %v841 = vsel %vm777, %v420, 0.0
      %v842 = vsel %vm778, %v421, 0.0
      %v843 = vsel %vm779, %v422, 0.0
      %v844 = vsel %vm780, %v423, 0.0
      %v845 = vsel %vm781, %v424, 0.0
      %v846 = vsel %vm782, %v425, 0.0
      %v847 = vsel %vm783, %v426, 0.0
      %v848 = vsel %vm784, %v427, 0.0
      %v849 = vsel %vm785, %v428, 0.0
      %v850 = vsel %vm786, %v429, 0.0
      %v851 = vsel %vm787, %v430, 0.0
      %v852 = vsel %vm788, %v431, 0.0
      %v853 = vsel %vm789, %v432, 0.0
      %v854 = vsel %vm790, %v433, 0.0
      %v855 = vsel %vm791, %v434, 0.0
      %v856 = vsel %vm792, %v435, 0.0
      %v857 = vsel %vm793, %v436, 0.0
      %v858 = vsel %vm794, %v437, 0.0
      %v859 = vsel %vm795, %v438, 0.0
      %v860 = vsel %vm796, %v439, 0.0
      %v861 = vsel %vm797, %v440, 0.0
      %v862 = vsel %vm798, %v441, 0.0
      %v863 = vsel %vm799, %v442, 0.0
      %v864 = vsel %vm800, %v443, 0.0
      %v865 = vsel %vm801, %v444, 0.0
      %v866 = vsel %vm802, %v445, 0.0
      %v867 = vsel %vm803, %v446, 0.0
      %v868 = vsel %vm804, %v447, 0.0
      %v869 = vsel %vm805, %v448, 0.0
      %v870 = vsel %vm806, %v449, 0.0
      %v871 = vsel %vm807, %v450, 0.0
      %v872 = vsel %vm808, %v451, 0.0
      %v873 = vsel %vm809, %v452, 0.0
      %v874 = vsel %vm810, %v453, 0.0
      %v875 = vsel %vm811, %v454, 0.0
      %v876 = vsel %vm812, %v455, 0.0
      %v877 = vsel %vm813, %v456, 0.0
      %v878 = vsel %vm814, %v457, 0.0
      %v879 = vsel %vm815, %v458, 0.0
      %v880 = vsel %vm816, %v459, 0.0
      %v881 = vsel %vm817, %v460, 0.0
      %v882 = vsel %vm818, %v461, 0.0
      %v883 = vsel %vm819, %v462, 0.0
      %v884 = vsel %vm820, %v463, 0.0
      %v885 = vsel %vm821, %v464, 0.0
      %v886 = vsel %vm822, %v465, 0.0
      %v887 = vsel %vm823, %v466, 0.0
      %v888 = vsel %vm824, %v467, 0.0
      %v889 = vsel %vm825, %v468, 0.0
      %v890 = vsel %vm826, %v469, 0.0
      %v891 = vsel %vm827, %v470, 0.0
      %v892 = vsel %vm828, %v471, 0.0
      %v893 = vsel %vm829, %v472, 0.0
      %v894 = vsel %vm830, %v473, 0.0
      %v895 = vsel %vm831, %v474, 0.0
      %v896 = vsel %vm832, %v475, 0.0
      %v897 = vsel %vm833, %v476, 0.0
      %v898 = vsel %vm834, %v477, 0.0
      %v899 = vsel %vm835, %v478, 0.0
      %v900 = vsel %vm836, %v479, 0.0
      %v901 = vsel %vm837, %v480, 0.0
      %v902 = vsel %vm838, %v481, 0.0
      %v903 = vld [vmem:[%s2] sm:$0xff]
      %v904 = vld [vmem:[%s2 + $0x8] sm:$0xff]
      %v905 = vld [vmem:[%s2 + $0x10] sm:$0xff]
      %v906 = vld [vmem:[%s2 + $0x18] sm:$0xff]
      %v907 = vld [vmem:[%s3] sm:$0x1]
      %v909 = vlaneseq
      %v910 = vshrl.u32 %v909, 7
      %v911 = vsub.s32 0, %v910
      %v912 = vrot.slane %v907, %v911
      %vm914 = vcmask 261120
      %v916 = vsel %vm914, %v839, 0
      %v919 = vsel %vm914, %v840, 0
      %v922 = vsel %vm914, %v841, 0
      %v925 = vsel %vm914, %v842, 0
      %v928 = vsel %vm914, %v843, 0
      %v931 = vsel %vm914, %v844, 0
      %v934 = vsel %vm914, %v845, 0
      %v937 = vsel %vm914, %v846, 0
      %v940 = vsel %vm914, %v847, 0
      %v943 = vsel %vm914, %v848, 0
      %v946 = vsel %vm914, %v849, 0
      %v949 = vsel %vm914, %v850, 0
      %v952 = vsel %vm914, %v851, 0
      %v955 = vsel %vm914, %v852, 0
      %v958 = vsel %vm914, %v853, 0
      %v961 = vsel %vm914, %v854, 0
      %v964 = vsel %vm914, %v855, 0
      %v967 = vsel %vm914, %v856, 0
      %v970 = vsel %vm914, %v857, 0
      %v973 = vsel %vm914, %v858, 0
      %v976 = vsel %vm914, %v859, 0
      %v979 = vsel %vm914, %v860, 0
      %v982 = vsel %vm914, %v861, 0
      %v985 = vsel %vm914, %v862, 0
      %v988 = vsel %vm914, %v863, 0
      %v991 = vsel %vm914, %v864, 0
      %v994 = vsel %vm914, %v865, 0
      %v997 = vsel %vm914, %v866, 0
      %v1000 = vsel %vm914, %v867, 0
      %v1003 = vsel %vm914, %v868, 0
      %v1006 = vsel %vm914, %v869, 0
      %v1009 = vsel %vm914, %v870, 0
      %v1012 = vsel %vm914, %v871, 0
      %v1015 = vsel %vm914, %v872, 0
      %v1018 = vsel %vm914, %v873, 0
      %v1021 = vsel %vm914, %v874, 0
      %v1024 = vsel %vm914, %v875, 0
      %v1027 = vsel %vm914, %v876, 0
      %v1030 = vsel %vm914, %v877, 0
      %v1033 = vsel %vm914, %v878, 0
      %v1036 = vsel %vm914, %v879, 0
      %v1039 = vsel %vm914, %v880, 0
      %v1042 = vsel %vm914, %v881, 0
      %v1045 = vsel %vm914, %v882, 0
      %v1048 = vsel %vm914, %v883, 0
      %v1051 = vsel %vm914, %v884, 0
      %v1054 = vsel %vm914, %v885, 0
      %v1057 = vsel %vm914, %v886, 0
      %v1060 = vsel %vm914, %v887, 0
      %v1063 = vsel %vm914, %v888, 0
      %v1066 = vsel %vm914, %v889, 0
      %v1069 = vsel %vm914, %v890, 0
      %v1072 = vsel %vm914, %v891, 0
      %v1075 = vsel %vm914, %v892, 0
      %v1078 = vsel %vm914, %v893, 0
      %v1081 = vsel %vm914, %v894, 0
      %v1084 = vsel %vm914, %v895, 0
      %v1087 = vsel %vm914, %v896, 0
      %v1090 = vsel %vm914, %v897, 0
      %v1093 = vsel %vm914, %v898, 0
      %v1096 = vsel %vm914, %v899, 0
      %v1099 = vsel %vm914, %v900, 0
      %v1102 = vsel %vm914, %v901, 0
      %v1105 = vsel %vm914, %v902, 0
      %1107 = vmatprep.subr.mxu0 0.0
      %1108 = vmatpush1.msra.mxu0 %v903
      %1109 = vmatprep.subr.mxu0 0.0
      %1110 = vmatpush1.msra.mxu0 %v904
      %1111 = vmatprep.subr.mxu0 0.0
      %1112 = vmatpush1.msra.mxu0 %v905
      %1113 = vmatprep.subr.mxu0 0.0
      %1114 = vmatpush1.msra.mxu0 %v906
      %1115 = vmatprep.subr.mxu0 0.0
      %1116 = vmatpush1.msra.mxu0 0.0
      %1117 = vmatprep.subr.mxu0 0.0
      %1118 = vmatpush1.msra.mxu0 0.0
      %1119 = vmatprep.subr.mxu0 0.0
      %1120 = vmatpush1.msra.mxu0 0.0
      %1121 = vmatprep.subr.mxu0 0.0
      %1122 = vmatpush1.msra.mxu0 0.0
      %1123 = vmatprep.subr.mxu0 0.0
      %1124 = vmatpush1.msra.mxu0 0.0
      %1125 = vmatprep.subr.mxu0 0.0
      %1126 = vmatpush1.msra.mxu0 0.0
      %1127 = vmatprep.subr.mxu0 0.0
      %1128 = vmatpush1.msra.mxu0 0.0
      %1129 = vmatprep.subr.mxu0 0.0
      %1130 = vmatpush1.msra.mxu0 0.0
      %1131 = vmatprep.subr.mxu0 0.0
      %1132 = vmatpush1.msra.mxu0 0.0
      %1133 = vmatprep.subr.mxu0 0.0
      %1134 = vmatpush1.msra.mxu0 0.0
      %1135 = vmatprep.subr.mxu0 0.0
      %1136 = vmatpush1.msra.mxu0 0.0
      %1137 = vmatprep.subr.mxu0 0.0
      %1138 = vmatpush1.msra.mxu0 0.0
      %1139 = vmatprep.subr.mxu0 0.0
      %1140 = vmatpush1.msra.mxu0 0.0
      %1141 = vmatprep.subr.mxu0 0.0
      %1142 = vmatpush1.msra.mxu0 0.0
      %1143 = vmatprep.subr.mxu0 0.0
      %1144 = vmatpush1.msra.mxu0 0.0
      %1145 = vmatprep.subr.mxu0 0.0
      %1146 = vmatpush1.msra.mxu0 0.0
      %1147 = vmatprep.subr.mxu0 0.0
      %1148 = vmatpush1.msra.mxu0 0.0
      %1149 = vmatprep.subr.mxu0 0.0
      %1150 = vmatpush1.msra.mxu0 0.0
      %1151 = vmatprep.subr.mxu0 0.0
      %1152 = vmatpush1.msra.mxu0 0.0
      %1153 = vmatprep.subr.mxu0 0.0
      %1154 = vmatpush1.msra.mxu0 0.0
      %1155 = vmatprep.subr.mxu0 0.0
      %1156 = vmatpush1.msra.mxu0 0.0
      %1157 = vmatprep.subr.mxu0 0.0
      %1158 = vmatpush1.msra.mxu0 0.0
      %1159 = vmatprep.subr.mxu0 0.0
      %1160 = vmatpush1.msra.mxu0 0.0
      %1161 = vmatprep.subr.mxu0 0.0
      %1162 = vmatpush1.msra.mxu0 0.0
      %1163 = vmatprep.subr.mxu0 0.0
      %1164 = vmatpush1.msra.mxu0 0.0
      %1165 = vmatprep.subr.mxu0 0.0
      %1166 = vmatpush1.msra.mxu0 0.0
      %1167 = vmatprep.subr.mxu0 0.0
      %1168 = vmatpush1.msra.mxu0 0.0
      %1169 = vmatprep.subr.mxu0 0.0
      %1170 = vmatpush1.msra.mxu0 0.0
      %1171 = vmatprep.mubr.f32.mxu0 0.0
      %1172 = vmatmul.mubr.f32.gmra.mrb[0].mxu0 %v916
      %v1173 = vpop.f32.mrb[0].mxu0
      %v1174 = vadd.f32 %v912, %v1173
      %v1175 = vpop.f32.mrb[0].mxu0
      %1176 = vmatprep.mubr.f32.mxu0 0.0
      %1177 = vmatmul.mubr.f32.gmra.mrb[0].mxu0 %v919
      %v1178 = vpop.f32.mrb[0].mxu0
      %v1179 = vadd.f32 %v912, %v1178
      %v1180 = vpop.f32.mrb[0].mxu0
      %1181 = vmatprep.mubr.f32.mxu0 0.0
      %1182 = vmatmul.mubr.f32.gmra.mrb[0].mxu0 %v922
      %v1183 = vpop.f32.mrb[0].mxu0
      %v1184 = vadd.f32 %v912, %v1183
      %v1185 = vpop.f32.mrb[0].mxu0
      %1186 = vmatprep.mubr.f32.mxu0 0.0
      %1187 = vmatmul.mubr.f32.gmra.mrb[0].mxu0 %v925
      %v1188 = vpop.f32.mrb[0].mxu0
      %v1189 = vadd.f32 %v912, %v1188
      %v1190 = vpop.f32.mrb[0].mxu0
      %1191 = vmatprep.mubr.f32.mxu0 0.0
      %1192 = vmatmul.mubr.f32.gmra.mrb[0].mxu0 %v928
      %v1193 = vpop.f32.mrb[0].mxu0
      %v1194 = vadd.f32 %v912, %v1193
      %v1195 = vpop.f32.mrb[0].mxu0
      %1196 = vmatprep.mubr.f32.mxu0 0.0
      %1197 = vmatmul.mubr.f32.gmra.mrb[0].mxu0 %v931
      %v1198 = vpop.f32.mrb[0].mxu0
      %v1199 = vadd.f32 %v912, %v1198
      %v1200 = vpop.f32.mrb[0].mxu0
      %1201 = vmatprep.mubr.f32.mxu0 0.0
      %1202 = vmatmul.mubr.f32.gmra.mrb[0].mxu0 %v934
      %v1203 = vpop.f32.mrb[0].mxu0
      %v1204 = vadd.f32 %v912, %v1203
      %v1205 = vpop.f32.mrb[0].mxu0
      %1206 = vmatprep.mubr.f32.mxu0 0.0
      %1207 = vmatmul.mubr.f32.gmra.mrb[0].mxu0 %v937
      %v1208 = vpop.f32.mrb[0].mxu0
      %v1209 = vadd.f32 %v912, %v1208
      %v1210 = vpop.f32.mrb[0].mxu0
      %1211 = vmatprep.mubr.f32.mxu0 0.0
      %1212 = vmatmul.mubr.f32.gmra.mrb[0].mxu0 %v940
      %v1213 = vpop.f32.mrb[0].mxu0
      %v1214 = vadd.f32 %v912, %v1213
      %v1215 = vpop.f32.mrb[0].mxu0
      %1216 = vmatprep.mubr.f32.mxu0 0.0
      %1217 = vmatmul.mubr.f32.gmra.mrb[0].mxu0 %v943
      %v1218 = vpop.f32.mrb[0].mxu0
      %v1219 = vadd.f32 %v912, %v1218
      %v1220 = vpop.f32.mrb[0].mxu0
      %1221 = vmatprep.mubr.f32.mxu0 0.0
      %1222 = vmatmul.mubr.f32.gmra.mrb[0].mxu0 %v946
      %v1223 = vpop.f32.mrb[0].mxu0
      %v1224 = vadd.f32 %v912, %v1223
      %v1225 = vpop.f32.mrb[0].mxu0
      %1226 = vmatprep.mubr.f32.mxu0 0.0
      %1227 = vmatmul.mubr.f32.gmra.mrb[0].mxu0 %v949
      %v1228 = vpop.f32.mrb[0].mxu0
      %v1229 = vadd.f32 %v912, %v1228
      %v1230 = vpop.f32.mrb[0].mxu0
      %1231 = vmatprep.mubr.f32.mxu0 0.0
      %1232 = vmatmul.mubr.f32.gmra.mrb[0].mxu0 %v952
      %v1233 = vpop.f32.mrb[0].mxu0
      %v1234 = vadd.f32 %v912, %v1233
      %v1235 = vpop.f32.mrb[0].mxu0
      %1236 = vmatprep.mubr.f32.mxu0 0.0
      %1237 = vmatmul.mubr.f32.gmra.mrb[0].mxu0 %v955
      %v1238 = vpop.f32.mrb[0].mxu0
      %v1239 = vadd.f32 %v912, %v1238
      %v1240 = vpop.f32.mrb[0].mxu0
      %1241 = vmatprep.mubr.f32.mxu0 0.0
      %1242 = vmatmul.mubr.f32.gmra.mrb[0].mxu0 %v958
      %v1243 = vpop.f32.mrb[0].mxu0
      %v1244 = vadd.f32 %v912, %v1243
      %v1245 = vpop.f32.mrb[0].mxu0
      %1246 = vmatprep.mubr.f32.mxu0 0.0
      %1247 = vmatmul.mubr.f32.gmra.mrb[0].mxu0 %v961
      %v1248 = vpop.f32.mrb[0].mxu0
      %v1249 = vadd.f32 %v912, %v1248
      %v1250 = vpop.f32.mrb[0].mxu0
      %1251 = vmatprep.mubr.f32.mxu0 0.0
      %1252 = vmatmul.mubr.f32.gmra.mrb[0].mxu0 %v964
      %v1253 = vpop.f32.mrb[0].mxu0
      %v1254 = vadd.f32 %v912, %v1253
      %v1255 = vpop.f32.mrb[0].mxu0
      %1256 = vmatprep.mubr.f32.mxu0 0.0
      %1257 = vmatmul.mubr.f32.gmra.mrb[0].mxu0 %v967
      %v1258 = vpop.f32.mrb[0].mxu0
      %v1259 = vadd.f32 %v912, %v1258
      %v1260 = vpop.f32.mrb[0].mxu0
      %1261 = vmatprep.mubr.f32.mxu0 0.0
      %1262 = vmatmul.mubr.f32.gmra.mrb[0].mxu0 %v970
      %v1263 = vpop.f32.mrb[0].mxu0
      %v1264 = vadd.f32 %v912, %v1263
      %v1265 = vpop.f32.mrb[0].mxu0
      %1266 = vmatprep.mubr.f32.mxu0 0.0
      %1267 = vmatmul.mubr.f32.gmra.mrb[0].mxu0 %v973
      %v1268 = vpop.f32.mrb[0].mxu0
      %v1269 = vadd.f32 %v912, %v1268
      %v1270 = vpop.f32.mrb[0].mxu0
      %1271 = vmatprep.mubr.f32.mxu0 0.0
      %1272 = vmatmul.mubr.f32.gmra.mrb[0].mxu0 %v976
      %v1273 = vpop.f32.mrb[0].mxu0
      %v1274 = vadd.f32 %v912, %v1273
      %v1275 = vpop.f32.mrb[0].mxu0
      %1276 = vmatprep.mubr.f32.mxu0 0.0
      %1277 = vmatmul.mubr.f32.gmra.mrb[0].mxu0 %v979
      %v1278 = vpop.f32.mrb[0].mxu0
      %v1279 = vadd.f32 %v912, %v1278
      %v1280 = vpop.f32.mrb[0].mxu0
      %1281 = vmatprep.mubr.f32.mxu0 0.0
      %1282 = vmatmul.mubr.f32.gmra.mrb[0].mxu0 %v982
      %v1283 = vpop.f32.mrb[0].mxu0
      %v1284 = vadd.f32 %v912, %v1283
      %v1285 = vpop.f32.mrb[0].mxu0
      %1286 = vmatprep.mubr.f32.mxu0 0.0
      %1287 = vmatmul.mubr.f32.gmra.mrb[0].mxu0 %v985
      %v1288 = vpop.f32.mrb[0].mxu0
      %v1289 = vadd.f32 %v912, %v1288
      %v1290 = vpop.f32.mrb[0].mxu0
      %1291 = vmatprep.mubr.f32.mxu0 0.0
      %1292 = vmatmul.mubr.f32.gmra.mrb[0].mxu0 %v988
      %v1293 = vpop.f32.mrb[0].mxu0
      %v1294 = vadd.f32 %v912, %v1293
      %v1295 = vpop.f32.mrb[0].mxu0
      %1296 = vmatprep.mubr.f32.mxu0 0.0
      %1297 = vmatmul.mubr.f32.gmra.mrb[0].mxu0 %v991
      %v1298 = vpop.f32.mrb[0].mxu0
      %v1299 = vadd.f32 %v912, %v1298
      %v1300 = vpop.f32.mrb[0].mxu0
      %1301 = vmatprep.mubr.f32.mxu0 0.0
      %1302 = vmatmul.mubr.f32.gmra.mrb[0].mxu0 %v994
      %v1303 = vpop.f32.mrb[0].mxu0
      %v1304 = vadd.f32 %v912, %v1303
      %v1305 = vpop.f32.mrb[0].mxu0
      %1306 = vmatprep.mubr.f32.mxu0 0.0
      %1307 = vmatmul.mubr.f32.gmra.mrb[0].mxu0 %v997
      %v1308 = vpop.f32.mrb[0].mxu0
      %v1309 = vadd.f32 %v912, %v1308
      %v1310 = vpop.f32.mrb[0].mxu0
      %1311 = vmatprep.mubr.f32.mxu0 0.0
      %1312 = vmatmul.mubr.f32.gmra.mrb[0].mxu0 %v1000
      %v1313 = vpop.f32.mrb[0].mxu0
      %v1314 = vadd.f32 %v912, %v1313
      %v1315 = vpop.f32.mrb[0].mxu0
      %1316 = vmatprep.mubr.f32.mxu0 0.0
      %1317 = vmatmul.mubr.f32.gmra.mrb[0].mxu0 %v1003
      %v1318 = vpop.f32.mrb[0].mxu0
      %v1319 = vadd.f32 %v912, %v1318
      %v1320 = vpop.f32.mrb[0].mxu0
      %1321 = vmatprep.mubr.f32.mxu0 0.0
      %1322 = vmatmul.mubr.f32.gmra.mrb[0].mxu0 %v1006
      %v1323 = vpop.f32.mrb[0].mxu0
      %v1324 = vadd.f32 %v912, %v1323
      %v1325 = vpop.f32.mrb[0].mxu0
      %1326 = vmatprep.mubr.f32.mxu0 0.0
      %1327 = vmatmul.mubr.f32.gmra.mrb[0].mxu0 %v1009
      %v1328 = vpop.f32.mrb[0].mxu0
      %v1329 = vadd.f32 %v912, %v1328
      %v1330 = vpop.f32.mrb[0].mxu0
      %1331 = vmatprep.mubr.f32.mxu0 0.0
      %1332 = vmatmul.mubr.f32.gmra.mrb[0].mxu0 %v1012
      %v1333 = vpop.f32.mrb[0].mxu0
      %v1334 = vadd.f32 %v912, %v1333
      %v1335 = vpop.f32.mrb[0].mxu0
      %1336 = vmatprep.mubr.f32.mxu0 0.0
      %1337 = vmatmul.mubr.f32.gmra.mrb[0].mxu0 %v1015
      %v1338 = vpop.f32.mrb[0].mxu0
      %v1339 = vadd.f32 %v912, %v1338
      %v1340 = vpop.f32.mrb[0].mxu0
      %1341 = vmatprep.mubr.f32.mxu0 0.0
      %1342 = vmatmul.mubr.f32.gmra.mrb[0].mxu0 %v1018
      %v1343 = vpop.f32.mrb[0].mxu0
      %v1344 = vadd.f32 %v912, %v1343
      %v1345 = vpop.f32.mrb[0].mxu0
      %1346 = vmatprep.mubr.f32.mxu0 0.0
      %1347 = vmatmul.mubr.f32.gmra.mrb[0].mxu0 %v1021
      %v1348 = vpop.f32.mrb[0].mxu0
      %v1349 = vadd.f32 %v912, %v1348
      %v1350 = vpop.f32.mrb[0].mxu0
      %1351 = vmatprep.mubr.f32.mxu0 0.0
      %1352 = vmatmul.mubr.f32.gmra.mrb[0].mxu0 %v1024
      %v1353 = vpop.f32.mrb[0].mxu0
      %v1354 = vadd.f32 %v912, %v1353
      %v1355 = vpop.f32.mrb[0].mxu0
      %1356 = vmatprep.mubr.f32.mxu0 0.0
      %1357 = vmatmul.mubr.f32.gmra.mrb[0].mxu0 %v1027
      %v1358 = vpop.f32.mrb[0].mxu0
      %v1359 = vadd.f32 %v912, %v1358
      %v1360 = vpop.f32.mrb[0].mxu0
      %1361 = vmatprep.mubr.f32.mxu0 0.0
      %1362 = vmatmul.mubr.f32.gmra.mrb[0].mxu0 %v1030
      %v1363 = vpop.f32.mrb[0].mxu0
      %v1364 = vadd.f32 %v912, %v1363
      %v1365 = vpop.f32.mrb[0].mxu0
      %1366 = vmatprep.mubr.f32.mxu0 0.0
      %1367 = vmatmul.mubr.f32.gmra.mrb[0].mxu0 %v1033
      %v1368 = vpop.f32.mrb[0].mxu0
      %v1369 = vadd.f32 %v912, %v1368
      %v1370 = vpop.f32.mrb[0].mxu0
      %1371 = vmatprep.mubr.f32.mxu0 0.0
      %1372 = vmatmul.mubr.f32.gmra.mrb[0].mxu0 %v1036
      %v1373 = vpop.f32.mrb[0].mxu0
      %v1374 = vadd.f32 %v912, %v1373
      %v1375 = vpop.f32.mrb[0].mxu0
      %1376 = vmatprep.mubr.f32.mxu0 0.0
      %1377 = vmatmul.mubr.f32.gmra.mrb[0].mxu0 %v1039
      %v1378 = vpop.f32.mrb[0].mxu0
      %v1379 = vadd.f32 %v912, %v1378
      %v1380 = vpop.f32.mrb[0].mxu0
      %1381 = vmatprep.mubr.f32.mxu0 0.0
      %1382 = vmatmul.mubr.f32.gmra.mrb[0].mxu0 %v1042
      %v1383 = vpop.f32.mrb[0].mxu0
      %v1384 = vadd.f32 %v912, %v1383
      %v1385 = vpop.f32.mrb[0].mxu0
      %1386 = vmatprep.mubr.f32.mxu0 0.0
      %1387 = vmatmul.mubr.f32.gmra.mrb[0].mxu0 %v1045
      %v1388 = vpop.f32.mrb[0].mxu0
      %v1389 = vadd.f32 %v912, %v1388
      %v1390 = vpop.f32.mrb[0].mxu0
      %1391 = vmatprep.mubr.f32.mxu0 0.0
      %1392 = vmatmul.mubr.f32.gmra.mrb[0].mxu0 %v1048
      %v1393 = vpop.f32.mrb[0].mxu0
      %v1394 = vadd.f32 %v912, %v1393
      %v1395 = vpop.f32.mrb[0].mxu0
      %1396 = vmatprep.mubr.f32.mxu0 0.0
      %1397 = vmatmul.mubr.f32.gmra.mrb[0].mxu0 %v1051
      %v1398 = vpop.f32.mrb[0].mxu0
      %v1399 = vadd.f32 %v912, %v1398
      %v1400 = vpop.f32.mrb[0].mxu0
      %1401 = vmatprep.mubr.f32.mxu0 0.0
      %1402 = vmatmul.mubr.f32.gmra.mrb[0].mxu0 %v1054
      %v1403 = vpop.f32.mrb[0].mxu0
      %v1404 = vadd.f32 %v912, %v1403
      %v1405 = vpop.f32.mrb[0].mxu0
      %1406 = vmatprep.mubr.f32.mxu0 0.0
      %1407 = vmatmul.mubr.f32.gmra.mrb[0].mxu0 %v1057
      %v1408 = vpop.f32.mrb[0].mxu0
      %v1409 = vadd.f32 %v912, %v1408
      %v1410 = vpop.f32.mrb[0].mxu0
      %1411 = vmatprep.mubr.f32.mxu0 0.0
      %1412 = vmatmul.mubr.f32.gmra.mrb[0].mxu0 %v1060
      %v1413 = vpop.f32.mrb[0].mxu0
      %v1414 = vadd.f32 %v912, %v1413
      %v1415 = vpop.f32.mrb[0].mxu0
      %1416 = vmatprep.mubr.f32.mxu0 0.0
      %1417 = vmatmul.mubr.f32.gmra.mrb[0].mxu0 %v1063
      %v1418 = vpop.f32.mrb[0].mxu0
      %v1419 = vadd.f32 %v912, %v1418
      %v1420 = vpop.f32.mrb[0].mxu0
      %1421 = vmatprep.mubr.f32.mxu0 0.0
      %1422 = vmatmul.mubr.f32.gmra.mrb[0].mxu0 %v1066
      %v1423 = vpop.f32.mrb[0].mxu0
      %v1424 = vadd.f32 %v912, %v1423
      %v1425 = vpop.f32.mrb[0].mxu0
      %1426 = vmatprep.mubr.f32.mxu0 0.0
      %1427 = vmatmul.mubr.f32.gmra.mrb[0].mxu0 %v1069
      %v1428 = vpop.f32.mrb[0].mxu0
      %v1429 = vadd.f32 %v912, %v1428
      %v1430 = vpop.f32.mrb[0].mxu0
      %1431 = vmatprep.mubr.f32.mxu0 0.0
      %1432 = vmatmul.mubr.f32.gmra.mrb[0].mxu0 %v1072
      %v1433 = vpop.f32.mrb[0].mxu0
      %v1434 = vadd.f32 %v912, %v1433
      %v1435 = vpop.f32.mrb[0].mxu0
      %1436 = vmatprep.mubr.f32.mxu0 0.0
      %1437 = vmatmul.mubr.f32.gmra.mrb[0].mxu0 %v1075
      %v1438 = vpop.f32.mrb[0].mxu0
      %v1439 = vadd.f32 %v912, %v1438
      %v1440 = vpop.f32.mrb[0].mxu0
      %1441 = vmatprep.mubr.f32.mxu0 0.0
      %1442 = vmatmul.mubr.f32.gmra.mrb[0].mxu0 %v1078
      %v1443 = vpop.f32.mrb[0].mxu0
      %v1444 = vadd.f32 %v912, %v1443
      %v1445 = vpop.f32.mrb[0].mxu0
      %1446 = vmatprep.mubr.f32.mxu0 0.0
      %1447 = vmatmul.mubr.f32.gmra.mrb[0].mxu0 %v1081
      %v1448 = vpop.f32.mrb[0].mxu0
      %v1449 = vadd.f32 %v912, %v1448
      %v1450 = vpop.f32.mrb[0].mxu0
      %1451 = vmatprep.mubr.f32.mxu0 0.0
      %1452 = vmatmul.mubr.f32.gmra.mrb[0].mxu0 %v1084
      %v1453 = vpop.f32.mrb[0].mxu0
      %v1454 = vadd.f32 %v912, %v1453
      %v1455 = vpop.f32.mrb[0].mxu0
      %1456 = vmatprep.mubr.f32.mxu0 0.0
      %1457 = vmatmul.mubr.f32.gmra.mrb[0].mxu0 %v1087
      %v1458 = vpop.f32.mrb[0].mxu0
      %v1459 = vadd.f32 %v912, %v1458
      %v1460 = vpop.f32.mrb[0].mxu0
      %1461 = vmatprep.mubr.f32.mxu0 0.0
      %1462 = vmatmul.mubr.f32.gmra.mrb[0].mxu0 %v1090
      %v1463 = vpop.f32.mrb[0].mxu0
      %v1464 = vadd.f32 %v912, %v1463
      %v1465 = vpop.f32.mrb[0].mxu0
      %1466 = vmatprep.mubr.f32.mxu0 0.0
      %1467 = vmatmul.mubr.f32.gmra.mrb[0].mxu0 %v1093
      %v1468 = vpop.f32.mrb[0].mxu0
      %v1469 = vadd.f32 %v912, %v1468
      %v1470 = vpop.f32.mrb[0].mxu0
      %1471 = vmatprep.mubr.f32.mxu0 0.0
      %1472 = vmatmul.mubr.f32.gmra.mrb[0].mxu0 %v1096
      %v1473 = vpop.f32.mrb[0].mxu0
      %v1474 = vadd.f32 %v912, %v1473
      %v1475 = vpop.f32.mrb[0].mxu0
      %1476 = vmatprep.mubr.f32.mxu0 0.0
      %1477 = vmatmul.mubr.f32.gmra.mrb[0].mxu0 %v1099
      %v1478 = vpop.f32.mrb[0].mxu0
      %v1479 = vadd.f32 %v912, %v1478
      %v1480 = vpop.f32.mrb[0].mxu0
      %1481 = vmatprep.mubr.f32.mxu0 0.0
      %1482 = vmatmul.mubr.f32.gmra.mrb[0].mxu0 %v1102
      %v1483 = vpop.f32.mrb[0].mxu0
      %v1484 = vadd.f32 %v912, %v1483
      %v1485 = vpop.f32.mrb[0].mxu0
      %1486 = vmatprep.mubr.f32.mxu0 0.0
      %1487 = vmatmul.mubr.f32.gmra.mrb[0].mxu0 %v1105
      %v1488 = vpop.f32.mrb[0].mxu0
      %v1489 = vadd.f32 %v912, %v1488
      %v1490 = vpop.f32.mrb[0].mxu0
      %1491 = vdwg.mxu0
      %v1492 = vmax.f32 %v1174, 0.0
      %v1493 = vmax.f32 %v1179, 0.0
      %v1494 = vmax.f32 %v1184, 0.0
      %v1495 = vmax.f32 %v1189, 0.0
      %v1496 = vmax.f32 %v1194, 0.0
      %v1497 = vmax.f32 %v1199, 0.0
      %v1498 = vmax.f32 %v1204, 0.0
      %v1499 = vmax.f32 %v1209, 0.0
      %v1500 = vmax.f32 %v1214, 0.0
      %v1501 = vmax.f32 %v1219, 0.0
      %v1502 = vmax.f32 %v1224, 0.0
      %v1503 = vmax.f32 %v1229, 0.0
      %v1504 = vmax.f32 %v1234, 0.0
      %v1505 = vmax.f32 %v1239, 0.0
      %v1506 = vmax.f32 %v1244, 0.0
      %v1507 = vmax.f32 %v1249, 0.0
      %v1508 = vmax.f32 %v1254, 0.0
      %v1509 = vmax.f32 %v1259, 0.0
      %v1510 = vmax.f32 %v1264, 0.0
      %v1511 = vmax.f32 %v1269, 0.0
      %v1512 = vmax.f32 %v1274, 0.0
      %v1513 = vmax.f32 %v1279, 0.0
      %v1514 = vmax.f32 %v1284, 0.0
      %v1515 = vmax.f32 %v1289, 0.0
      %v1516 = vmax.f32 %v1294, 0.0
      %v1517 = vmax.f32 %v1299, 0.0
      %v1518 = vmax.f32 %v1304, 0.0
      %v1519 = vmax.f32 %v1309, 0.0
      %v1520 = vmax.f32 %v1314, 0.0
      %v1521 = vmax.f32 %v1319, 0.0
      %v1522 = vmax.f32 %v1324, 0.0
      %v1523 = vmax.f32 %v1329, 0.0
      %v1524 = vmax.f32 %v1334, 0.0
      %v1525 = vmax.f32 %v1339, 0.0
      %v1526 = vmax.f32 %v1344, 0.0
      %v1527 = vmax.f32 %v1349, 0.0
      %v1528 = vmax.f32 %v1354, 0.0
      %v1529 = vmax.f32 %v1359, 0.0
      %v1530 = vmax.f32 %v1364, 0.0
      %v1531 = vmax.f32 %v1369, 0.0
      %v1532 = vmax.f32 %v1374, 0.0
      %v1533 = vmax.f32 %v1379, 0.0
      %v1534 = vmax.f32 %v1384, 0.0
      %v1535 = vmax.f32 %v1389, 0.0
      %v1536 = vmax.f32 %v1394, 0.0
      %v1537 = vmax.f32 %v1399, 0.0
      %v1538 = vmax.f32 %v1404, 0.0
      %v1539 = vmax.f32 %v1409, 0.0
      %v1540 = vmax.f32 %v1414, 0.0
      %v1541 = vmax.f32 %v1419, 0.0
      %v1542 = vmax.f32 %v1424, 0.0
      %v1543 = vmax.f32 %v1429, 0.0
      %v1544 = vmax.f32 %v1434, 0.0
      %v1545 = vmax.f32 %v1439, 0.0
      %v1546 = vmax.f32 %v1444, 0.0
      %v1547 = vmax.f32 %v1449, 0.0
      %v1548 = vmax.f32 %v1454, 0.0
      %v1549 = vmax.f32 %v1459, 0.0
      %v1550 = vmax.f32 %v1464, 0.0
      %v1551 = vmax.f32 %v1469, 0.0
      %v1552 = vmax.f32 %v1474, 0.0
      %v1553 = vmax.f32 %v1479, 0.0
      %v1554 = vmax.f32 %v1484, 0.0
      %v1555 = vmax.f32 %v1489, 0.0
      %vm1556 = vcmp.ne.f32.partialorder %v1174, %v1174
      %vm1557 = vcmp.ne.f32.partialorder %v1179, %v1179
      %vm1558 = vcmp.ne.f32.partialorder %v1184, %v1184
      %vm1559 = vcmp.ne.f32.partialorder %v1189, %v1189
      %vm1560 = vcmp.ne.f32.partialorder %v1194, %v1194
      %vm1561 = vcmp.ne.f32.partialorder %v1199, %v1199
      %vm1562 = vcmp.ne.f32.partialorder %v1204, %v1204
      %vm1563 = vcmp.ne.f32.partialorder %v1209, %v1209
      %vm1564 = vcmp.ne.f32.partialorder %v1214, %v1214
      %vm1565 = vcmp.ne.f32.partialorder %v1219, %v1219
      %vm1566 = vcmp.ne.f32.partialorder %v1224, %v1224
      %vm1567 = vcmp.ne.f32.partialorder %v1229, %v1229
      %vm1568 = vcmp.ne.f32.partialorder %v1234, %v1234
      %vm1569 = vcmp.ne.f32.partialorder %v1239, %v1239
      %vm1570 = vcmp.ne.f32.partialorder %v1244, %v1244
      %vm1571 = vcmp.ne.f32.partialorder %v1249, %v1249
      %vm1572 = vcmp.ne.f32.partialorder %v1254, %v1254
      %vm1573 = vcmp.ne.f32.partialorder %v1259, %v1259
      %vm1574 = vcmp.ne.f32.partialorder %v1264, %v1264
      %vm1575 = vcmp.ne.f32.partialorder %v1269, %v1269
      %vm1576 = vcmp.ne.f32.partialorder %v1274, %v1274
      %vm1577 = vcmp.ne.f32.partialorder %v1279, %v1279
      %vm1578 = vcmp.ne.f32.partialorder %v1284, %v1284
      %vm1579 = vcmp.ne.f32.partialorder %v1289, %v1289
      %vm1580 = vcmp.ne.f32.partialorder %v1294, %v1294
      %vm1581 = vcmp.ne.f32.partialorder %v1299, %v1299
      %vm1582 = vcmp.ne.f32.partialorder %v1304, %v1304
      %vm1583 = vcmp.ne.f32.partialorder %v1309, %v1309
      %vm1584 = vcmp.ne.f32.partialorder %v1314, %v1314
      %vm1585 = vcmp.ne.f32.partialorder %v1319, %v1319
      %vm1586 = vcmp.ne.f32.partialorder %v1324, %v1324
      %vm1587 = vcmp.ne.f32.partialorder %v1329, %v1329
      %vm1588 = vcmp.ne.f32.partialorder %v1334, %v1334
      %vm1589 = vcmp.ne.f32.partialorder %v1339, %v1339
      %vm1590 = vcmp.ne.f32.partialorder %v1344, %v1344
      %vm1591 = vcmp.ne.f32.partialorder %v1349, %v1349
      %vm1592 = vcmp.ne.f32.partialorder %v1354, %v1354
      %vm1593 = vcmp.ne.f32.partialorder %v1359, %v1359
      %vm1594 = vcmp.ne.f32.partialorder %v1364, %v1364
      %vm1595 = vcmp.ne.f32.partialorder %v1369, %v1369
      %vm1596 = vcmp.ne.f32.partialorder %v1374, %v1374
      %vm1597 = vcmp.ne.f32.partialorder %v1379, %v1379
      %vm1598 = vcmp.ne.f32.partialorder %v1384, %v1384
      %vm1599 = vcmp.ne.f32.partialorder %v1389, %v1389
      %vm1600 = vcmp.ne.f32.partialorder %v1394, %v1394
      %vm1601 = vcmp.ne.f32.partialorder %v1399, %v1399
      %vm1602 = vcmp.ne.f32.partialorder %v1404, %v1404
      %vm1603 = vcmp.ne.f32.partialorder %v1409, %v1409
      %vm1604 = vcmp.ne.f32.partialorder %v1414, %v1414
      %vm1605 = vcmp.ne.f32.partialorder %v1419, %v1419
      %vm1606 = vcmp.ne.f32.partialorder %v1424, %v1424
      %vm1607 = vcmp.ne.f32.partialorder %v1429, %v1429
      %vm1608 = vcmp.ne.f32.partialorder %v1434, %v1434
      %vm1609 = vcmp.ne.f32.partialorder %v1439, %v1439
      %vm1610 = vcmp.ne.f32.partialorder %v1444, %v1444
      %vm1611 = vcmp.ne.f32.partialorder %v1449, %v1449
      %vm1612 = vcmp.ne.f32.partialorder %v1454, %v1454
      %vm1613 = vcmp.ne.f32.partialorder %v1459, %v1459
      %vm1614 = vcmp.ne.f32.partialorder %v1464, %v1464
      %vm1615 = vcmp.ne.f32.partialorder %v1469, %v1469
      %vm1616 = vcmp.ne.f32.partialorder %v1474, %v1474
      %vm1617 = vcmp.ne.f32.partialorder %v1479, %v1479
      %vm1618 = vcmp.ne.f32.partialorder %v1484, %v1484
      %vm1619 = vcmp.ne.f32.partialorder %v1489, %v1489
      %v1620 = vadd.f32 %v1174, 0.0
      %v1621 = vadd.f32 %v1179, 0.0
      %v1622 = vadd.f32 %v1184, 0.0
      %v1623 = vadd.f32 %v1189, 0.0
      %v1624 = vadd.f32 %v1194, 0.0
      %v1625 = vadd.f32 %v1199, 0.0
      %v1626 = vadd.f32 %v1204, 0.0
      %v1627 = vadd.f32 %v1209, 0.0
      %v1628 = vadd.f32 %v1214, 0.0
      %v1629 = vadd.f32 %v1219, 0.0
      %v1630 = vadd.f32 %v1224, 0.0
      %v1631 = vadd.f32 %v1229, 0.0
      %v1632 = vadd.f32 %v1234, 0.0
      %v1633 = vadd.f32 %v1239, 0.0
      %v1634 = vadd.f32 %v1244, 0.0
      %v1635 = vadd.f32 %v1249, 0.0
      %v1636 = vadd.f32 %v1254, 0.0
      %v1637 = vadd.f32 %v1259, 0.0
      %v1638 = vadd.f32 %v1264, 0.0
      %v1639 = vadd.f32 %v1269, 0.0
      %v1640 = vadd.f32 %v1274, 0.0
      %v1641 = vadd.f32 %v1279, 0.0
      %v1642 = vadd.f32 %v1284, 0.0
      %v1643 = vadd.f32 %v1289, 0.0
      %v1644 = vadd.f32 %v1294, 0.0
      %v1645 = vadd.f32 %v1299, 0.0
      %v1646 = vadd.f32 %v1304, 0.0
      %v1647 = vadd.f32 %v1309, 0.0
      %v1648 = vadd.f32 %v1314, 0.0
      %v1649 = vadd.f32 %v1319, 0.0
      %v1650 = vadd.f32 %v1324, 0.0
      %v1651 = vadd.f32 %v1329, 0.0
      %v1652 = vadd.f32 %v1334, 0.0
      %v1653 = vadd.f32 %v1339, 0.0
      %v1654 = vadd.f32 %v1344, 0.0
      %v1655 = vadd.f32 %v1349, 0.0
      %v1656 = vadd.f32 %v1354, 0.0
      %v1657 = vadd.f32 %v1359, 0.0
      %v1658 = vadd.f32 %v1364, 0.0
      %v1659 = vadd.f32 %v1369, 0.0
      %v1660 = vadd.f32 %v1374, 0.0
      %v1661 = vadd.f32 %v1379, 0.0
      %v1662 = vadd.f32 %v1384, 0.0
      %v1663 = vadd.f32 %v1389, 0.0
      %v1664 = vadd.f32 %v1394, 0.0
      %v1665 = vadd.f32 %v1399, 0.0
      %v1666 = vadd.f32 %v1404, 0.0
      %v1667 = vadd.f32 %v1409, 0.0
      %v1668 = vadd.f32 %v1414, 0.0
      %v1669 = vadd.f32 %v1419, 0.0
      %v1670 = vadd.f32 %v1424, 0.0
      %v1671 = vadd.f32 %v1429, 0.0
      %v1672 = vadd.f32 %v1434, 0.0
      %v1673 = vadd.f32 %v1439, 0.0
      %v1674 = vadd.f32 %v1444, 0.0
      %v1675 = vadd.f32 %v1449, 0.0
      %v1676 = vadd.f32 %v1454, 0.0
      %v1677 = vadd.f32 %v1459, 0.0
      %v1678 = vadd.f32 %v1464, 0.0
      %v1679 = vadd.f32 %v1469, 0.0
      %v1680 = vadd.f32 %v1474, 0.0
      %v1681 = vadd.f32 %v1479, 0.0
      %v1682 = vadd.f32 %v1484, 0.0
      %v1683 = vadd.f32 %v1489, 0.0
      %v1684 = vand.u32 2147483647, %v1174
      %v1685 = vand.u32 2147483647, %v1179
      %v1686 = vand.u32 2147483647, %v1184
      %v1687 = vand.u32 2147483647, %v1189
      %v1688 = vand.u32 2147483647, %v1194
      %v1689 = vand.u32 2147483647, %v1199
      %v1690 = vand.u32 2147483647, %v1204
      %v1691 = vand.u32 2147483647, %v1209
      %v1692 = vand.u32 2147483647, %v1214
      %v1693 = vand.u32 2147483647, %v1219
      %v1694 = vand.u32 2147483647, %v1224
      %v1695 = vand.u32 2147483647, %v1229
      %v1696 = vand.u32 2147483647, %v1234
      %v1697 = vand.u32 2147483647, %v1239
      %v1698 = vand.u32 2147483647, %v1244
      %v1699 = vand.u32 2147483647, %v1249
      %v1700 = vand.u32 2147483647, %v1254
      %v1701 = vand.u32 2147483647, %v1259
      %v1702 = vand.u32 2147483647, %v1264
      %v1703 = vand.u32 2147483647, %v1269
      %v1704 = vand.u32 2147483647, %v1274
      %v1705 = vand.u32 2147483647, %v1279
      %v1706 = vand.u32 2147483647, %v1284
      %v1707 = vand.u32 2147483647, %v1289
      %v1708 = vand.u32 2147483647, %v1294
      %v1709 = vand.u32 2147483647, %v1299
      %v1710 = vand.u32 2147483647, %v1304
      %v1711 = vand.u32 2147483647, %v1309
      %v1712 = vand.u32 2147483647, %v1314
      %v1713 = vand.u32 2147483647, %v1319
      %v1714 = vand.u32 2147483647, %v1324
      %v1715 = vand.u32 2147483647, %v1329
      %v1716 = vand.u32 2147483647, %v1334
      %v1717 = vand.u32 2147483647, %v1339
      %v1718 = vand.u32 2147483647, %v1344
      %v1719 = vand.u32 2147483647, %v1349
      %v1720 = vand.u32 2147483647, %v1354
      %v1721 = vand.u32 2147483647, %v1359
      %v1722 = vand.u32 2147483647, %v1364
      %v1723 = vand.u32 2147483647, %v1369
      %v1724 = vand.u32 2147483647, %v1374
      %v1725 = vand.u32 2147483647, %v1379
      %v1726 = vand.u32 2147483647, %v1384
      %v1727 = vand.u32 2147483647, %v1389
      %v1728 = vand.u32 2147483647, %v1394
      %v1729 = vand.u32 2147483647, %v1399
      %v1730 = vand.u32 2147483647, %v1404
      %v1731 = vand.u32 2147483647, %v1409
      %v1732 = vand.u32 2147483647, %v1414
      %v1733 = vand.u32 2147483647, %v1419
      %v1734 = vand.u32 2147483647, %v1424
      %v1735 = vand.u32 2147483647, %v1429
      %v1736 = vand.u32 2147483647, %v1434
      %v1737 = vand.u32 2147483647, %v1439
      %v1738 = vand.u32 2147483647, %v1444
      %v1739 = vand.u32 2147483647, %v1449
      %v1740 = vand.u32 2147483647, %v1454
      %v1741 = vand.u32 2147483647, %v1459
      %v1742 = vand.u32 2147483647, %v1464
      %v1743 = vand.u32 2147483647, %v1469
      %v1744 = vand.u32 2147483647, %v1474
      %v1745 = vand.u32 2147483647, %v1479
      %v1746 = vand.u32 2147483647, %v1484
      %v1747 = vand.u32 2147483647, %v1489
      %v1748 = vsub.f32 0.0, %v1684
      %v1749 = vsub.f32 0.0, %v1685
      %v1750 = vsub.f32 0.0, %v1686
      %v1751 = vsub.f32 0.0, %v1687
      %v1752 = vsub.f32 0.0, %v1688
      %v1753 = vsub.f32 0.0, %v1689
      %v1754 = vsub.f32 0.0, %v1690
      %v1755 = vsub.f32 0.0, %v1691
      %v1756 = vsub.f32 0.0, %v1692
      %v1757 = vsub.f32 0.0, %v1693
      %v1758 = vsub.f32 0.0, %v1694
      %v1759 = vsub.f32 0.0, %v1695
      %v1760 = vsub.f32 0.0, %v1696
      %v1761 = vsub.f32 0.0, %v1697
      %v1762 = vsub.f32 0.0, %v1698
      %v1763 = vsub.f32 0.0, %v1699
      %v1764 = vsub.f32 0.0, %v1700
      %v1765 = vsub.f32 0.0, %v1701
      %v1766 = vsub.f32 0.0, %v1702
      %v1767 = vsub.f32 0.0, %v1703
      %v1768 = vsub.f32 0.0, %v1704
      %v1769 = vsub.f32 0.0, %v1705
      %v1770 = vsub.f32 0.0, %v1706
      %v1771 = vsub.f32 0.0, %v1707
      %v1772 = vsub.f32 0.0, %v1708
      %v1773 = vsub.f32 0.0, %v1709
      %v1774 = vsub.f32 0.0, %v1710
      %v1775 = vsub.f32 0.0, %v1711
      %v1776 = vsub.f32 0.0, %v1712
      %v1777 = vsub.f32 0.0, %v1713
      %v1778 = vsub.f32 0.0, %v1714
      %v1779 = vsub.f32 0.0, %v1715
      %v1780 = vsub.f32 0.0, %v1716
      %v1781 = vsub.f32 0.0, %v1717
      %v1782 = vsub.f32 0.0, %v1718
      %v1783 = vsub.f32 0.0, %v1719
      %v1784 = vsub.f32 0.0, %v1720
      %v1785 = vsub.f32 0.0, %v1721
      %v1786 = vsub.f32 0.0, %v1722
      %v1787 = vsub.f32 0.0, %v1723
      %v1788 = vsub.f32 0.0, %v1724
      %v1789 = vsub.f32 0.0, %v1725
      %v1790 = vsub.f32 0.0, %v1726
      %v1791 = vsub.f32 0.0, %v1727
      %v1792 = vsub.f32 0.0, %v1728
      %v1793 = vsub.f32 0.0, %v1729
      %v1794 = vsub.f32 0.0, %v1730
      %v1795 = vsub.f32 0.0, %v1731
      %v1796 = vsub.f32 0.0, %v1732
      %v1797 = vsub.f32 0.0, %v1733
      %v1798 = vsub.f32 0.0, %v1734
      %v1799 = vsub.f32 0.0, %v1735
      %v1800 = vsub.f32 0.0, %v1736
      %v1801 = vsub.f32 0.0, %v1737
      %v1802 = vsub.f32 0.0, %v1738
      %v1803 = vsub.f32 0.0, %v1739
      %v1804 = vsub.f32 0.0, %v1740
      %v1805 = vsub.f32 0.0, %v1741
      %v1806 = vsub.f32 0.0, %v1742
      %v1807 = vsub.f32 0.0, %v1743
      %v1808 = vsub.f32 0.0, %v1744
      %v1809 = vsub.f32 0.0, %v1745
      %v1810 = vsub.f32 0.0, %v1746
      %v1811 = vsub.f32 0.0, %v1747
      %v1812 = vmul.f32 %v1748, 1.442695
      %v1813 = vpow.pop %v1812
      %v1814 = vmul.f32 %v1749, 1.442695
      %v1815 = vpow.pop %v1814
      %v1816 = vmul.f32 %v1750, 1.442695
      %v1817 = vpow.pop %v1816
      %v1818 = vmul.f32 %v1751, 1.442695
      %v1819 = vpow.pop %v1818
      %v1820 = vmul.f32 %v1752, 1.442695
      %v1821 = vpow.pop %v1820
      %v1822 = vmul.f32 %v1753, 1.442695
      %v1823 = vpow.pop %v1822
      %v1824 = vmul.f32 %v1754, 1.442695
      %v1825 = vpow.pop %v1824
      %v1826 = vmul.f32 %v1755, 1.442695
      %v1827 = vpow.pop %v1826
      %v1828 = vmul.f32 %v1756, 1.442695
      %v1829 = vpow.pop %v1828
      %v1830 = vmul.f32 %v1757, 1.442695
      %v1831 = vpow.pop %v1830
      %v1832 = vmul.f32 %v1758, 1.442695
      %v1833 = vpow.pop %v1832
      %v1834 = vmul.f32 %v1759, 1.442695
      %v1835 = vpow.pop %v1834
      %v1836 = vmul.f32 %v1760, 1.442695
      %v1837 = vpow.pop %v1836
      %v1838 = vmul.f32 %v1761, 1.442695
      %v1839 = vpow.pop %v1838
      %v1840 = vmul.f32 %v1762, 1.442695
      %v1841 = vpow.pop %v1840
      %v1842 = vmul.f32 %v1763, 1.442695
      %v1843 = vpow.pop %v1842
      %v1844 = vmul.f32 %v1764, 1.442695
      %v1845 = vpow.pop %v1844
      %v1846 = vmul.f32 %v1765, 1.442695
      %v1847 = vpow.pop %v1846
      %v1848 = vmul.f32 %v1766, 1.442695
      %v1849 = vpow.pop %v1848
      %v1850 = vmul.f32 %v1767, 1.442695
      %v1851 = vpow.pop %v1850
      %v1852 = vmul.f32 %v1768, 1.442695
      %v1853 = vpow.pop %v1852
      %v1854 = vmul.f32 %v1769, 1.442695
      %v1855 = vpow.pop %v1854
      %v1856 = vmul.f32 %v1770, 1.442695
      %v1857 = vpow.pop %v1856
      %v1858 = vmul.f32 %v1771, 1.442695
      %v1859 = vpow.pop %v1858
      %v1860 = vmul.f32 %v1772, 1.442695
      %v1861 = vpow.pop %v1860
      %v1862 = vmul.f32 %v1773, 1.442695
      %v1863 = vpow.pop %v1862
      %v1864 = vmul.f32 %v1774, 1.442695
      %v1865 = vpow.pop %v1864
      %v1866 = vmul.f32 %v1775, 1.442695
      %v1867 = vpow.pop %v1866
      %v1868 = vmul.f32 %v1776, 1.442695
      %v1869 = vpow.pop %v1868
      %v1870 = vmul.f32 %v1777, 1.442695
      %v1871 = vpow.pop %v1870
      %v1872 = vmul.f32 %v1778, 1.442695
      %v1873 = vpow.pop %v1872
      %v1874 = vmul.f32 %v1779, 1.442695
      %v1875 = vpow.pop %v1874
      %v1876 = vmul.f32 %v1780, 1.442695
      %v1877 = vpow.pop %v1876
      %v1878 = vmul.f32 %v1781, 1.442695
      %v1879 = vpow.pop %v1878
      %v1880 = vmul.f32 %v1782, 1.442695
      %v1881 = vpow.pop %v1880
      %v1882 = vmul.f32 %v1783, 1.442695
      %v1883 = vpow.pop %v1882
      %v1884 = vmul.f32 %v1784, 1.442695
      %v1885 = vpow.pop %v1884
      %v1886 = vmul.f32 %v1785, 1.442695
      %v1887 = vpow.pop %v1886
      %v1888 = vmul.f32 %v1786, 1.442695
      %v1889 = vpow.pop %v1888
      %v1890 = vmul.f32 %v1787, 1.442695
      %v1891 = vpow.pop %v1890
      %v1892 = vmul.f32 %v1788, 1.442695
      %v1893 = vpow.pop %v1892
      %v1894 = vmul.f32 %v1789, 1.442695
      %v1895 = vpow.pop %v1894
      %v1896 = vmul.f32 %v1790, 1.442695
      %v1897 = vpow.pop %v1896
      %v1898 = vmul.f32 %v1791, 1.442695
      %v1899 = vpow.pop %v1898
      %v1900 = vmul.f32 %v1792, 1.442695
      %v1901 = vpow.pop %v1900
      %v1902 = vmul.f32 %v1793, 1.442695
      %v1903 = vpow.pop %v1902
      %v1904 = vmul.f32 %v1794, 1.442695
      %v1905 = vpow.pop %v1904
      %v1906 = vmul.f32 %v1795, 1.442695
      %v1907 = vpow.pop %v1906
      %v1908 = vmul.f32 %v1796, 1.442695
      %v1909 = vpow.pop %v1908
      %v1910 = vmul.f32 %v1797, 1.442695
      %v1911 = vpow.pop %v1910
      %v1912 = vmul.f32 %v1798, 1.442695
      %v1913 = vpow.pop %v1912
      %v1914 = vmul.f32 %v1799, 1.442695
      %v1915 = vpow.pop %v1914
      %v1916 = vmul.f32 %v1800, 1.442695
      %v1917 = vpow.pop %v1916
      %v1918 = vmul.f32 %v1801, 1.442695
      %v1919 = vpow.pop %v1918
      %v1920 = vmul.f32 %v1802, 1.442695
      %v1921 = vpow.pop %v1920
      %v1922 = vmul.f32 %v1803, 1.442695
      %v1923 = vpow.pop %v1922
      %v1924 = vmul.f32 %v1804, 1.442695
      %v1925 = vpow.pop %v1924
      %v1926 = vmul.f32 %v1805, 1.442695
      %v1927 = vpow.pop %v1926
      %v1928 = vmul.f32 %v1806, 1.442695
      %v1929 = vpow.pop %v1928
      %v1930 = vmul.f32 %v1807, 1.442695
      %v1931 = vpow.pop %v1930
      %v1932 = vmul.f32 %v1808, 1.442695
      %v1933 = vpow.pop %v1932
      %v1934 = vmul.f32 %v1809, 1.442695
      %v1935 = vpow.pop %v1934
      %v1936 = vmul.f32 %v1810, 1.442695
      %v1937 = vpow.pop %v1936
      %v1938 = vmul.f32 %v1811, 1.442695
      %v1939 = vpow.pop %v1938
      %v1940 = vadd.f32 %v1813, 1.0
      %v1941 = vlog2.pop %v1940
      %v1942 = vmul.f32 %v1941, 0.6931472
      %v1943 = vmul.f32 -0.5, %v1813
      %v1944 = vadd.f32 %v1943, 1.0
      %v1945 = vmul.f32 %v1944, %v1813
      %v1946 = vand.u32 2147483647, %v1813
      %vm1947 = vcmp.lt.f32.partialorder %v1946, 0.0004427343
      %v1948 = vsel %vm1947, %v1945, %v1942
      %v1949 = vadd.f32 %v1815, 1.0
      %v1950 = vlog2.pop %v1949
      %v1951 = vmul.f32 %v1950, 0.6931472
      %v1952 = vmul.f32 -0.5, %v1815
      %v1953 = vadd.f32 %v1952, 1.0
      %v1954 = vmul.f32 %v1953, %v1815
      %v1955 = vand.u32 2147483647, %v1815
      %vm1956 = vcmp.lt.f32.partialorder %v1955, 0.0004427343
      %v1957 = vsel %vm1956, %v1954, %v1951
      %v1958 = vadd.f32 %v1817, 1.0
      %v1959 = vlog2.pop %v1958
      %v1960 = vmul.f32 %v1959, 0.6931472
      %v1961 = vmul.f32 -0.5, %v1817
      %v1962 = vadd.f32 %v1961, 1.0
      %v1963 = vmul.f32 %v1962, %v1817
      %v1964 = vand.u32 2147483647, %v1817
      %vm1965 = vcmp.lt.f32.partialorder %v1964, 0.0004427343
      %v1966 = vsel %vm1965, %v1963, %v1960
      %v1967 = vadd.f32 %v1819, 1.0
      %v1968 = vlog2.pop %v1967
      %v1969 = vmul.f32 %v1968, 0.6931472
      %v1970 = vmul.f32 -0.5, %v1819
      %v1971 = vadd.f32 %v1970, 1.0
      %v1972 = vmul.f32 %v1971, %v1819
      %v1973 = vand.u32 2147483647, %v1819
      %vm1974 = vcmp.lt.f32.partialorder %v1973, 0.0004427343
      %v1975 = vsel %vm1974, %v1972, %v1969
      %v1976 = vadd.f32 %v1821, 1.0
      %v1977 = vlog2.pop %v1976
      %v1978 = vmul.f32 %v1977, 0.6931472
      %v1979 = vmul.f32 -0.5, %v1821
      %v1980 = vadd.f32 %v1979, 1.0
      %v1981 = vmul.f32 %v1980, %v1821
      %v1982 = vand.u32 2147483647, %v1821
      %vm1983 = vcmp.lt.f32.partialorder %v1982, 0.0004427343
      %v1984 = vsel %vm1983, %v1981, %v1978
      %v1985 = vadd.f32 %v1823, 1.0
      %v1986 = vlog2.pop %v1985
      %v1987 = vmul.f32 %v1986, 0.6931472
      %v1988 = vmul.f32 -0.5, %v1823
      %v1989 = vadd.f32 %v1988, 1.0
      %v1990 = vmul.f32 %v1989, %v1823
      %v1991 = vand.u32 2147483647, %v1823
      %vm1992 = vcmp.lt.f32.partialorder %v1991, 0.0004427343
      %v1993 = vsel %vm1992, %v1990, %v1987
      %v1994 = vadd.f32 %v1825, 1.0
      %v1995 = vlog2.pop %v1994
      %v1996 = vmul.f32 %v1995, 0.6931472
      %v1997 = vmul.f32 -0.5, %v1825
      %v1998 = vadd.f32 %v1997, 1.0
      %v1999 = vmul.f32 %v1998, %v1825
      %v2000 = vand.u32 2147483647, %v1825
      %vm2001 = vcmp.lt.f32.partialorder %v2000, 0.0004427343
      %v2002 = vsel %vm2001, %v1999, %v1996
      %v2003 = vadd.f32 %v1827, 1.0
      %v2004 = vlog2.pop %v2003
      %v2005 = vmul.f32 %v2004, 0.6931472
      %v2006 = vmul.f32 -0.5, %v1827
      %v2007 = vadd.f32 %v2006, 1.0
      %v2008 = vmul.f32 %v2007, %v1827
      %v2009 = vand.u32 2147483647, %v1827
      %vm2010 = vcmp.lt.f32.partialorder %v2009, 0.0004427343
      %v2011 = vsel %vm2010, %v2008, %v2005
      %v2012 = vadd.f32 %v1829, 1.0
      %v2013 = vlog2.pop %v2012
      %v2014 = vmul.f32 %v2013, 0.6931472
      %v2015 = vmul.f32 -0.5, %v1829
      %v2016 = vadd.f32 %v2015, 1.0
      %v2017 = vmul.f32 %v2016, %v1829
      %v2018 = vand.u32 2147483647, %v1829
      %vm2019 = vcmp.lt.f32.partialorder %v2018, 0.0004427343
      %v2020 = vsel %vm2019, %v2017, %v2014
      %v2021 = vadd.f32 %v1831, 1.0
      %v2022 = vlog2.pop %v2021
      %v2023 = vmul.f32 %v2022, 0.6931472
      %v2024 = vmul.f32 -0.5, %v1831
      %v2025 = vadd.f32 %v2024, 1.0
      %v2026 = vmul.f32 %v2025, %v1831
      %v2027 = vand.u32 2147483647, %v1831
      %vm2028 = vcmp.lt.f32.partialorder %v2027, 0.0004427343
      %v2029 = vsel %vm2028, %v2026, %v2023
      %v2030 = vadd.f32 %v1833, 1.0
      %v2031 = vlog2.pop %v2030
      %v2032 = vmul.f32 %v2031, 0.6931472
      %v2033 = vmul.f32 -0.5, %v1833
      %v2034 = vadd.f32 %v2033, 1.0
      %v2035 = vmul.f32 %v2034, %v1833
      %v2036 = vand.u32 2147483647, %v1833
      %vm2037 = vcmp.lt.f32.partialorder %v2036, 0.0004427343
      %v2038 = vsel %vm2037, %v2035, %v2032
      %v2039 = vadd.f32 %v1835, 1.0
      %v2040 = vlog2.pop %v2039
      %v2041 = vmul.f32 %v2040, 0.6931472
      %v2042 = vmul.f32 -0.5, %v1835
      %v2043 = vadd.f32 %v2042, 1.0
      %v2044 = vmul.f32 %v2043, %v1835
      %v2045 = vand.u32 2147483647, %v1835
      %vm2046 = vcmp.lt.f32.partialorder %v2045, 0.0004427343
      %v2047 = vsel %vm2046, %v2044, %v2041
      %v2048 = vadd.f32 %v1837, 1.0
      %v2049 = vlog2.pop %v2048
      %v2050 = vmul.f32 %v2049, 0.6931472
      %v2051 = vmul.f32 -0.5, %v1837
      %v2052 = vadd.f32 %v2051, 1.0
      %v2053 = vmul.f32 %v2052, %v1837
      %v2054 = vand.u32 2147483647, %v1837
      %vm2055 = vcmp.lt.f32.partialorder %v2054, 0.0004427343
      %v2056 = vsel %vm2055, %v2053, %v2050
      %v2057 = vadd.f32 %v1839, 1.0
      %v2058 = vlog2.pop %v2057
      %v2059 = vmul.f32 %v2058, 0.6931472
      %v2060 = vmul.f32 -0.5, %v1839
      %v2061 = vadd.f32 %v2060, 1.0
      %v2062 = vmul.f32 %v2061, %v1839
      %v2063 = vand.u32 2147483647, %v1839
      %vm2064 = vcmp.lt.f32.partialorder %v2063, 0.0004427343
      %v2065 = vsel %vm2064, %v2062, %v2059
      %v2066 = vadd.f32 %v1841, 1.0
      %v2067 = vlog2.pop %v2066
      %v2068 = vmul.f32 %v2067, 0.6931472
      %v2069 = vmul.f32 -0.5, %v1841
      %v2070 = vadd.f32 %v2069, 1.0
      %v2071 = vmul.f32 %v2070, %v1841
      %v2072 = vand.u32 2147483647, %v1841
      %vm2073 = vcmp.lt.f32.partialorder %v2072, 0.0004427343
      %v2074 = vsel %vm2073, %v2071, %v2068
      %v2075 = vadd.f32 %v1843, 1.0
      %v2076 = vlog2.pop %v2075
      %v2077 = vmul.f32 %v2076, 0.6931472
      %v2078 = vmul.f32 -0.5, %v1843
      %v2079 = vadd.f32 %v2078, 1.0
      %v2080 = vmul.f32 %v2079, %v1843
      %v2081 = vand.u32 2147483647, %v1843
      %vm2082 = vcmp.lt.f32.partialorder %v2081, 0.0004427343
      %v2083 = vsel %vm2082, %v2080, %v2077
      %v2084 = vadd.f32 %v1845, 1.0
      %v2085 = vlog2.pop %v2084
      %v2086 = vmul.f32 %v2085, 0.6931472
      %v2087 = vmul.f32 -0.5, %v1845
      %v2088 = vadd.f32 %v2087, 1.0
      %v2089 = vmul.f32 %v2088, %v1845
      %v2090 = vand.u32 2147483647, %v1845
      %vm2091 = vcmp.lt.f32.partialorder %v2090, 0.0004427343
      %v2092 = vsel %vm2091, %v2089, %v2086
      %v2093 = vadd.f32 %v1847, 1.0
      %v2094 = vlog2.pop %v2093
      %v2095 = vmul.f32 %v2094, 0.6931472
      %v2096 = vmul.f32 -0.5, %v1847
      %v2097 = vadd.f32 %v2096, 1.0
      %v2098 = vmul.f32 %v2097, %v1847
      %v2099 = vand.u32 2147483647, %v1847
      %vm2100 = vcmp.lt.f32.partialorder %v2099, 0.0004427343
      %v2101 = vsel %vm2100, %v2098, %v2095
      %v2102 = vadd.f32 %v1849, 1.0
      %v2103 = vlog2.pop %v2102
      %v2104 = vmul.f32 %v2103, 0.6931472
      %v2105 = vmul.f32 -0.5, %v1849
      %v2106 = vadd.f32 %v2105, 1.0
      %v2107 = vmul.f32 %v2106, %v1849
      %v2108 = vand.u32 2147483647, %v1849
      %vm2109 = vcmp.lt.f32.partialorder %v2108, 0.0004427343
      %v2110 = vsel %vm2109, %v2107, %v2104
      %v2111 = vadd.f32 %v1851, 1.0
      %v2112 = vlog2.pop %v2111
      %v2113 = vmul.f32 %v2112, 0.6931472
      %v2114 = vmul.f32 -0.5, %v1851
      %v2115 = vadd.f32 %v2114, 1.0
      %v2116 = vmul.f32 %v2115, %v1851
      %v2117 = vand.u32 2147483647, %v1851
      %vm2118 = vcmp.lt.f32.partialorder %v2117, 0.0004427343
      %v2119 = vsel %vm2118, %v2116, %v2113
      %v2120 = vadd.f32 %v1853, 1.0
      %v2121 = vlog2.pop %v2120
      %v2122 = vmul.f32 %v2121, 0.6931472
      %v2123 = vmul.f32 -0.5, %v1853
      %v2124 = vadd.f32 %v2123, 1.0
      %v2125 = vmul.f32 %v2124, %v1853
      %v2126 = vand.u32 2147483647, %v1853
      %vm2127 = vcmp.lt.f32.partialorder %v2126, 0.0004427343
      %v2128 = vsel %vm2127, %v2125, %v2122
      %v2129 = vadd.f32 %v1855, 1.0
      %v2130 = vlog2.pop %v2129
      %v2131 = vmul.f32 %v2130, 0.6931472
      %v2132 = vmul.f32 -0.5, %v1855
      %v2133 = vadd.f32 %v2132, 1.0
      %v2134 = vmul.f32 %v2133, %v1855
      %v2135 = vand.u32 2147483647, %v1855
      %vm2136 = vcmp.lt.f32.partialorder %v2135, 0.0004427343
      %v2137 = vsel %vm2136, %v2134, %v2131
      %v2138 = vadd.f32 %v1857, 1.0
      %v2139 = vlog2.pop %v2138
      %v2140 = vmul.f32 %v2139, 0.6931472
      %v2141 = vmul.f32 -0.5, %v1857
      %v2142 = vadd.f32 %v2141, 1.0
      %v2143 = vmul.f32 %v2142, %v1857
      %v2144 = vand.u32 2147483647, %v1857
      %vm2145 = vcmp.lt.f32.partialorder %v2144, 0.0004427343
      %v2146 = vsel %vm2145, %v2143, %v2140
      %v2147 = vadd.f32 %v1859, 1.0
      %v2148 = vlog2.pop %v2147
      %v2149 = vmul.f32 %v2148, 0.6931472
      %v2150 = vmul.f32 -0.5, %v1859
      %v2151 = vadd.f32 %v2150, 1.0
      %v2152 = vmul.f32 %v2151, %v1859
      %v2153 = vand.u32 2147483647, %v1859
      %vm2154 = vcmp.lt.f32.partialorder %v2153, 0.0004427343
      %v2155 = vsel %vm2154, %v2152, %v2149
      %v2156 = vadd.f32 %v1861, 1.0
      %v2157 = vlog2.pop %v2156
      %v2158 = vmul.f32 %v2157, 0.6931472
      %v2159 = vmul.f32 -0.5, %v1861
      %v2160 = vadd.f32 %v2159, 1.0
      %v2161 = vmul.f32 %v2160, %v1861
      %v2162 = vand.u32 2147483647, %v1861
      %vm2163 = vcmp.lt.f32.partialorder %v2162, 0.0004427343
      %v2164 = vsel %vm2163, %v2161, %v2158
      %v2165 = vadd.f32 %v1863, 1.0
      %v2166 = vlog2.pop %v2165
      %v2167 = vmul.f32 %v2166, 0.6931472
      %v2168 = vmul.f32 -0.5, %v1863
      %v2169 = vadd.f32 %v2168, 1.0
      %v2170 = vmul.f32 %v2169, %v1863
      %v2171 = vand.u32 2147483647, %v1863
      %vm2172 = vcmp.lt.f32.partialorder %v2171, 0.0004427343
      %v2173 = vsel %vm2172, %v2170, %v2167
      %v2174 = vadd.f32 %v1865, 1.0
      %v2175 = vlog2.pop %v2174
      %v2176 = vmul.f32 %v2175, 0.6931472
      %v2177 = vmul.f32 -0.5, %v1865
      %v2178 = vadd.f32 %v2177, 1.0
      %v2179 = vmul.f32 %v2178, %v1865
      %v2180 = vand.u32 2147483647, %v1865
      %vm2181 = vcmp.lt.f32.partialorder %v2180, 0.0004427343
      %v2182 = vsel %vm2181, %v2179, %v2176
      %v2183 = vadd.f32 %v1867, 1.0
      %v2184 = vlog2.pop %v2183
      %v2185 = vmul.f32 %v2184, 0.6931472
      %v2186 = vmul.f32 -0.5, %v1867
      %v2187 = vadd.f32 %v2186, 1.0
      %v2188 = vmul.f32 %v2187, %v1867
      %v2189 = vand.u32 2147483647, %v1867
      %vm2190 = vcmp.lt.f32.partialorder %v2189, 0.0004427343
      %v2191 = vsel %vm2190, %v2188, %v2185
      %v2192 = vadd.f32 %v1869, 1.0
      %v2193 = vlog2.pop %v2192
      %v2194 = vmul.f32 %v2193, 0.6931472
      %v2195 = vmul.f32 -0.5, %v1869
      %v2196 = vadd.f32 %v2195, 1.0
      %v2197 = vmul.f32 %v2196, %v1869
      %v2198 = vand.u32 2147483647, %v1869
      %vm2199 = vcmp.lt.f32.partialorder %v2198, 0.0004427343
      %v2200 = vsel %vm2199, %v2197, %v2194
      %v2201 = vadd.f32 %v1871, 1.0
      %v2202 = vlog2.pop %v2201
      %v2203 = vmul.f32 %v2202, 0.6931472
      %v2204 = vmul.f32 -0.5, %v1871
      %v2205 = vadd.f32 %v2204, 1.0
      %v2206 = vmul.f32 %v2205, %v1871
      %v2207 = vand.u32 2147483647, %v1871
      %vm2208 = vcmp.lt.f32.partialorder %v2207, 0.0004427343
      %v2209 = vsel %vm2208, %v2206, %v2203
      %v2210 = vadd.f32 %v1873, 1.0
      %v2211 = vlog2.pop %v2210
      %v2212 = vmul.f32 %v2211, 0.6931472
      %v2213 = vmul.f32 -0.5, %v1873
      %v2214 = vadd.f32 %v2213, 1.0
      %v2215 = vmul.f32 %v2214, %v1873
      %v2216 = vand.u32 2147483647, %v1873
      %vm2217 = vcmp.lt.f32.partialorder %v2216, 0.0004427343
      %v2218 = vsel %vm2217, %v2215, %v2212
      %v2219 = vadd.f32 %v1875, 1.0
      %v2220 = vlog2.pop %v2219
      %v2221 = vmul.f32 %v2220, 0.6931472
      %v2222 = vmul.f32 -0.5, %v1875
      %v2223 = vadd.f32 %v2222, 1.0
      %v2224 = vmul.f32 %v2223, %v1875
      %v2225 = vand.u32 2147483647, %v1875
      %vm2226 = vcmp.lt.f32.partialorder %v2225, 0.0004427343
      %v2227 = vsel %vm2226, %v2224, %v2221
      %v2228 = vadd.f32 %v1877, 1.0
      %v2229 = vlog2.pop %v2228
      %v2230 = vmul.f32 %v2229, 0.6931472
      %v2231 = vmul.f32 -0.5, %v1877
      %v2232 = vadd.f32 %v2231, 1.0
      %v2233 = vmul.f32 %v2232, %v1877
      %v2234 = vand.u32 2147483647, %v1877
      %vm2235 = vcmp.lt.f32.partialorder %v2234, 0.0004427343
      %v2236 = vsel %vm2235, %v2233, %v2230
      %v2237 = vadd.f32 %v1879, 1.0
      %v2238 = vlog2.pop %v2237
      %v2239 = vmul.f32 %v2238, 0.6931472
      %v2240 = vmul.f32 -0.5, %v1879
      %v2241 = vadd.f32 %v2240, 1.0
      %v2242 = vmul.f32 %v2241, %v1879
      %v2243 = vand.u32 2147483647, %v1879
      %vm2244 = vcmp.lt.f32.partialorder %v2243, 0.0004427343
      %v2245 = vsel %vm2244, %v2242, %v2239
      %v2246 = vadd.f32 %v1881, 1.0
      %v2247 = vlog2.pop %v2246
      %v2248 = vmul.f32 %v2247, 0.6931472
      %v2249 = vmul.f32 -0.5, %v1881
      %v2250 = vadd.f32 %v2249, 1.0
      %v2251 = vmul.f32 %v2250, %v1881
      %v2252 = vand.u32 2147483647, %v1881
      %vm2253 = vcmp.lt.f32.partialorder %v2252, 0.0004427343
      %v2254 = vsel %vm2253, %v2251, %v2248
      %v2255 = vadd.f32 %v1883, 1.0
      %v2256 = vlog2.pop %v2255
      %v2257 = vmul.f32 %v2256, 0.6931472
      %v2258 = vmul.f32 -0.5, %v1883
      %v2259 = vadd.f32 %v2258, 1.0
      %v2260 = vmul.f32 %v2259, %v1883
      %v2261 = vand.u32 2147483647, %v1883
      %vm2262 = vcmp.lt.f32.partialorder %v2261, 0.0004427343
      %v2263 = vsel %vm2262, %v2260, %v2257
      %v2264 = vadd.f32 %v1885, 1.0
      %v2265 = vlog2.pop %v2264
      %v2266 = vmul.f32 %v2265, 0.6931472
      %v2267 = vmul.f32 -0.5, %v1885
      %v2268 = vadd.f32 %v2267, 1.0
      %v2269 = vmul.f32 %v2268, %v1885
      %v2270 = vand.u32 2147483647, %v1885
      %vm2271 = vcmp.lt.f32.partialorder %v2270, 0.0004427343
      %v2272 = vsel %vm2271, %v2269, %v2266
      %v2273 = vadd.f32 %v1887, 1.0
      %v2274 = vlog2.pop %v2273
      %v2275 = vmul.f32 %v2274, 0.6931472
      %v2276 = vmul.f32 -0.5, %v1887
      %v2277 = vadd.f32 %v2276, 1.0
      %v2278 = vmul.f32 %v2277, %v1887
      %v2279 = vand.u32 2147483647, %v1887
      %vm2280 = vcmp.lt.f32.partialorder %v2279, 0.0004427343
      %v2281 = vsel %vm2280, %v2278, %v2275
      %v2282 = vadd.f32 %v1889, 1.0
      %v2283 = vlog2.pop %v2282
      %v2284 = vmul.f32 %v2283, 0.6931472
      %v2285 = vmul.f32 -0.5, %v1889
      %v2286 = vadd.f32 %v2285, 1.0
      %v2287 = vmul.f32 %v2286, %v1889
      %v2288 = vand.u32 2147483647, %v1889
      %vm2289 = vcmp.lt.f32.partialorder %v2288, 0.0004427343
      %v2290 = vsel %vm2289, %v2287, %v2284
      %v2291 = vadd.f32 %v1891, 1.0
      %v2292 = vlog2.pop %v2291
      %v2293 = vmul.f32 %v2292, 0.6931472
      %v2294 = vmul.f32 -0.5, %v1891
      %v2295 = vadd.f32 %v2294, 1.0
      %v2296 = vmul.f32 %v2295, %v1891
      %v2297 = vand.u32 2147483647, %v1891
      %vm2298 = vcmp.lt.f32.partialorder %v2297, 0.0004427343
      %v2299 = vsel %vm2298, %v2296, %v2293
      %v2300 = vadd.f32 %v1893, 1.0
      %v2301 = vlog2.pop %v2300
      %v2302 = vmul.f32 %v2301, 0.6931472
      %v2303 = vmul.f32 -0.5, %v1893
      %v2304 = vadd.f32 %v2303, 1.0
      %v2305 = vmul.f32 %v2304, %v1893
      %v2306 = vand.u32 2147483647, %v1893
      %vm2307 = vcmp.lt.f32.partialorder %v2306, 0.0004427343
      %v2308 = vsel %vm2307, %v2305, %v2302
      %v2309 = vadd.f32 %v1895, 1.0
      %v2310 = vlog2.pop %v2309
      %v2311 = vmul.f32 %v2310, 0.6931472
      %v2312 = vmul.f32 -0.5, %v1895
      %v2313 = vadd.f32 %v2312, 1.0
      %v2314 = vmul.f32 %v2313, %v1895
      %v2315 = vand.u32 2147483647, %v1895
      %vm2316 = vcmp.lt.f32.partialorder %v2315, 0.0004427343
      %v2317 = vsel %vm2316, %v2314, %v2311
      %v2318 = vadd.f32 %v1897, 1.0
      %v2319 = vlog2.pop %v2318
      %v2320 = vmul.f32 %v2319, 0.6931472
      %v2321 = vmul.f32 -0.5, %v1897
      %v2322 = vadd.f32 %v2321, 1.0
      %v2323 = vmul.f32 %v2322, %v1897
      %v2324 = vand.u32 2147483647, %v1897
      %vm2325 = vcmp.lt.f32.partialorder %v2324, 0.0004427343
      %v2326 = vsel %vm2325, %v2323, %v2320
      %v2327 = vadd.f32 %v1899, 1.0
      %v2328 = vlog2.pop %v2327
      %v2329 = vmul.f32 %v2328, 0.6931472
      %v2330 = vmul.f32 -0.5, %v1899
      %v2331 = vadd.f32 %v2330, 1.0
      %v2332 = vmul.f32 %v2331, %v1899
      %v2333 = vand.u32 2147483647, %v1899
      %vm2334 = vcmp.lt.f32.partialorder %v2333, 0.0004427343
      %v2335 = vsel %vm2334, %v2332, %v2329
      %v2336 = vadd.f32 %v1901, 1.0
      %v2337 = vlog2.pop %v2336
      %v2338 = vmul.f32 %v2337, 0.6931472
      %v2339 = vmul.f32 -0.5, %v1901
      %v2340 = vadd.f32 %v2339, 1.0
      %v2341 = vmul.f32 %v2340, %v1901
      %v2342 = vand.u32 2147483647, %v1901
      %vm2343 = vcmp.lt.f32.partialorder %v2342, 0.0004427343
      %v2344 = vsel %vm2343, %v2341, %v2338
      %v2345 = vadd.f32 %v1903, 1.0
      %v2346 = vlog2.pop %v2345
      %v2347 = vmul.f32 %v2346, 0.6931472
      %v2348 = vmul.f32 -0.5, %v1903
      %v2349 = vadd.f32 %v2348, 1.0
      %v2350 = vmul.f32 %v2349, %v1903
      %v2351 = vand.u32 2147483647, %v1903
      %vm2352 = vcmp.lt.f32.partialorder %v2351, 0.0004427343
      %v2353 = vsel %vm2352, %v2350, %v2347
      %v2354 = vadd.f32 %v1905, 1.0
      %v2355 = vlog2.pop %v2354
      %v2356 = vmul.f32 %v2355, 0.6931472
      %v2357 = vmul.f32 -0.5, %v1905
      %v2358 = vadd.f32 %v2357, 1.0
      %v2359 = vmul.f32 %v2358, %v1905
      %v2360 = vand.u32 2147483647, %v1905
      %vm2361 = vcmp.lt.f32.partialorder %v2360, 0.0004427343
      %v2362 = vsel %vm2361, %v2359, %v2356
      %v2363 = vadd.f32 %v1907, 1.0
      %v2364 = vlog2.pop %v2363
      %v2365 = vmul.f32 %v2364, 0.6931472
      %v2366 = vmul.f32 -0.5, %v1907
      %v2367 = vadd.f32 %v2366, 1.0
      %v2368 = vmul.f32 %v2367, %v1907
      %v2369 = vand.u32 2147483647, %v1907
      %vm2370 = vcmp.lt.f32.partialorder %v2369, 0.0004427343
      %v2371 = vsel %vm2370, %v2368, %v2365
      %v2372 = vadd.f32 %v1909, 1.0
      %v2373 = vlog2.pop %v2372
      %v2374 = vmul.f32 %v2373, 0.6931472
      %v2375 = vmul.f32 -0.5, %v1909
      %v2376 = vadd.f32 %v2375, 1.0
      %v2377 = vmul.f32 %v2376, %v1909
      %v2378 = vand.u32 2147483647, %v1909
      %vm2379 = vcmp.lt.f32.partialorder %v2378, 0.0004427343
      %v2380 = vsel %vm2379, %v2377, %v2374
      %v2381 = vadd.f32 %v1911, 1.0
      %v2382 = vlog2.pop %v2381
      %v2383 = vmul.f32 %v2382, 0.6931472
      %v2384 = vmul.f32 -0.5, %v1911
      %v2385 = vadd.f32 %v2384, 1.0
      %v2386 = vmul.f32 %v2385, %v1911
      %v2387 = vand.u32 2147483647, %v1911
      %vm2388 = vcmp.lt.f32.partialorder %v2387, 0.0004427343
      %v2389 = vsel %vm2388, %v2386, %v2383
      %v2390 = vadd.f32 %v1913, 1.0
      %v2391 = vlog2.pop %v2390
      %v2392 = vmul.f32 %v2391, 0.6931472
      %v2393 = vmul.f32 -0.5, %v1913
      %v2394 = vadd.f32 %v2393, 1.0
      %v2395 = vmul.f32 %v2394, %v1913
      %v2396 = vand.u32 2147483647, %v1913
      %vm2397 = vcmp.lt.f32.partialorder %v2396, 0.0004427343
      %v2398 = vsel %vm2397, %v2395, %v2392
      %v2399 = vadd.f32 %v1915, 1.0
      %v2400 = vlog2.pop %v2399
      %v2401 = vmul.f32 %v2400, 0.6931472
      %v2402 = vmul.f32 -0.5, %v1915
      %v2403 = vadd.f32 %v2402, 1.0
      %v2404 = vmul.f32 %v2403, %v1915
      %v2405 = vand.u32 2147483647, %v1915
      %vm2406 = vcmp.lt.f32.partialorder %v2405, 0.0004427343
      %v2407 = vsel %vm2406, %v2404, %v2401
      %v2408 = vadd.f32 %v1917, 1.0
      %v2409 = vlog2.pop %v2408
      %v2410 = vmul.f32 %v2409, 0.6931472
      %v2411 = vmul.f32 -0.5, %v1917
      %v2412 = vadd.f32 %v2411, 1.0
      %v2413 = vmul.f32 %v2412, %v1917
      %v2414 = vand.u32 2147483647, %v1917
      %vm2415 = vcmp.lt.f32.partialorder %v2414, 0.0004427343
      %v2416 = vsel %vm2415, %v2413, %v2410
      %v2417 = vadd.f32 %v1919, 1.0
      %v2418 = vlog2.pop %v2417
      %v2419 = vmul.f32 %v2418, 0.6931472
      %v2420 = vmul.f32 -0.5, %v1919
      %v2421 = vadd.f32 %v2420, 1.0
      %v2422 = vmul.f32 %v2421, %v1919
      %v2423 = vand.u32 2147483647, %v1919
      %vm2424 = vcmp.lt.f32.partialorder %v2423, 0.0004427343
      %v2425 = vsel %vm2424, %v2422, %v2419
      %v2426 = vadd.f32 %v1921, 1.0
      %v2427 = vlog2.pop %v2426
      %v2428 = vmul.f32 %v2427, 0.6931472
      %v2429 = vmul.f32 -0.5, %v1921
      %v2430 = vadd.f32 %v2429, 1.0
      %v2431 = vmul.f32 %v2430, %v1921
      %v2432 = vand.u32 2147483647, %v1921
      %vm2433 = vcmp.lt.f32.partialorder %v2432, 0.0004427343
      %v2434 = vsel %vm2433, %v2431, %v2428
      %v2435 = vadd.f32 %v1923, 1.0
      %v2436 = vlog2.pop %v2435
      %v2437 = vmul.f32 %v2436, 0.6931472
      %v2438 = vmul.f32 -0.5, %v1923
      %v2439 = vadd.f32 %v2438, 1.0
      %v2440 = vmul.f32 %v2439, %v1923
      %v2441 = vand.u32 2147483647, %v1923
      %vm2442 = vcmp.lt.f32.partialorder %v2441, 0.0004427343
      %v2443 = vsel %vm2442, %v2440, %v2437
      %v2444 = vadd.f32 %v1925, 1.0
      %v2445 = vlog2.pop %v2444
      %v2446 = vmul.f32 %v2445, 0.6931472
      %v2447 = vmul.f32 -0.5, %v1925
      %v2448 = vadd.f32 %v2447, 1.0
      %v2449 = vmul.f32 %v2448, %v1925
      %v2450 = vand.u32 2147483647, %v1925
      %vm2451 = vcmp.lt.f32.partialorder %v2450, 0.0004427343
      %v2452 = vsel %vm2451, %v2449, %v2446
      %v2453 = vadd.f32 %v1927, 1.0
      %v2454 = vlog2.pop %v2453
      %v2455 = vmul.f32 %v2454, 0.6931472
      %v2456 = vmul.f32 -0.5, %v1927
      %v2457 = vadd.f32 %v2456, 1.0
      %v2458 = vmul.f32 %v2457, %v1927
      %v2459 = vand.u32 2147483647, %v1927
      %vm2460 = vcmp.lt.f32.partialorder %v2459, 0.0004427343
      %v2461 = vsel %vm2460, %v2458, %v2455
      %v2462 = vadd.f32 %v1929, 1.0
      %v2463 = vlog2.pop %v2462
      %v2464 = vmul.f32 %v2463, 0.6931472
      %v2465 = vmul.f32 -0.5, %v1929
      %v2466 = vadd.f32 %v2465, 1.0
      %v2467 = vmul.f32 %v2466, %v1929
      %v2468 = vand.u32 2147483647, %v1929
      %vm2469 = vcmp.lt.f32.partialorder %v2468, 0.0004427343
      %v2470 = vsel %vm2469, %v2467, %v2464
      %v2471 = vadd.f32 %v1931, 1.0
      %v2472 = vlog2.pop %v2471
      %v2473 = vmul.f32 %v2472, 0.6931472
      %v2474 = vmul.f32 -0.5, %v1931
      %v2475 = vadd.f32 %v2474, 1.0
      %v2476 = vmul.f32 %v2475, %v1931
      %v2477 = vand.u32 2147483647, %v1931
      %vm2478 = vcmp.lt.f32.partialorder %v2477, 0.0004427343
      %v2479 = vsel %vm2478, %v2476, %v2473
      %v2480 = vadd.f32 %v1933, 1.0
      %v2481 = vlog2.pop %v2480
      %v2482 = vmul.f32 %v2481, 0.6931472
      %v2483 = vmul.f32 -0.5, %v1933
      %v2484 = vadd.f32 %v2483, 1.0
      %v2485 = vmul.f32 %v2484, %v1933
      %v2486 = vand.u32 2147483647, %v1933
      %vm2487 = vcmp.lt.f32.partialorder %v2486, 0.0004427343
      %v2488 = vsel %vm2487, %v2485, %v2482
      %v2489 = vadd.f32 %v1935, 1.0
      %v2490 = vlog2.pop %v2489
      %v2491 = vmul.f32 %v2490, 0.6931472
      %v2492 = vmul.f32 -0.5, %v1935
      %v2493 = vadd.f32 %v2492, 1.0
      %v2494 = vmul.f32 %v2493, %v1935
      %v2495 = vand.u32 2147483647, %v1935
      %vm2496 = vcmp.lt.f32.partialorder %v2495, 0.0004427343
      %v2497 = vsel %vm2496, %v2494, %v2491
      %v2498 = vadd.f32 %v1937, 1.0
      %v2499 = vlog2.pop %v2498
      %v2500 = vmul.f32 %v2499, 0.6931472
      %v2501 = vmul.f32 -0.5, %v1937
      %v2502 = vadd.f32 %v2501, 1.0
      %v2503 = vmul.f32 %v2502, %v1937
      %v2504 = vand.u32 2147483647, %v1937
      %vm2505 = vcmp.lt.f32.partialorder %v2504, 0.0004427343
      %v2506 = vsel %vm2505, %v2503, %v2500
      %v2507 = vadd.f32 %v1939, 1.0
      %v2508 = vlog2.pop %v2507
      %v2509 = vmul.f32 %v2508, 0.6931472
      %v2510 = vmul.f32 -0.5, %v1939
      %v2511 = vadd.f32 %v2510, 1.0
      %v2512 = vmul.f32 %v2511, %v1939
      %v2513 = vand.u32 2147483647, %v1939
      %vm2514 = vcmp.lt.f32.partialorder %v2513, 0.0004427343
      %v2515 = vsel %vm2514, %v2512, %v2509
      %v2516 = vadd.f32 %v1492, %v1948
      %v2517 = vadd.f32 %v1493, %v1957
      %v2518 = vadd.f32 %v1494, %v1966
      %v2519 = vadd.f32 %v1495, %v1975
      %v2520 = vadd.f32 %v1496, %v1984
      %v2521 = vadd.f32 %v1497, %v1993
      %v2522 = vadd.f32 %v1498, %v2002
      %v2523 = vadd.f32 %v1499, %v2011
      %v2524 = vadd.f32 %v1500, %v2020
      %v2525 = vadd.f32 %v1501, %v2029
      %v2526 = vadd.f32 %v1502, %v2038
      %v2527 = vadd.f32 %v1503, %v2047
      %v2528 = vadd.f32 %v1504, %v2056
      %v2529 = vadd.f32 %v1505, %v2065
      %v2530 = vadd.f32 %v1506, %v2074
      %v2531 = vadd.f32 %v1507, %v2083
      %v2532 = vadd.f32 %v1508, %v2092
      %v2533 = vadd.f32 %v1509, %v2101
      %v2534 = vadd.f32 %v1510, %v2110
      %v2535 = vadd.f32 %v1511, %v2119
      %v2536 = vadd.f32 %v1512, %v2128
      %v2537 = vadd.f32 %v1513, %v2137
      %v2538 = vadd.f32 %v1514, %v2146
      %v2539 = vadd.f32 %v1515, %v2155
      %v2540 = vadd.f32 %v1516, %v2164
      %v2541 = vadd.f32 %v1517, %v2173
      %v2542 = vadd.f32 %v1518, %v2182
      %v2543 = vadd.f32 %v1519, %v2191
      %v2544 = vadd.f32 %v1520, %v2200
      %v2545 = vadd.f32 %v1521, %v2209
      %v2546 = vadd.f32 %v1522, %v2218
      %v2547 = vadd.f32 %v1523, %v2227
      %v2548 = vadd.f32 %v1524, %v2236
      %v2549 = vadd.f32 %v1525, %v2245
      %v2550 = vadd.f32 %v1526, %v2254
      %v2551 = vadd.f32 %v1527, %v2263
      %v2552 = vadd.f32 %v1528, %v2272
      %v2553 = vadd.f32 %v1529, %v2281
      %v2554 = vadd.f32 %v1530, %v2290
      %v2555 = vadd.f32 %v1531, %v2299
      %v2556 = vadd.f32 %v1532, %v2308
      %v2557 = vadd.f32 %v1533, %v2317
      %v2558 = vadd.f32 %v1534, %v2326
      %v2559 = vadd.f32 %v1535, %v2335
      %v2560 = vadd.f32 %v1536, %v2344
      %v2561 = vadd.f32 %v1537, %v2353
      %v2562 = vadd.f32 %v1538, %v2362
      %v2563 = vadd.f32 %v1539, %v2371
      %v2564 = vadd.f32 %v1540, %v2380
      %v2565 = vadd.f32 %v1541, %v2389
      %v2566 = vadd.f32 %v1542, %v2398
      %v2567 = vadd.f32 %v1543, %v2407
      %v2568 = vadd.f32 %v1544, %v2416
      %v2569 = vadd.f32 %v1545, %v2425
      %v2570 = vadd.f32 %v1546, %v2434
      %v2571 = vadd.f32 %v1547, %v2443
      %v2572 = vadd.f32 %v1548, %v2452
      %v2573 = vadd.f32 %v1549, %v2461
      %v2574 = vadd.f32 %v1550, %v2470
      %v2575 = vadd.f32 %v1551, %v2479
      %v2576 = vadd.f32 %v1552, %v2488
      %v2577 = vadd.f32 %v1553, %v2497
      %v2578 = vadd.f32 %v1554, %v2506
      %v2579 = vadd.f32 %v1555, %v2515
      %v2580 = vsel %vm1556, %v1620, %v2516
      %v2581 = vsel %vm1557, %v1621, %v2517
      %v2582 = vsel %vm1558, %v1622, %v2518
      %v2583 = vsel %vm1559, %v1623, %v2519
      %v2584 = vsel %vm1560, %v1624, %v2520
      %v2585 = vsel %vm1561, %v1625, %v2521
      %v2586 = vsel %vm1562, %v1626, %v2522
      %v2587 = vsel %vm1563, %v1627, %v2523
      %v2588 = vsel %vm1564, %v1628, %v2524
      %v2589 = vsel %vm1565, %v1629, %v2525
      %v2590 = vsel %vm1566, %v1630, %v2526
      %v2591 = vsel %vm1567, %v1631, %v2527
      %v2592 = vsel %vm1568, %v1632, %v2528
      %v2593 = vsel %vm1569, %v1633, %v2529
      %v2594 = vsel %vm1570, %v1634, %v2530
      %v2595 = vsel %vm1571, %v1635, %v2531
      %v2596 = vsel %vm1572, %v1636, %v2532
      %v2597 = vsel %vm1573, %v1637, %v2533
      %v2598 = vsel %vm1574, %v1638, %v2534
      %v2599 = vsel %vm1575, %v1639, %v2535
      %v2600 = vsel %vm1576, %v1640, %v2536
      %v2601 = vsel %vm1577, %v1641, %v2537
      %v2602 = vsel %vm1578, %v1642, %v2538
      %v2603 = vsel %vm1579, %v1643, %v2539
      %v2604 = vsel %vm1580, %v1644, %v2540
      %v2605 = vsel %vm1581, %v1645, %v2541
      %v2606 = vsel %vm1582, %v1646, %v2542
      %v2607 = vsel %vm1583, %v1647, %v2543
      %v2608 = vsel %vm1584, %v1648, %v2544
      %v2609 = vsel %vm1585, %v1649, %v2545
      %v2610 = vsel %vm1586, %v1650, %v2546
      %v2611 = vsel %vm1587, %v1651, %v2547
      %v2612 = vsel %vm1588, %v1652, %v2548
      %v2613 = vsel %vm1589, %v1653, %v2549
      %v2614 = vsel %vm1590, %v1654, %v2550
      %v2615 = vsel %vm1591, %v1655, %v2551
      %v2616 = vsel %vm1592, %v1656, %v2552
      %v2617 = vsel %vm1593, %v1657, %v2553
      %v2618 = vsel %vm1594, %v1658, %v2554
      %v2619 = vsel %vm1595, %v1659, %v2555
      %v2620 = vsel %vm1596, %v1660, %v2556
      %v2621 = vsel %vm1597, %v1661, %v2557
      %v2622 = vsel %vm1598, %v1662, %v2558
      %v2623 = vsel %vm1599, %v1663, %v2559
      %v2624 = vsel %vm1600, %v1664, %v2560
      %v2625 = vsel %vm1601, %v1665, %v2561
      %v2626 = vsel %vm1602, %v1666, %v2562
      %v2627 = vsel %vm1603, %v1667, %v2563
      %v2628 = vsel %vm1604, %v1668, %v2564
      %v2629 = vsel %vm1605, %v1669, %v2565
      %v2630 = vsel %vm1606, %v1670, %v2566
      %v2631 = vsel %vm1607, %v1671, %v2567
      %v2632 = vsel %vm1608, %v1672, %v2568
      %v2633 = vsel %vm1609, %v1673, %v2569
      %v2634 = vsel %vm1610, %v1674, %v2570
      %v2635 = vsel %vm1611, %v1675, %v2571
      %v2636 = vsel %vm1612, %v1676, %v2572
      %v2637 = vsel %vm1613, %v1677, %v2573
      %v2638 = vsel %vm1614, %v1678, %v2574
      %v2639 = vsel %vm1615, %v1679, %v2575
      %v2640 = vsel %vm1616, %v1680, %v2576
      %v2641 = vsel %vm1617, %v1681, %v2577
      %v2642 = vsel %vm1618, %v1682, %v2578
      %v2643 = vsel %vm1619, %v1683, %v2579
      %v2644 = vsub.f32 %v2580, 0.6931472
      %v2645 = vsub.f32 %v2581, 0.6931472
      %v2646 = vsub.f32 %v2582, 0.6931472
      %v2647 = vsub.f32 %v2583, 0.6931472
      %v2648 = vsub.f32 %v2584, 0.6931472
      %v2649 = vsub.f32 %v2585, 0.6931472
      %v2650 = vsub.f32 %v2586, 0.6931472
      %v2651 = vsub.f32 %v2587, 0.6931472
      %v2652 = vsub.f32 %v2588, 0.6931472
      %v2653 = vsub.f32 %v2589, 0.6931472
      %v2654 = vsub.f32 %v2590, 0.6931472
      %v2655 = vsub.f32 %v2591, 0.6931472
      %v2656 = vsub.f32 %v2592, 0.6931472
      %v2657 = vsub.f32 %v2593, 0.6931472
      %v2658 = vsub.f32 %v2594, 0.6931472
      %v2659 = vsub.f32 %v2595, 0.6931472
      %v2660 = vsub.f32 %v2596, 0.6931472
      %v2661 = vsub.f32 %v2597, 0.6931472
      %v2662 = vsub.f32 %v2598, 0.6931472
      %v2663 = vsub.f32 %v2599, 0.6931472
      %v2664 = vsub.f32 %v2600, 0.6931472
      %v2665 = vsub.f32 %v2601, 0.6931472
      %v2666 = vsub.f32 %v2602, 0.6931472
      %v2667 = vsub.f32 %v2603, 0.6931472
      %v2668 = vsub.f32 %v2604, 0.6931472
      %v2669 = vsub.f32 %v2605, 0.6931472
      %v2670 = vsub.f32 %v2606, 0.6931472
      %v2671 = vsub.f32 %v2607, 0.6931472
      %v2672 = vsub.f32 %v2608, 0.6931472
      %v2673 = vsub.f32 %v2609, 0.6931472
      %v2674 = vsub.f32 %v2610, 0.6931472
      %v2675 = vsub.f32 %v2611, 0.6931472
      %v2676 = vsub.f32 %v2612, 0.6931472
      %v2677 = vsub.f32 %v2613, 0.6931472
      %v2678 = vsub.f32 %v2614, 0.6931472
      %v2679 = vsub.f32 %v2615, 0.6931472
      %v2680 = vsub.f32 %v2616, 0.6931472
      %v2681 = vsub.f32 %v2617, 0.6931472
      %v2682 = vsub.f32 %v2618, 0.6931472
      %v2683 = vsub.f32 %v2619, 0.6931472
      %v2684 = vsub.f32 %v2620, 0.6931472
      %v2685 = vsub.f32 %v2621, 0.6931472
      %v2686 = vsub.f32 %v2622, 0.6931472
      %v2687 = vsub.f32 %v2623, 0.6931472
      %v2688 = vsub.f32 %v2624, 0.6931472
      %v2689 = vsub.f32 %v2625, 0.6931472
      %v2690 = vsub.f32 %v2626, 0.6931472
      %v2691 = vsub.f32 %v2627, 0.6931472
      %v2692 = vsub.f32 %v2628, 0.6931472
      %v2693 = vsub.f32 %v2629, 0.6931472
      %v2694 = vsub.f32 %v2630, 0.6931472
      %v2695 = vsub.f32 %v2631, 0.6931472
      %v2696 = vsub.f32 %v2632, 0.6931472
      %v2697 = vsub.f32 %v2633, 0.6931472
      %v2698 = vsub.f32 %v2634, 0.6931472
      %v2699 = vsub.f32 %v2635, 0.6931472
      %v2700 = vsub.f32 %v2636, 0.6931472
      %v2701 = vsub.f32 %v2637, 0.6931472
      %v2702 = vsub.f32 %v2638, 0.6931472
      %v2703 = vsub.f32 %v2639, 0.6931472
      %v2704 = vsub.f32 %v2640, 0.6931472
      %v2705 = vsub.f32 %v2641, 0.6931472
      %v2706 = vsub.f32 %v2642, 0.6931472
      %v2707 = vsub.f32 %v2643, 0.6931472
      %v2708 = vld [vmem:[%s4] sm:$0xff]
      %v2709 = vld [vmem:[%s4 + $0x8] sm:$0xff]
      %vm2710 = vcmask 130048
      %v2712 = vsel %vm2710, %v2644, 0
      %v2715 = vsel %vm2710, %v2645, 0
      %v2718 = vsel %vm2710, %v2646, 0
      %v2721 = vsel %vm2710, %v2647, 0
      %v2724 = vsel %vm2710, %v2648, 0
      %v2727 = vsel %vm2710, %v2649, 0
      %v2730 = vsel %vm2710, %v2650, 0
      %v2733 = vsel %vm2710, %v2651, 0
      %v2736 = vsel %vm2710, %v2652, 0
      %v2739 = vsel %vm2710, %v2653, 0
      %v2742 = vsel %vm2710, %v2654, 0
      %v2745 = vsel %vm2710, %v2655, 0
      %v2748 = vsel %vm2710, %v2656, 0
      %v2751 = vsel %vm2710, %v2657, 0
      %v2754 = vsel %vm2710, %v2658, 0
      %v2757 = vsel %vm2710, %v2659, 0
      %v2760 = vsel %vm2710, %v2660, 0
      %v2763 = vsel %vm2710, %v2661, 0
      %v2766 = vsel %vm2710, %v2662, 0
      %v2769 = vsel %vm2710, %v2663, 0
      %v2772 = vsel %vm2710, %v2664, 0
      %v2775 = vsel %vm2710, %v2665, 0
      %v2778 = vsel %vm2710, %v2666, 0
      %v2781 = vsel %vm2710, %v2667, 0
      %v2784 = vsel %vm2710, %v2668, 0
      %v2787 = vsel %vm2710, %v2669, 0
      %v2790 = vsel %vm2710, %v2670, 0
      %v2793 = vsel %vm2710, %v2671, 0
      %v2796 = vsel %vm2710, %v2672, 0
      %v2799 = vsel %vm2710, %v2673, 0
      %v2802 = vsel %vm2710, %v2674, 0
      %v2805 = vsel %vm2710, %v2675, 0
      %v2808 = vsel %vm2710, %v2676, 0
      %v2811 = vsel %vm2710, %v2677, 0
      %v2814 = vsel %vm2710, %v2678, 0
      %v2817 = vsel %vm2710, %v2679, 0
      %v2820 = vsel %vm2710, %v2680, 0
      %v2823 = vsel %vm2710, %v2681, 0
      %v2826 = vsel %vm2710, %v2682, 0
      %v2829 = vsel %vm2710, %v2683, 0
      %v2832 = vsel %vm2710, %v2684, 0
      %v2835 = vsel %vm2710, %v2685, 0
      %v2838 = vsel %vm2710, %v2686, 0
      %v2841 = vsel %vm2710, %v2687, 0
      %v2844 = vsel %vm2710, %v2688, 0
      %v2847 = vsel %vm2710, %v2689, 0
      %v2850 = vsel %vm2710, %v2690, 0
      %v2853 = vsel %vm2710, %v2691, 0
      %v2856 = vsel %vm2710, %v2692, 0
      %v2859 = vsel %vm2710, %v2693, 0
      %v2862 = vsel %vm2710, %v2694, 0
      %v2865 = vsel %vm2710, %v2695, 0
      %v2868 = vsel %vm2710, %v2696, 0
      %v2871 = vsel %vm2710, %v2697, 0
      %v2874 = vsel %vm2710, %v2698, 0
      %v2877 = vsel %vm2710, %v2699, 0
      %v2880 = vsel %vm2710, %v2700, 0
      %v2883 = vsel %vm2710, %v2701, 0
      %v2886 = vsel %vm2710, %v2702, 0
      %v2889 = vsel %vm2710, %v2703, 0
      %v2892 = vsel %vm2710, %v2704, 0
      %v2895 = vsel %vm2710, %v2705, 0
      %v2898 = vsel %vm2710, %v2706, 0
      %v2901 = vsel %vm2710, %v2707, 0
      %2903 = vmatprep.subr.mxu0 0.0
      %2904 = vmatpush1.msra.mxu0 %v2708
      %2905 = vmatprep.subr.mxu0 0.0
      %2906 = vmatpush1.msra.mxu0 %v2709
      %2907 = vmatprep.subr.mxu0 0.0
      %2908 = vmatpush1.msra.mxu0 0.0
      %2909 = vmatprep.subr.mxu0 0.0
      %2910 = vmatpush1.msra.mxu0 0.0
      %2911 = vmatprep.subr.mxu0 0.0
      %2912 = vmatpush1.msra.mxu0 0.0
      %2913 = vmatprep.subr.mxu0 0.0
      %2914 = vmatpush1.msra.mxu0 0.0
      %2915 = vmatprep.subr.mxu0 0.0
      %2916 = vmatpush1.msra.mxu0 0.0
      %2917 = vmatprep.subr.mxu0 0.0
      %2918 = vmatpush1.msra.mxu0 0.0
      %2919 = vmatprep.subr.mxu0 0.0
      %2920 = vmatpush1.msra.mxu0 0.0
      %2921 = vmatprep.subr.mxu0 0.0
      %2922 = vmatpush1.msra.mxu0 0.0
      %2923 = vmatprep.subr.mxu0 0.0
      %2924 = vmatpush1.msra.mxu0 0.0
      %2925 = vmatprep.subr.mxu0 0.0
      %2926 = vmatpush1.msra.mxu0 0.0
      %2927 = vmatprep.subr.mxu0 0.0
      %2928 = vmatpush1.msra.mxu0 0.0
      %2929 = vmatprep.subr.mxu0 0.0
      %2930 = vmatpush1.msra.mxu0 0.0
      %2931 = vmatprep.subr.mxu0 0.0
      %2932 = vmatpush1.msra.mxu0 0.0
      %2933 = vmatprep.subr.mxu0 0.0
      %2934 = vmatpush1.msra.mxu0 0.0
      %2935 = vmatprep.subr.mxu0 0.0
      %2936 = vmatpush1.msra.mxu0 0.0
      %2937 = vmatprep.subr.mxu0 0.0
      %2938 = vmatpush1.msra.mxu0 0.0
      %2939 = vmatprep.subr.mxu0 0.0
      %2940 = vmatpush1.msra.mxu0 0.0
      %2941 = vmatprep.subr.mxu0 0.0
      %2942 = vmatpush1.msra.mxu0 0.0
      %2943 = vmatprep.subr.mxu0 0.0
      %2944 = vmatpush1.msra.mxu0 0.0
      %2945 = vmatprep.subr.mxu0 0.0
      %2946 = vmatpush1.msra.mxu0 0.0
      %2947 = vmatprep.subr.mxu0 0.0
      %2948 = vmatpush1.msra.mxu0 0.0
      %2949 = vmatprep.subr.mxu0 0.0
      %2950 = vmatpush1.msra.mxu0 0.0
      %2951 = vmatprep.subr.mxu0 0.0
      %2952 = vmatpush1.msra.mxu0 0.0
      %2953 = vmatprep.subr.mxu0 0.0
      %2954 = vmatpush1.msra.mxu0 0.0
      %2955 = vmatprep.subr.mxu0 0.0
      %2956 = vmatpush1.msra.mxu0 0.0
      %2957 = vmatprep.subr.mxu0 0.0
      %2958 = vmatpush1.msra.mxu0 0.0
      %2959 = vmatprep.subr.mxu0 0.0
      %2960 = vmatpush1.msra.mxu0 0.0
      %2961 = vmatprep.subr.mxu0 0.0
      %2962 = vmatpush1.msra.mxu0 0.0
      %2963 = vmatprep.subr.mxu0 0.0
      %2964 = vmatpush1.msra.mxu0 0.0
      %2965 = vmatprep.subr.mxu0 0.0
      %2966 = vmatpush1.msra.mxu0 0.0
      %2967 = vmatprep.mubr.f32.mxu0 0.0
      %2968 = vmatmul.mubr.f32.gmra.mrb[0].mxu0 %v2712
      %v2969 = vpop.f32.mrb[0].mxu0
      %v2970 = vadd.f32 0.0, %v2969
      %v2971 = vpop.f32.mrb[0].mxu0
      %2972 = vmatprep.mubr.f32.mxu0 0.0
      %2973 = vmatmul.mubr.f32.gmra.mrb[0].mxu0 %v2715
      %v2974 = vpop.f32.mrb[0].mxu0
      %v2975 = vadd.f32 0.0, %v2974
      %v2976 = vpop.f32.mrb[0].mxu0
      %2977 = vmatprep.mubr.f32.mxu0 0.0
      %2978 = vmatmul.mubr.f32.gmra.mrb[0].mxu0 %v2718
      %v2979 = vpop.f32.mrb[0].mxu0
      %v2980 = vadd.f32 0.0, %v2979
      %v2981 = vpop.f32.mrb[0].mxu0
      %2982 = vmatprep.mubr.f32.mxu0 0.0
      %2983 = vmatmul.mubr.f32.gmra.mrb[0].mxu0 %v2721
      %v2984 = vpop.f32.mrb[0].mxu0
      %v2985 = vadd.f32 0.0, %v2984
      %v2986 = vpop.f32.mrb[0].mxu0
      %2987 = vmatprep.mubr.f32.mxu0 0.0
      %2988 = vmatmul.mubr.f32.gmra.mrb[0].mxu0 %v2724
      %v2989 = vpop.f32.mrb[0].mxu0
      %v2990 = vadd.f32 0.0, %v2989
      %v2991 = vpop.f32.mrb[0].mxu0
      %2992 = vmatprep.mubr.f32.mxu0 0.0
      %2993 = vmatmul.mubr.f32.gmra.mrb[0].mxu0 %v2727
      %v2994 = vpop.f32.mrb[0].mxu0
      %v2995 = vadd.f32 0.0, %v2994
      %v2996 = vpop.f32.mrb[0].mxu0
      %2997 = vmatprep.mubr.f32.mxu0 0.0
      %2998 = vmatmul.mubr.f32.gmra.mrb[0].mxu0 %v2730
      %v2999 = vpop.f32.mrb[0].mxu0
      %v3000 = vadd.f32 0.0, %v2999
      %v3001 = vpop.f32.mrb[0].mxu0
      %3002 = vmatprep.mubr.f32.mxu0 0.0
      %3003 = vmatmul.mubr.f32.gmra.mrb[0].mxu0 %v2733
      %v3004 = vpop.f32.mrb[0].mxu0
      %v3005 = vadd.f32 0.0, %v3004
      %v3006 = vpop.f32.mrb[0].mxu0
      %3007 = vmatprep.mubr.f32.mxu0 0.0
      %3008 = vmatmul.mubr.f32.gmra.mrb[0].mxu0 %v2736
      %v3009 = vpop.f32.mrb[0].mxu0
      %v3010 = vadd.f32 0.0, %v3009
      %v3011 = vpop.f32.mrb[0].mxu0
      %3012 = vmatprep.mubr.f32.mxu0 0.0
      %3013 = vmatmul.mubr.f32.gmra.mrb[0].mxu0 %v2739
      %v3014 = vpop.f32.mrb[0].mxu0
      %v3015 = vadd.f32 0.0, %v3014
      %v3016 = vpop.f32.mrb[0].mxu0
      %3017 = vmatprep.mubr.f32.mxu0 0.0
      %3018 = vmatmul.mubr.f32.gmra.mrb[0].mxu0 %v2742
      %v3019 = vpop.f32.mrb[0].mxu0
      %v3020 = vadd.f32 0.0, %v3019
      %v3021 = vpop.f32.mrb[0].mxu0
      %3022 = vmatprep.mubr.f32.mxu0 0.0
      %3023 = vmatmul.mubr.f32.gmra.mrb[0].mxu0 %v2745
      %v3024 = vpop.f32.mrb[0].mxu0
      %v3025 = vadd.f32 0.0, %v3024
      %v3026 = vpop.f32.mrb[0].mxu0
      %3027 = vmatprep.mubr.f32.mxu0 0.0
      %3028 = vmatmul.mubr.f32.gmra.mrb[0].mxu0 %v2748
      %v3029 = vpop.f32.mrb[0].mxu0
      %v3030 = vadd.f32 0.0, %v3029
      %v3031 = vpop.f32.mrb[0].mxu0
      %3032 = vmatprep.mubr.f32.mxu0 0.0
      %3033 = vmatmul.mubr.f32.gmra.mrb[0].mxu0 %v2751
      %v3034 = vpop.f32.mrb[0].mxu0
      %v3035 = vadd.f32 0.0, %v3034
      %v3036 = vpop.f32.mrb[0].mxu0
      %3037 = vmatprep.mubr.f32.mxu0 0.0
      %3038 = vmatmul.mubr.f32.gmra.mrb[0].mxu0 %v2754
      %v3039 = vpop.f32.mrb[0].mxu0
      %v3040 = vadd.f32 0.0, %v3039
      %v3041 = vpop.f32.mrb[0].mxu0
      %3042 = vmatprep.mubr.f32.mxu0 0.0
      %3043 = vmatmul.mubr.f32.gmra.mrb[0].mxu0 %v2757
      %v3044 = vpop.f32.mrb[0].mxu0
      %v3045 = vadd.f32 0.0, %v3044
      %v3046 = vpop.f32.mrb[0].mxu0
      %3047 = vmatprep.mubr.f32.mxu0 0.0
      %3048 = vmatmul.mubr.f32.gmra.mrb[0].mxu0 %v2760
      %v3049 = vpop.f32.mrb[0].mxu0
      %v3050 = vadd.f32 0.0, %v3049
      %v3051 = vpop.f32.mrb[0].mxu0
      %3052 = vmatprep.mubr.f32.mxu0 0.0
      %3053 = vmatmul.mubr.f32.gmra.mrb[0].mxu0 %v2763
      %v3054 = vpop.f32.mrb[0].mxu0
      %v3055 = vadd.f32 0.0, %v3054
      %v3056 = vpop.f32.mrb[0].mxu0
      %3057 = vmatprep.mubr.f32.mxu0 0.0
      %3058 = vmatmul.mubr.f32.gmra.mrb[0].mxu0 %v2766
      %v3059 = vpop.f32.mrb[0].mxu0
      %v3060 = vadd.f32 0.0, %v3059
      %v3061 = vpop.f32.mrb[0].mxu0
      %3062 = vmatprep.mubr.f32.mxu0 0.0
      %3063 = vmatmul.mubr.f32.gmra.mrb[0].mxu0 %v2769
      %v3064 = vpop.f32.mrb[0].mxu0
      %v3065 = vadd.f32 0.0, %v3064
      %v3066 = vpop.f32.mrb[0].mxu0
      %3067 = vmatprep.mubr.f32.mxu0 0.0
      %3068 = vmatmul.mubr.f32.gmra.mrb[0].mxu0 %v2772
      %v3069 = vpop.f32.mrb[0].mxu0
      %v3070 = vadd.f32 0.0, %v3069
      %v3071 = vpop.f32.mrb[0].mxu0
      %3072 = vmatprep.mubr.f32.mxu0 0.0
      %3073 = vmatmul.mubr.f32.gmra.mrb[0].mxu0 %v2775
      %v3074 = vpop.f32.mrb[0].mxu0
      %v3075 = vadd.f32 0.0, %v3074
      %v3076 = vpop.f32.mrb[0].mxu0
      %3077 = vmatprep.mubr.f32.mxu0 0.0
      %3078 = vmatmul.mubr.f32.gmra.mrb[0].mxu0 %v2778
      %v3079 = vpop.f32.mrb[0].mxu0
      %v3080 = vadd.f32 0.0, %v3079
      %v3081 = vpop.f32.mrb[0].mxu0
      %3082 = vmatprep.mubr.f32.mxu0 0.0
      %3083 = vmatmul.mubr.f32.gmra.mrb[0].mxu0 %v2781
      %v3084 = vpop.f32.mrb[0].mxu0
      %v3085 = vadd.f32 0.0, %v3084
      %v3086 = vpop.f32.mrb[0].mxu0
      %3087 = vmatprep.mubr.f32.mxu0 0.0
      %3088 = vmatmul.mubr.f32.gmra.mrb[0].mxu0 %v2784
      %v3089 = vpop.f32.mrb[0].mxu0
      %v3090 = vadd.f32 0.0, %v3089
      %v3091 = vpop.f32.mrb[0].mxu0
      %3092 = vmatprep.mubr.f32.mxu0 0.0
      %3093 = vmatmul.mubr.f32.gmra.mrb[0].mxu0 %v2787
      %v3094 = vpop.f32.mrb[0].mxu0
      %v3095 = vadd.f32 0.0, %v3094
      %v3096 = vpop.f32.mrb[0].mxu0
      %3097 = vmatprep.mubr.f32.mxu0 0.0
      %3098 = vmatmul.mubr.f32.gmra.mrb[0].mxu0 %v2790
      %v3099 = vpop.f32.mrb[0].mxu0
      %v3100 = vadd.f32 0.0, %v3099
      %v3101 = vpop.f32.mrb[0].mxu0
      %3102 = vmatprep.mubr.f32.mxu0 0.0
      %3103 = vmatmul.mubr.f32.gmra.mrb[0].mxu0 %v2793
      %v3104 = vpop.f32.mrb[0].mxu0
      %v3105 = vadd.f32 0.0, %v3104
      %v3106 = vpop.f32.mrb[0].mxu0
      %3107 = vmatprep.mubr.f32.mxu0 0.0
      %3108 = vmatmul.mubr.f32.gmra.mrb[0].mxu0 %v2796
      %v3109 = vpop.f32.mrb[0].mxu0
      %v3110 = vadd.f32 0.0, %v3109
      %v3111 = vpop.f32.mrb[0].mxu0
      %3112 = vmatprep.mubr.f32.mxu0 0.0
      %3113 = vmatmul.mubr.f32.gmra.mrb[0].mxu0 %v2799
      %v3114 = vpop.f32.mrb[0].mxu0
      %v3115 = vadd.f32 0.0, %v3114
      %v3116 = vpop.f32.mrb[0].mxu0
      %3117 = vmatprep.mubr.f32.mxu0 0.0
      %3118 = vmatmul.mubr.f32.gmra.mrb[0].mxu0 %v2802
      %v3119 = vpop.f32.mrb[0].mxu0
      %v3120 = vadd.f32 0.0, %v3119
      %v3121 = vpop.f32.mrb[0].mxu0
      %3122 = vmatprep.mubr.f32.mxu0 0.0
      %3123 = vmatmul.mubr.f32.gmra.mrb[0].mxu0 %v2805
      %v3124 = vpop.f32.mrb[0].mxu0
      %v3125 = vadd.f32 0.0, %v3124
      %v3126 = vpop.f32.mrb[0].mxu0
      %3127 = vmatprep.mubr.f32.mxu0 0.0
      %3128 = vmatmul.mubr.f32.gmra.mrb[0].mxu0 %v2808
      %v3129 = vpop.f32.mrb[0].mxu0
      %v3130 = vadd.f32 0.0, %v3129
      %v3131 = vpop.f32.mrb[0].mxu0
      %3132 = vmatprep.mubr.f32.mxu0 0.0
      %3133 = vmatmul.mubr.f32.gmra.mrb[0].mxu0 %v2811
      %v3134 = vpop.f32.mrb[0].mxu0
      %v3135 = vadd.f32 0.0, %v3134
      %v3136 = vpop.f32.mrb[0].mxu0
      %3137 = vmatprep.mubr.f32.mxu0 0.0
      %3138 = vmatmul.mubr.f32.gmra.mrb[0].mxu0 %v2814
      %v3139 = vpop.f32.mrb[0].mxu0
      %v3140 = vadd.f32 0.0, %v3139
      %v3141 = vpop.f32.mrb[0].mxu0
      %3142 = vmatprep.mubr.f32.mxu0 0.0
      %3143 = vmatmul.mubr.f32.gmra.mrb[0].mxu0 %v2817
      %v3144 = vpop.f32.mrb[0].mxu0
      %v3145 = vadd.f32 0.0, %v3144
      %v3146 = vpop.f32.mrb[0].mxu0
      %3147 = vmatprep.mubr.f32.mxu0 0.0
      %3148 = vmatmul.mubr.f32.gmra.mrb[0].mxu0 %v2820
      %v3149 = vpop.f32.mrb[0].mxu0
      %v3150 = vadd.f32 0.0, %v3149
      %v3151 = vpop.f32.mrb[0].mxu0
      %3152 = vmatprep.mubr.f32.mxu0 0.0
      %3153 = vmatmul.mubr.f32.gmra.mrb[0].mxu0 %v2823
      %v3154 = vpop.f32.mrb[0].mxu0
      %v3155 = vadd.f32 0.0, %v3154
      %v3156 = vpop.f32.mrb[0].mxu0
      %3157 = vmatprep.mubr.f32.mxu0 0.0
      %3158 = vmatmul.mubr.f32.gmra.mrb[0].mxu0 %v2826
      %v3159 = vpop.f32.mrb[0].mxu0
      %v3160 = vadd.f32 0.0, %v3159
      %v3161 = vpop.f32.mrb[0].mxu0
      %3162 = vmatprep.mubr.f32.mxu0 0.0
      %3163 = vmatmul.mubr.f32.gmra.mrb[0].mxu0 %v2829
      %v3164 = vpop.f32.mrb[0].mxu0
      %v3165 = vadd.f32 0.0, %v3164
      %v3166 = vpop.f32.mrb[0].mxu0
      %3167 = vmatprep.mubr.f32.mxu0 0.0
      %3168 = vmatmul.mubr.f32.gmra.mrb[0].mxu0 %v2832
      %v3169 = vpop.f32.mrb[0].mxu0
      %v3170 = vadd.f32 0.0, %v3169
      %v3171 = vpop.f32.mrb[0].mxu0
      %3172 = vmatprep.mubr.f32.mxu0 0.0
      %3173 = vmatmul.mubr.f32.gmra.mrb[0].mxu0 %v2835
      %v3174 = vpop.f32.mrb[0].mxu0
      %v3175 = vadd.f32 0.0, %v3174
      %v3176 = vpop.f32.mrb[0].mxu0
      %3177 = vmatprep.mubr.f32.mxu0 0.0
      %3178 = vmatmul.mubr.f32.gmra.mrb[0].mxu0 %v2838
      %v3179 = vpop.f32.mrb[0].mxu0
      %v3180 = vadd.f32 0.0, %v3179
      %v3181 = vpop.f32.mrb[0].mxu0
      %3182 = vmatprep.mubr.f32.mxu0 0.0
      %3183 = vmatmul.mubr.f32.gmra.mrb[0].mxu0 %v2841
      %v3184 = vpop.f32.mrb[0].mxu0
      %v3185 = vadd.f32 0.0, %v3184
      %v3186 = vpop.f32.mrb[0].mxu0
      %3187 = vmatprep.mubr.f32.mxu0 0.0
      %3188 = vmatmul.mubr.f32.gmra.mrb[0].mxu0 %v2844
      %v3189 = vpop.f32.mrb[0].mxu0
      %v3190 = vadd.f32 0.0, %v3189
      %v3191 = vpop.f32.mrb[0].mxu0
      %3192 = vmatprep.mubr.f32.mxu0 0.0
      %3193 = vmatmul.mubr.f32.gmra.mrb[0].mxu0 %v2847
      %v3194 = vpop.f32.mrb[0].mxu0
      %v3195 = vadd.f32 0.0, %v3194
      %v3196 = vpop.f32.mrb[0].mxu0
      %3197 = vmatprep.mubr.f32.mxu0 0.0
      %3198 = vmatmul.mubr.f32.gmra.mrb[0].mxu0 %v2850
      %v3199 = vpop.f32.mrb[0].mxu0
      %v3200 = vadd.f32 0.0, %v3199
      %v3201 = vpop.f32.mrb[0].mxu0
      %3202 = vmatprep.mubr.f32.mxu0 0.0
      %3203 = vmatmul.mubr.f32.gmra.mrb[0].mxu0 %v2853
      %v3204 = vpop.f32.mrb[0].mxu0
      %v3205 = vadd.f32 0.0, %v3204
      %v3206 = vpop.f32.mrb[0].mxu0
      %3207 = vmatprep.mubr.f32.mxu0 0.0
      %3208 = vmatmul.mubr.f32.gmra.mrb[0].mxu0 %v2856
      %v3209 = vpop.f32.mrb[0].mxu0
      %v3210 = vadd.f32 0.0, %v3209
      %v3211 = vpop.f32.mrb[0].mxu0
      %3212 = vmatprep.mubr.f32.mxu0 0.0
      %3213 = vmatmul.mubr.f32.gmra.mrb[0].mxu0 %v2859
      %v3214 = vpop.f32.mrb[0].mxu0
      %v3215 = vadd.f32 0.0, %v3214
      %v3216 = vpop.f32.mrb[0].mxu0
      %3217 = vmatprep.mubr.f32.mxu0 0.0
      %3218 = vmatmul.mubr.f32.gmra.mrb[0].mxu0 %v2862
      %v3219 = vpop.f32.mrb[0].mxu0
      %v3220 = vadd.f32 0.0, %v3219
      %v3221 = vpop.f32.mrb[0].mxu0
      %3222 = vmatprep.mubr.f32.mxu0 0.0
      %3223 = vmatmul.mubr.f32.gmra.mrb[0].mxu0 %v2865
      %v3224 = vpop.f32.mrb[0].mxu0
      %v3225 = vadd.f32 0.0, %v3224
      %v3226 = vpop.f32.mrb[0].mxu0
      %3227 = vmatprep.mubr.f32.mxu0 0.0
      %3228 = vmatmul.mubr.f32.gmra.mrb[0].mxu0 %v2868
      %v3229 = vpop.f32.mrb[0].mxu0
      %v3230 = vadd.f32 0.0, %v3229
      %v3231 = vpop.f32.mrb[0].mxu0
      %3232 = vmatprep.mubr.f32.mxu0 0.0
      %3233 = vmatmul.mubr.f32.gmra.mrb[0].mxu0 %v2871
      %v3234 = vpop.f32.mrb[0].mxu0
      %v3235 = vadd.f32 0.0, %v3234
      %v3236 = vpop.f32.mrb[0].mxu0
      %3237 = vmatprep.mubr.f32.mxu0 0.0
      %3238 = vmatmul.mubr.f32.gmra.mrb[0].mxu0 %v2874
      %v3239 = vpop.f32.mrb[0].mxu0
      %v3240 = vadd.f32 0.0, %v3239
      %v3241 = vpop.f32.mrb[0].mxu0
      %3242 = vmatprep.mubr.f32.mxu0 0.0
      %3243 = vmatmul.mubr.f32.gmra.mrb[0].mxu0 %v2877
      %v3244 = vpop.f32.mrb[0].mxu0
      %v3245 = vadd.f32 0.0, %v3244
      %v3246 = vpop.f32.mrb[0].mxu0
      %3247 = vmatprep.mubr.f32.mxu0 0.0
      %3248 = vmatmul.mubr.f32.gmra.mrb[0].mxu0 %v2880
      %v3249 = vpop.f32.mrb[0].mxu0
      %v3250 = vadd.f32 0.0, %v3249
      %v3251 = vpop.f32.mrb[0].mxu0
      %3252 = vmatprep.mubr.f32.mxu0 0.0
      %3253 = vmatmul.mubr.f32.gmra.mrb[0].mxu0 %v2883
      %v3254 = vpop.f32.mrb[0].mxu0
      %v3255 = vadd.f32 0.0, %v3254
      %v3256 = vpop.f32.mrb[0].mxu0
      %3257 = vmatprep.mubr.f32.mxu0 0.0
      %3258 = vmatmul.mubr.f32.gmra.mrb[0].mxu0 %v2886
      %v3259 = vpop.f32.mrb[0].mxu0
      %v3260 = vadd.f32 0.0, %v3259
      %v3261 = vpop.f32.mrb[0].mxu0
      %3262 = vmatprep.mubr.f32.mxu0 0.0
      %3263 = vmatmul.mubr.f32.gmra.mrb[0].mxu0 %v2889
      %v3264 = vpop.f32.mrb[0].mxu0
      %v3265 = vadd.f32 0.0, %v3264
      %v3266 = vpop.f32.mrb[0].mxu0
      %3267 = vmatprep.mubr.f32.mxu0 0.0
      %3268 = vmatmul.mubr.f32.gmra.mrb[0].mxu0 %v2892
      %v3269 = vpop.f32.mrb[0].mxu0
      %v3270 = vadd.f32 0.0, %v3269
      %v3271 = vpop.f32.mrb[0].mxu0
      %3272 = vmatprep.mubr.f32.mxu0 0.0
      %3273 = vmatmul.mubr.f32.gmra.mrb[0].mxu0 %v2895
      %v3274 = vpop.f32.mrb[0].mxu0
      %v3275 = vadd.f32 0.0, %v3274
      %v3276 = vpop.f32.mrb[0].mxu0
      %3277 = vmatprep.mubr.f32.mxu0 0.0
      %3278 = vmatmul.mubr.f32.gmra.mrb[0].mxu0 %v2898
      %v3279 = vpop.f32.mrb[0].mxu0
      %v3280 = vadd.f32 0.0, %v3279
      %v3281 = vpop.f32.mrb[0].mxu0
      %3282 = vmatprep.mubr.f32.mxu0 0.0
      %3283 = vmatmul.mubr.f32.gmra.mrb[0].mxu0 %v2901
      %v3284 = vpop.f32.mrb[0].mxu0
      %v3285 = vadd.f32 0.0, %v3284
      %v3286 = vpop.f32.mrb[0].mxu0
      %3287 = vdwg.mxu0
      %v3288 = vlaneseq
      %v3289 = vshrl.u32 %v3288, 7
      %v3290 = vsub.s32 0, %v3289
      %v3291 = vrot.slane %v514, %v3290
      %v3292 = vlaneseq
      %v3293 = vshrl.u32 %v3292, 7
      %v3294 = vsub.s32 0, %v3293
      %v3295 = vrot.slane %v515, %v3294
      %v3296 = vlaneseq
      %v3297 = vshrl.u32 %v3296, 7
      %v3298 = vsub.s32 0, %v3297
      %v3299 = vrot.slane %v516, %v3298
      %v3300 = vlaneseq
      %v3301 = vshrl.u32 %v3300, 7
      %v3302 = vsub.s32 0, %v3301
      %v3303 = vrot.slane %v517, %v3302
      %vm3304 = vcmp.eq.s32.totalorder %v519, %v3291
      %vm3305 = vcmp.eq.s32.totalorder %v519, %v3295
      %vm3306 = vcmp.eq.s32.totalorder %v519, %v3299
      %vm3307 = vcmp.eq.s32.totalorder %v519, %v3303
      %v3308 = vsel %vm3304, 1, 0
      %v3309 = vsel %vm3305, 1, 0
      %v3310 = vsel %vm3306, 1, 0
      %v3311 = vsel %vm3307, 1, 0
      %v3312 = vcvt.s32.f32 %v3308
      %v3313 = vcvt.s32.f32 %v3309
      %v3314 = vcvt.s32.f32 %v3310
      %v3315 = vcvt.s32.f32 %v3311
      %v3316 = vld [vmem:[%s344] sm:$0x7]
      %3317 = vmatprep.subr.mxu0 0.0
      %3318 = vmatpush1.msra.mxu0 %v2970
      %3319 = vmatprep.subr.mxu0 0.0
      %3320 = vmatpush1.msra.mxu0 %v2975
      %3321 = vmatprep.subr.mxu0 0.0
      %3322 = vmatpush1.msra.mxu0 %v2980
      %3323 = vmatprep.subr.mxu0 0.0
      %3324 = vmatpush1.msra.mxu0 %v2985
      %3325 = vmatprep.subr.mxu0 0.0
      %3326 = vmatpush1.msra.mxu0 %v2990
      %3327 = vmatprep.subr.mxu0 0.0
      %3328 = vmatpush1.msra.mxu0 %v2995
      %3329 = vmatprep.subr.mxu0 0.0
      %3330 = vmatpush1.msra.mxu0 %v3000
      %3331 = vmatprep.subr.mxu0 0.0
      %3332 = vmatpush1.msra.mxu0 %v3005
      %3333 = vmatprep.subr.mxu0 0.0
      %3334 = vmatpush1.msra.mxu0 %v3010
      %3335 = vmatprep.subr.mxu0 0.0
      %3336 = vmatpush1.msra.mxu0 %v3015
      %3337 = vmatprep.subr.mxu0 0.0
      %3338 = vmatpush1.msra.mxu0 %v3020
      %3339 = vmatprep.subr.mxu0 0.0
      %3340 = vmatpush1.msra.mxu0 %v3025
      %3341 = vmatprep.subr.mxu0 0.0
      %3342 = vmatpush1.msra.mxu0 %v3030
      %3343 = vmatprep.subr.mxu0 0.0
      %3344 = vmatpush1.msra.mxu0 %v3035
      %3345 = vmatprep.subr.mxu0 0.0
      %3346 = vmatpush1.msra.mxu0 %v3040
      %3347 = vmatprep.subr.mxu0 0.0
      %3348 = vmatpush1.msra.mxu0 %v3045
      %3349 = vmatprep.subr.mxu0 0.0
      %3350 = vmatpush1.msra.mxu0 %v3050
      %3351 = vmatprep.subr.mxu0 0.0
      %3352 = vmatpush1.msra.mxu0 %v3055
      %3353 = vmatprep.subr.mxu0 0.0
      %3354 = vmatpush1.msra.mxu0 %v3060
      %3355 = vmatprep.subr.mxu0 0.0
      %3356 = vmatpush1.msra.mxu0 %v3065
      %3357 = vmatprep.subr.mxu0 0.0
      %3358 = vmatpush1.msra.mxu0 %v3070
      %3359 = vmatprep.subr.mxu0 0.0
      %3360 = vmatpush1.msra.mxu0 %v3075
      %3361 = vmatprep.subr.mxu0 0.0
      %3362 = vmatpush1.msra.mxu0 %v3080
      %3363 = vmatprep.subr.mxu0 0.0
      %3364 = vmatpush1.msra.mxu0 %v3085
      %3365 = vmatprep.subr.mxu0 0.0
      %3366 = vmatpush1.msra.mxu0 %v3090
      %3367 = vmatprep.subr.mxu0 0.0
      %3368 = vmatpush1.msra.mxu0 %v3095
      %3369 = vmatprep.subr.mxu0 0.0
      %3370 = vmatpush1.msra.mxu0 %v3100
      %3371 = vmatprep.subr.mxu0 0.0
      %3372 = vmatpush1.msra.mxu0 %v3105
      %3373 = vmatprep.subr.mxu0 0.0
      %3374 = vmatpush1.msra.mxu0 %v3110
      %3375 = vmatprep.subr.mxu0 0.0
      %3376 = vmatpush1.msra.mxu0 %v3115
      %3377 = vmatprep.subr.mxu0 0.0
      %3378 = vmatpush1.msra.mxu0 %v3120
      %3379 = vmatprep.subr.mxu0 0.0
      %3380 = vmatpush1.msra.mxu0 %v3125
      %3381 = vmatprep.mubr.f32.mxu0 %v3313
      %3382 = vmatmul.mubr.f32.gmra.mrb[0].mxu0 %v3312
      %v3383 = vpop.f32.mrb[0].mxu0
      %v3384 = vadd.f32 0.0, %v3383
      %v3385 = vpop.f32.mrb[0].mxu0
      %3386 = vdwg.mxu0
      %3387 = vmatprep.subr.mxu0 0.0
      %3388 = vmatpush1.msra.mxu0 %v3130
      %3389 = vmatprep.subr.mxu0 0.0
      %3390 = vmatpush1.msra.mxu0 %v3135
      %3391 = vmatprep.subr.mxu0 0.0
      %3392 = vmatpush1.msra.mxu0 %v3140
      %3393 = vmatprep.subr.mxu0 0.0
      %3394 = vmatpush1.msra.mxu0 %v3145
      %3395 = vmatprep.subr.mxu0 0.0
      %3396 = vmatpush1.msra.mxu0 %v3150
      %3397 = vmatprep.subr.mxu0 0.0
      %3398 = vmatpush1.msra.mxu0 %v3155
      %3399 = vmatprep.subr.mxu0 0.0
      %3400 = vmatpush1.msra.mxu0 %v3160
      %3401 = vmatprep.subr.mxu0 0.0
      %3402 = vmatpush1.msra.mxu0 %v3165
      %3403 = vmatprep.subr.mxu0 0.0
      %3404 = vmatpush1.msra.mxu0 %v3170
      %3405 = vmatprep.subr.mxu0 0.0
      %3406 = vmatpush1.msra.mxu0 %v3175
      %3407 = vmatprep.subr.mxu0 0.0
      %3408 = vmatpush1.msra.mxu0 %v3180
      %3409 = vmatprep.subr.mxu0 0.0
      %3410 = vmatpush1.msra.mxu0 %v3185
      %3411 = vmatprep.subr.mxu0 0.0
      %3412 = vmatpush1.msra.mxu0 %v3190
      %3413 = vmatprep.subr.mxu0 0.0
      %3414 = vmatpush1.msra.mxu0 %v3195
      %3415 = vmatprep.subr.mxu0 0.0
      %3416 = vmatpush1.msra.mxu0 %v3200
      %3417 = vmatprep.subr.mxu0 0.0
      %3418 = vmatpush1.msra.mxu0 %v3205
      %3419 = vmatprep.subr.mxu0 0.0
      %3420 = vmatpush1.msra.mxu0 %v3210
      %3421 = vmatprep.subr.mxu0 0.0
      %3422 = vmatpush1.msra.mxu0 %v3215
      %3423 = vmatprep.subr.mxu0 0.0
      %3424 = vmatpush1.msra.mxu0 %v3220
      %3425 = vmatprep.subr.mxu0 0.0
      %3426 = vmatpush1.msra.mxu0 %v3225
      %3427 = vmatprep.subr.mxu0 0.0
      %3428 = vmatpush1.msra.mxu0 %v3230
      %3429 = vmatprep.subr.mxu0 0.0
      %3430 = vmatpush1.msra.mxu0 %v3235
      %3431 = vmatprep.subr.mxu0 0.0
      %3432 = vmatpush1.msra.mxu0 %v3240
      %3433 = vmatprep.subr.mxu0 0.0
      %3434 = vmatpush1.msra.mxu0 %v3245
      %3435 = vmatprep.subr.mxu0 0.0
      %3436 = vmatpush1.msra.mxu0 %v3250
      %3437 = vmatprep.subr.mxu0 0.0
      %3438 = vmatpush1.msra.mxu0 %v3255
      %3439 = vmatprep.subr.mxu0 0.0
      %3440 = vmatpush1.msra.mxu0 %v3260
      %3441 = vmatprep.subr.mxu0 0.0
      %3442 = vmatpush1.msra.mxu0 %v3265
      %3443 = vmatprep.subr.mxu0 0.0
      %3444 = vmatpush1.msra.mxu0 %v3270
      %3445 = vmatprep.subr.mxu0 0.0
      %3446 = vmatpush1.msra.mxu0 %v3275
      %3447 = vmatprep.subr.mxu0 0.0
      %3448 = vmatpush1.msra.mxu0 %v3280
      %3449 = vmatprep.subr.mxu0 0.0
      %3450 = vmatpush1.msra.mxu0 %v3285
      %3451 = vmatprep.mubr.f32.mxu0 %v3315
      %3452 = vmatmul.mubr.f32.gmra.mrb[0].mxu0 %v3314
      %v3453 = vpop.f32.mrb[0].mxu0
      %v3454 = vadd.f32 %v3384, %v3453
      %v3455 = vpop.f32.mrb[0].mxu0
      %3456 = vdwg.mxu0
      %v3457 = vadd.f32 %v3316, %v3454
      %vm3458 = vcmask 124928
      %3459 = vst.msk [vmem:[%s344] sm:$0x7] %vm3458, %v3457
      %v3460 = vld [vmem:[#allocation2] sm:$0x7]
      %vm3461 = vcmask 1042432
      %v3462 = vsel %vm3461, %v3312, 0.0
      %v3463 = vsel %vm3461, %v3313, 0.0
      %v3464 = vadd.f32 %v3462, %v3463
      %v3465 = vsel %vm3461, %v3314, 0.0
      %v3466 = vadd.f32 %v3464, %v3465
      %v3467 = vsel %vm3461, %v3315, 0.0
      %v3468 = vadd.f32 %v3466, %v3467
      %3469 = vadd.xlane.f32.xlu0 %v3468
      %v3470 = vpop.xlane.xlu0 %3469
      %v3471 = vadd.f32 %v3460, %v3470
      %vm3472 = vcmask 2048
      %3473 = vst.msk [vmem:[#allocation2] sm:$0x7] %vm3472, %v3471
      // Predicated region
      $region49: #{tpu_custom_call.1} parent=43 // pred_check
        %p3474 = pneg %p346
      $region50: #{tpu_custom_call.1} parent=43 // pred_check_branch
        %3476 = sbr.rel (%p3474) target = $region52
      $region51: #{tpu_custom_call.1} parent=43 // pred_region
        %v3477 = vld [vmem:[%s344] sm:$0x7]
        %v3478 = vld [vmem:[#allocation2] sm:$0x7]
        %v3479 = vld [vmem:[%s5] sm:$0x1]
        %3481 = vset.pattern.permute.xlu0 0
        %3482 = vperm.xlu0 %3481, %v3478
        %v3483 = vpop.permute.xlu0 %3482
        %v3486 = vlaneseq
        %v3487 = vshrl.u32 %v3486, 7
        %v3488 = vsub.s32 0, %v3487
        %v3489 = vrot.slane %v3479, %v3488
        %v3491 = vmul.f32 %v3483, %v3489
        %v3492 = vadd.f32 %v3477, %v3491
        %3493 = vst.msk [vmem:[%s344] sm:$0x7] %vm3458, %v3492
      $region52: #{tpu_custom_call.1} parent=43 // pred_fallthru
        _
      %p3494 = scmp.lt.s32.totalorder %s21, 1
      %s3495 = scalar_select %p3494, %s21, 1
      %s3496 = smul.addr %s3495, 4
      %s3497 = scalar_lea.vmem %s6, %s3496
      // Predicated region
      $region53: #{tpu_custom_call.1} parent=43 // pred_check
        %p3498 = pneg %p195
      $region54: #{tpu_custom_call.1} parent=43 // pred_check_branch
        %3500 = sbr.rel (%p3498) target = $region56
      $region55: #{tpu_custom_call.1} parent=43 // pred_region
        _
      $region56: #{tpu_custom_call.1} parent=43 // pred_fallthru
        _
    $region44: #{tpu_custom_call.1} parent=5 // pred_fallthru
      _
    %p3501 = scmp.le.s32.totalorder 2, %s12
    // Predicated region
    $region57: #{tpu_custom_call.1} parent=5 // pred_check
      %p3502 = pneg %p3501
    $region58: #{tpu_custom_call.1} parent=5 // pred_check_branch
      %3504 = sbr.rel (%p3502) target = $region60
    $region59: #{tpu_custom_call.1} parent=5 // pred_region
      %s3505 = ssub.s32 %s12, 2
      // Predicated region
      $region61: #{tpu_custom_call.1} parent=59 // pred_check
        %p3506 = pneg %p201
      $region62: #{tpu_custom_call.1} parent=59 // pred_check_branch
        %3508 = sbr.rel (%p3506) target = $region64
      $region63: #{tpu_custom_call.1} parent=59 // pred_region
        %p3509 = scmp.lt.s32.totalorder %s23, 1
        %s3510 = scalar_select %p3509, %s23, 1
        %s3511 = smul.addr %s3510, 4
        %s3512 = scalar_lea.vmem %s6, %s3511
      $region64: #{tpu_custom_call.1} parent=59 // pred_fallthru
        _
    $region60: #{tpu_custom_call.1} parent=5 // pred_fallthru
      _
  $region6: #{tpu_custom_call.1} parent=0 // loop_footer
    %s16 = sadd.s32 1, %s12
  $region7: #{tpu_custom_call.1} parent=0 // loop_footer_branch
    %11 = sbr.rel target = $region3
  $region8: #{tpu_custom_call.1} parent=0 // loop_exit
    _

</llo_original>
